<compile_context>
chip_gen: v5e
topology: v5e:2x2
jax: 0.10.0
libtpu: 0.0.40
codegen_flags: <defaults>
</compile_context>

<pallas_src>
import functools

import jax
import jax.numpy as jnp
from jax.experimental import pallas as pl
from jax.experimental.pallas import tpu as pltpu


# -----------------------------------------------------------------------------
# Pallas GEMM kernel (M-tiled, bf16 -> f32 accumulation)
# -----------------------------------------------------------------------------
def _matmul_kernel(a_ref, b_ref, o_ref):
    o_ref[...] = jnp.dot(a_ref[...], b_ref[...],
                         preferred_element_type=jnp.float32).astype(o_ref.dtype)


def pallas_matmul(a, b, *, tm_max=512):
    """a: (M, K) bf16, b: (K, N) bf16 -> (M, N) f32.

    Tiled over M only (K and N are small: K = Cin <= 8*ngf, N = 16*Cout), so
    each grid step is a single MXU GEMM with lane-dense output; the grid is
    software-pipelined and marked "parallel" (both TensorCores on v7x).
    """
    M, K = a.shape
    K2, N = b.shape
    assert K == K2
    tm = M if M <= tm_max else tm_max
    grid_m = pl.cdiv(M, tm)
    Mp = grid_m * tm
    if Mp != M:                               # pad trailing partial tile
        a = jnp.pad(a, ((0, Mp - M), (0, 0)))

    # VMEM budget: 2 double-buffered A tiles + B + 2 out tiles + slack.
    # Clamped to 32 MiB so it is valid on v5e/v6e (128 MiB) and v7x (64 MiB).
    vmem = (2 * tm * K * a.dtype.itemsize + K * N * b.dtype.itemsize
            + 2 * tm * N * 4 + (2 << 20))
    vmem = int(min(max(vmem, 8 << 20), 32 << 20))

    out = pl.pallas_call(
        _matmul_kernel,
        out_shape=jax.ShapeDtypeStruct((Mp, N), jnp.float32),
        grid=(grid_m,),
        in_specs=[
            pl.BlockSpec((tm, K), lambda i: (i, 0)),
            pl.BlockSpec((K, N), lambda i: (0, 0)),
        ],
        out_specs=pl.BlockSpec((tm, N), lambda i: (i, 0)),
        compiler_params=pltpu.CompilerParams(
            dimension_semantics=("parallel",),
            vmem_limit_bytes=vmem),
    )(a, b)
    return out[:M] if Mp != M else out


# -----------------------------------------------------------------------------
# Pallas GroupNorm + affine + ReLU (one whole sample per grid step, NHWC)
# -----------------------------------------------------------------------------
def _gn_relu_kernel(x_ref, gamma_ref, beta_ref, p_ref, o_ref, *, eps, inv_cnt):
    x = x_ref[0].astype(jnp.float32)                       # (HW, C)
    P = p_ref[...]                                         # (C, C) block-diag 1s
    # Per-channel sums (sublane reduce), then group-sum + broadcast back to
    # channels in one tiny matmul with the "same group" matrix P.
    mean = jnp.dot(jnp.sum(x, axis=0, keepdims=True), P,
                   preferred_element_type=jnp.float32) * inv_cnt      # (1, C)
    d = x - mean
    var = jnp.dot(jnp.sum(d * d, axis=0, keepdims=True), P,
                  preferred_element_type=jnp.float32) * inv_cnt       # (1, C)
    y = d * jax.lax.rsqrt(var + eps) * gamma_ref[...] + beta_ref[...]
    o_ref[0] = jnp.maximum(y, 0.0).astype(o_ref.dtype)


def groupnorm_relu(x_nhwc, gamma, beta, num_groups, *,
                   out_dtype=jnp.bfloat16, eps=1e-5):
    """x: (N, H, W, C) -> GroupNorm(num_groups) + affine + ReLU, NHWC."""
    N, H, W, C = x_nhwc.shape
    G = num_groups
    assert C % G == 0
    Cg = C // G
    HW = H * W

    x3 = x_nhwc.reshape(N, HW, C)
    g2 = gamma.reshape(1, C).astype(jnp.float32)
    b2 = beta.reshape(1, C).astype(jnp.float32)
    gid = jnp.arange(C, dtype=jnp.int32) // Cg
    P = (gid[:, None] == gid[None, :]).astype(jnp.float32)  # (C, C)

    out = pl.pallas_call(
        functools.partial(_gn_relu_kernel, eps=eps, inv_cnt=1.0 / float(HW * Cg)),
        out_shape=jax.ShapeDtypeStruct((N, HW, C), out_dtype),
        grid=(N,),
        in_specs=[
            pl.BlockSpec((1, HW, C), lambda n: (n, 0, 0)),
            pl.BlockSpec((1, C), lambda n: (0, 0)),
            pl.BlockSpec((1, C), lambda n: (0, 0)),
            pl.BlockSpec((C, C), lambda n: (0, 0)),
        ],
        out_specs=pl.BlockSpec((1, HW, C), lambda n: (n, 0, 0)),
        compiler_params=pltpu.CompilerParams(
            dimension_semantics=("parallel",)),
    )(x3, g2, b2, P)
    return out.reshape(N, H, W, C)


# -----------------------------------------------------------------------------
# ConvTranspose2d(k=4, s=2, p=1) via X @ W[Cin, 16*Cout] (Pallas) + JAX fold
# -----------------------------------------------------------------------------
def deconv_s2(x_nhwc, b_gemm, cout):
    """x_nhwc: (N, H, W, Cin) -> (N, 2H, 2W, Cout) f32.

    b_gemm: (Cin, 16*Cout) bf16 with lane order (a_h, a_w, b_h, b_w, co) where
    kh = 2*a_h + b_h, kw = 2*a_w + b_w (see prepare_generator).
    """
    N, H, W, Cin = x_nhwc.shape
    A = x_nhwc.reshape(N * H * W, Cin).astype(jnp.bfloat16)
    y = pallas_matmul(A, b_gemm)                            # (N*H*W, 16*Cout) f32
    y = y.reshape(N, H, W, 2, 2, 2, 2, cout)                # (n,ih,iw,ah,aw,bh,bw,c)

    # Overlap-add: raw output index oh_raw = 2*(ih + a_h) + b_h (and same for w).
    acc = jnp.zeros((N, H + 1, W + 1, 2, 2, cout), jnp.float32)
    for ah in range(2):
        for aw in range(2):
            acc = acc.at[:, ah:ah + H, aw:aw + W].add(y[:, :, :, ah, aw])
    # interleave (m, b) -> raw spatial index, then crop for padding=1
    acc = acc.transpose(0, 1, 3, 2, 4, 5).reshape(N, 2 * H + 2, 2 * W + 2, cout)
    return acc[:, 1:2 * H + 1, 1:2 * W + 1, :]


# -----------------------------------------------------------------------------
# One-time weight preprocessing (GEMM-ready, bf16) + forward pass
# -----------------------------------------------------------------------------
def prepare_generator(params):
    """Hoisted out of the forward: build GEMM-ready bf16 weights once."""
    def s2_gemm_weight(w):                      # (Cin, Cout, 4, 4)
        Cin, Cout = w.shape[0], w.shape[1]
        w6 = w.reshape(Cin, Cout, 2, 2, 2, 2)   # (Cin, Cout, ah, bh, aw, bw)
        w6 = w6.transpose(0, 2, 4, 3, 5, 1)     # (Cin, ah, aw, bh, bw, Cout)
        return jnp.asarray(w6.reshape(Cin, 16 * Cout), jnp.bfloat16)

    w1 = params["w1"]                           # (nz, C1, 4, 4)
    nz_, C1 = w1.shape[0], w1.shape[1]
    prep = {
        "gemm_w1": jnp.asarray(
            w1.transpose(0, 2, 3, 1).reshape(nz_, 16 * C1), jnp.bfloat16),
        "gemm_w2": s2_gemm_weight(params["w2"]),
        "gemm_w3": s2_gemm_weight(params["w3"]),
        "gemm_w4": s2_gemm_weight(params["w4"]),
        "gemm_w5": s2_gemm_weight(params["w5"]),
    }
    for i in (1, 2, 3, 4):
        prep[f"gn_g{i}"] = params[f"g{i}"].astype(jnp.float32)
        prep[f"gn_b{i}"] = params[f"b{i}"].astype(jnp.float32)
    return prep


def generator_forward(prep, z):
    """z: (N, nz, 1, 1) NCHW f32 -> (N, nc, 64, 64) NCHW f32."""
    N, nz_ = z.shape[0], z.shape[1]

    # Layer 1: ConvT(nz, 8ngf, 4, 1, 0) on 1x1 input == plain GEMM.
    C1 = prep["gemm_w1"].shape[1] // 16
    h = pallas_matmul(z.reshape(N, nz_).astype(jnp.bfloat16),
                      prep["gemm_w1"]).reshape(N, 4, 4, C1)          # NHWC f32
    # Module uses GroupNorm(min(32, ndf*k), ndf*k); valid only when ndf == ngf,
    # in which case min(32, C) with C = actual channel count is identical.
    h = groupnorm_relu(h, prep["gn_g1"], prep["gn_b1"], min(32, C1))

    # Layers 2..4: ConvT(k=4, s=2, p=1) + GroupNorm + ReLU.
    for i in (2, 3, 4):
        bw = prep[f"gemm_w{i}"]
        cout = bw.shape[1] // 16
        h = deconv_s2(h, bw, cout)
        h = groupnorm_relu(h, prep[f"gn_g{i}"], prep[f"gn_b{i}"], min(32, cout))

    # Layer 5: ConvT(k=4, s=2, p=1) + Tanh (tanh fuses with the fold epilogue).
    nc_out = prep["gemm_w5"].shape[1] // 16
    out = jnp.tanh(deconv_s2(h, prep["gemm_w5"], nc_out))
    return out.transpose(0, 3, 1, 2)                                 # NHWC -> NCHW


# -----------------------------------------------------------------------------
# Pure-JAX reference (same bf16-operand / f32-accumulate precision policy)
# -----------------------------------------------------------------------------
def _ref_conv_transpose(x, w, stride, padding):
    wf = jnp.flip(w, axis=(2, 3)).transpose(1, 0, 2, 3)      # (Cout, Cin, 4, 4)
    pad = 3 - padding
    return jax.lax.conv_general_dilated(
        x.astype(jnp.bfloat16), wf.astype(jnp.bfloat16),
        window_strides=(1, 1), padding=[(pad, pad), (pad, pad)],
        lhs_dilation=(stride, stride),
        dimension_numbers=("NCHW", "OIHW", "NCHW"),
        preferred_element_type=jnp.float32)


def _ref_groupnorm_relu(x, gamma, beta, G, eps=1e-5):
    N, C, H, W = x.shape
    xg = x.reshape(N, G, -1)
    mean = xg.mean(-1, keepdims=True)
    var = ((xg - mean) ** 2).mean(-1, keepdims=True)
    xn = ((xg - mean) / jnp.sqrt(var + eps)).reshape(N, C, H, W)
    y = xn * gamma[None, :, None, None] + beta[None, :, None, None]
    return jnp.maximum(y, 0.0)


def _ref_forward(params, z):
    h = _ref_conv_transpose(z, params["w1"], 1, 0)
    h = _ref_groupnorm_relu(h, params["g1"], params["b1"],
                            min(32, params["w1"].shape[1]))
    for i in (2, 3, 4):
        h = _ref_conv_transpose(h, params[f"w{i}"], 2, 1)
        h = _ref_groupnorm_relu(h, params[f"g{i}"], params[f"b{i}"],
                                min(32, params[f"w{i}"].shape[1]))
    return jnp.tanh(_ref_conv_transpose(h, params["w5"], 2, 1))


# -----------------------------------------------------------------------------
# Deterministic parameter init + driver
# -----------------------------------------------------------------------------
def init_params(key, nz, ngf, ndf, nc):
    assert ngf == ndf, "GroupNorm(num_channels=ndf*k) requires ndf == ngf"
    ks = jax.random.split(key, 16)

    def w(k, shape):
        return (0.05 * jax.random.normal(k, shape)).astype(jnp.float32)

    def gn(k, c):
        g = (1.0 + 0.1 * jax.random.normal(k, (c,))).astype(jnp.float32)
        b = (0.1 * jax.random.normal(jax.random.fold_in(k, 1), (c,))).astype(jnp.float32)
        return g, b

    params = {
        "w1": w(ks[0], (nz, ngf * 8, 4, 4)),
        "w2": w(ks[1], (ngf * 8, ngf * 4, 4, 4)),
        "w3": w(ks[2], (ngf * 4, ngf * 2, 4, 4)),
        "w4": w(ks[3], (ngf * 2, ngf, 4, 4)),
        "w5": w(ks[4], (ngf, nc, 4, 4)),
    }
    params["g1"], params["b1"] = gn(ks[5], ngf * 8)
    params["g2"], params["b2"] = gn(ks[6], ngf * 4)
    params["g3"], params["b3"] = gn(ks[7], ngf * 2)
    params["g4"], params["b4"] = gn(ks[8], ngf)
    return params


if __name__ == "__main__":
    # Small, self-consistent hyperparameters (opt.nz / opt.ngf / opt.ndf / opt.nc)
    N, nz, ngf, ndf, nc = 2, 16, 8, 8, 3
    key = jax.random.PRNGKey(0)
    kp, kz = jax.random.split(key)
    params = init_params(kp, nz, ngf, ndf, nc)
    z = jax.random.normal(kz, (N, nz, 1, 1), dtype=jnp.float32)

    prep = prepare_generator(params)            # one-time GEMM-ready bf16 weights
    fwd = jax.jit(generator_forward)
    out = jax.block_until_ready(fwd(prep, z))

    assert out.shape == (N, nc, 64, 64), out.shape
    assert bool(jnp.all(jnp.isfinite(out)))

    ref = jax.block_until_ready(jax.jit(_ref_forward)(params, z))
    max_err = float(jnp.max(jnp.abs(out - ref)))
    assert bool(jnp.allclose(out, ref, rtol=1e-2, atol=1e-2)), max_err

    print("KERNEL_OK")
</pallas_src>

<mosaic_0001>
module attributes {stable_mosaic.version = 11 : i64} {
  func.func @_matmul_kernel(%arg0: i32, %arg1: memref<2x16xbf16, #tpu.memory_space<vmem>>, %arg2: memref<16x1024xbf16, #tpu.memory_space<vmem>>, %arg3: memref<2x1024xf32, #tpu.memory_space<vmem>>) attributes {dimension_semantics = [#tpu.dimension_semantics<parallel>], iteration_bounds = array<i64: 1>, scalar_prefetch = 0 : i64, scratch_operands = 0 : i64, tpu.core_type = #tpu.core_type<tc>, window_params = [{transform_indices = @transform_0, window_bounds = array<i64: 2, 16>}, {pipeline_mode = #tpu.pipeline_mode<synchronous>, transform_indices = @transform_1, window_bounds = array<i64: 16, 1024>}, {transform_indices = @transform_2, window_bounds = array<i64: 2, 1024>}]} {
    %c0 = arith.constant 0 : index
    %c0_0 = arith.constant 0 : index
    %0 = vector.load %arg1[%c0, %c0_0] : memref<2x16xbf16, #tpu.memory_space<vmem>>, vector<2x16xbf16>
    %c0_1 = arith.constant 0 : index
    %c0_2 = arith.constant 0 : index
    %1 = vector.load %arg2[%c0_1, %c0_2] : memref<16x1024xbf16, #tpu.memory_space<vmem>>, vector<16x1024xbf16>
    %cst = arith.constant dense<0.000000e+00> : vector<2x1024xf32>
    %2 = tpu.matmul %0, %1, %cst {dimension_numbers = #tpu.dot_dimension_numbers<[1], [0], [0], [1], [0, 0, 1, 1], [], []>} : vector<2x16xbf16>, vector<16x1024xbf16>, vector<2x1024xf32> -> vector<2x1024xf32>
    %c0_3 = arith.constant 0 : index
    %c0_4 = arith.constant 0 : index
    %3 = vector.load %arg3[%c0_3, %c0_4] : memref<2x1024xf32, #tpu.memory_space<vmem>>, vector<2x1024xf32>
    tpu.vector_store %arg3[%c0_3, %c0_4], %2 {strides = array<i32>} : memref<2x1024xf32, #tpu.memory_space<vmem>>, vector<2x1024xf32>,
    return
  }
  func.func @transform_0(%arg0: i32) -> (i32, i32) {
    %c0_i32 = arith.constant 0 : i32
    %c0_i32_0 = arith.constant 0 : i32
    return %arg0, %c0_i32 : i32, i32
  }
  func.func @transform_1(%arg0: i32) -> (i32, i32) {
    %c0_i32 = arith.constant 0 : i32
    %c0_i32_0 = arith.constant 0 : i32
    %c0_i32_1 = arith.constant 0 : i32
    return %c0_i32, %c0_i32_0 : i32, i32
  }
  func.func @transform_2(%arg0: i32) -> (i32, i32) {
    %c0_i32 = arith.constant 0 : i32
    %c0_i32_0 = arith.constant 0 : i32
    return %arg0, %c0_i32 : i32, i32
  }
}

module attributes {stable_mosaic.version = 11 : i64} {
  func.func @_gn_relu_kernel(%arg0: i32, %arg1: memref<1x16x64xf32, #tpu.memory_space<vmem>>, %arg2: memref<1x64xf32, #tpu.memory_space<vmem>>, %arg3: memref<1x64xf32, #tpu.memory_space<vmem>>, %arg4: memref<64x64xf32, #tpu.memory_space<vmem>>, %arg5: memref<1x16x64xbf16, #tpu.memory_space<vmem>>) attributes {dimension_semantics = [#tpu.dimension_semantics<parallel>], iteration_bounds = array<i64: 2>, scalar_prefetch = 0 : i64, scratch_operands = 0 : i64, tpu.core_type = #tpu.core_type<tc>, window_params = [{transform_indices = @transform_0, window_bounds = array<i64: 1, 16, 64>}, {pipeline_mode = #tpu.pipeline_mode<synchronous>, transform_indices = @transform_1, window_bounds = array<i64: 1, 64>}, {pipeline_mode = #tpu.pipeline_mode<synchronous>, transform_indices = @transform_2, window_bounds = array<i64: 1, 64>}, {pipeline_mode = #tpu.pipeline_mode<synchronous>, transform_indices = @transform_3, window_bounds = array<i64: 64, 64>}, {transform_indices = @transform_4, window_bounds = array<i64: 1, 16, 64>}]} {
    %c0 = arith.constant 0 : index
    %c0_0 = arith.constant 0 : index
    %c0_1 = arith.constant 0 : index
    %0 = vector.load %arg1[%c0, %c0_0, %c0_1] : memref<1x16x64xf32, #tpu.memory_space<vmem>>, vector<1x16x64xf32>
    %1 = vector.shape_cast %0 : vector<1x16x64xf32> to vector<16x64xf32>
    %c0_2 = arith.constant 0 : index
    %c0_3 = arith.constant 0 : index
    %2 = vector.load %arg4[%c0_2, %c0_3] : memref<64x64xf32, #tpu.memory_space<vmem>>, vector<64x64xf32>
    %cst = arith.constant dense<0.000000e+00> : vector<64xf32>
    %3 = vector.multi_reduction <add>, %1, %cst [0] : vector<16x64xf32> to vector<64xf32>
    %4 = vector.shape_cast %3 : vector<64xf32> to vector<1x64xf32>
    %cst_4 = arith.constant dense<0.000000e+00> : vector<1x64xf32>
    %5 = tpu.matmul %4, %2, %cst_4 {dimension_numbers = #tpu.dot_dimension_numbers<[1], [0], [0], [1], [0, 0, 1, 1], [], []>} : vector<1x64xf32>, vector<64x64xf32>, vector<1x64xf32> -> vector<1x64xf32>
    %cst_5 = arith.constant 3.125000e-02 : f32
    %6 = vector.broadcast %cst_5 : f32 to vector<1x64xf32>
    %7 = arith.mulf %5, %6 : vector<1x64xf32>
    %8 = vector.broadcast %7 : vector<1x64xf32> to vector<16x64xf32>
    %9 = arith.subf %1, %8 : vector<16x64xf32>
    %10 = arith.mulf %9, %9 : vector<16x64xf32>
    %cst_6 = arith.constant dense<0.000000e+00> : vector<64xf32>
    %11 = vector.multi_reduction <add>, %10, %cst_6 [0] : vector<16x64xf32> to vector<64xf32>
    %12 = vector.shape_cast %11 : vector<64xf32> to vector<1x64xf32>
    %cst_7 = arith.constant dense<0.000000e+00> : vector<1x64xf32>
    %13 = tpu.matmul %12, %2, %cst_7 {dimension_numbers = #tpu.dot_dimension_numbers<[1], [0], [0], [1], [0, 0, 1, 1], [], []>} : vector<1x64xf32>, vector<64x64xf32>, vector<1x64xf32> -> vector<1x64xf32>
    %cst_8 = arith.constant 3.125000e-02 : f32
    %14 = vector.broadcast %cst_8 : f32 to vector<1x64xf32>
    %15 = arith.mulf %13, %14 : vector<1x64xf32>
    %cst_9 = arith.constant 9.99999974E-6 : f32
    %16 = vector.broadcast %cst_9 : f32 to vector<1x64xf32>
    %17 = arith.addf %15, %16 : vector<1x64xf32>
    %18 = math.rsqrt %17 : vector<1x64xf32>
    %19 = vector.broadcast %18 : vector<1x64xf32> to vector<16x64xf32>
    %20 = arith.mulf %9, %19 : vector<16x64xf32>
    %c0_10 = arith.constant 0 : index
    %c0_11 = arith.constant 0 : index
    %21 = vector.load %arg2[%c0_10, %c0_11] : memref<1x64xf32, #tpu.memory_space<vmem>>, vector<1x64xf32>
    %22 = vector.broadcast %21 : vector<1x64xf32> to vector<16x64xf32>
    %23 = arith.mulf %20, %22 : vector<16x64xf32>
    %c0_12 = arith.constant 0 : index
    %c0_13 = arith.constant 0 : index
    %24 = vector.load %arg3[%c0_12, %c0_13] : memref<1x64xf32, #tpu.memory_space<vmem>>, vector<1x64xf32>
    %25 = vector.broadcast %24 : vector<1x64xf32> to vector<16x64xf32>
    %26 = arith.addf %23, %25 : vector<16x64xf32>
    %cst_14 = arith.constant 0.000000e+00 : f32
    %27 = vector.broadcast %cst_14 : f32 to vector<16x64xf32>
    %28 = arith.maximumf %26, %27 : vector<16x64xf32>
    %29 = arith.truncf %28 : vector<16x64xf32> to vector<16x64xbf16>
    %c0_15 = arith.constant 0 : index
    %c0_16 = arith.constant 0 : index
    %c0_17 = arith.constant 0 : index
    %30 = vector.load %arg5[%c0_15, %c0_16, %c0_17] : memref<1x16x64xbf16, #tpu.memory_space<vmem>>, vector<1x16x64xbf16>
    %31 = vector.shape_cast %30 : vector<1x16x64xbf16> to vector<16x64xbf16>
    %32 = vector.shape_cast %29 : vector<16x64xbf16> to vector<1x16x64xbf16>
    tpu.vector_store %arg5[%c0_15, %c0_16, %c0_17], %32 {strides = array<i32>} : memref<1x16x64xbf16, #tpu.memory_space<vmem>>, vector<1x16x64xbf16>,
    return
  }
  func.func @transform_0(%arg0: i32) -> (i32, i32, i32) {
    %c0_i32 = arith.constant 0 : i32
    %c0_i32_0 = arith.constant 0 : i32
    %c0_i32_1 = arith.constant 0 : i32
    return %arg0, %c0_i32, %c0_i32_0 : i32, i32, i32
  }
  func.func @transform_1(%arg0: i32) -> (i32, i32) {
    %c0_i32 = arith.constant 0 : i32
    %c0_i32_0 = arith.constant 0 : i32
    %c0_i32_1 = arith.constant 0 : i32
    return %c0_i32, %c0_i32_0 : i32, i32
  }
  func.func @transform_2(%arg0: i32) -> (i32, i32) {
    %c0_i32 = arith.constant 0 : i32
    %c0_i32_0 = arith.constant 0 : i32
    %c0_i32_1 = arith.constant 0 : i32
    return %c0_i32, %c0_i32_0 : i32, i32
  }
  func.func @transform_3(%arg0: i32) -> (i32, i32) {
    %c0_i32 = arith.constant 0 : i32
    %c0_i32_0 = arith.constant 0 : i32
    %c0_i32_1 = arith.constant 0 : i32
    return %c0_i32, %c0_i32_0 : i32, i32
  }
  func.func @transform_4(%arg0: i32) -> (i32, i32, i32) {
    %c0_i32 = arith.constant 0 : i32
    %c0_i32_0 = arith.constant 0 : i32
    %c0_i32_1 = arith.constant 0 : i32
    return %arg0, %c0_i32, %c0_i32_0 : i32, i32, i32
  }
}

module attributes {stable_mosaic.version = 11 : i64} {
  func.func @_matmul_kernel(%arg0: i32, %arg1: memref<32x64xbf16, #tpu.memory_space<vmem>>, %arg2: memref<64x512xbf16, #tpu.memory_space<vmem>>, %arg3: memref<32x512xf32, #tpu.memory_space<vmem>>) attributes {dimension_semantics = [#tpu.dimension_semantics<parallel>], iteration_bounds = array<i64: 1>, scalar_prefetch = 0 : i64, scratch_operands = 0 : i64, tpu.core_type = #tpu.core_type<tc>, window_params = [{transform_indices = @transform_0, window_bounds = array<i64: 32, 64>}, {pipeline_mode = #tpu.pipeline_mode<synchronous>, transform_indices = @transform_1, window_bounds = array<i64: 64, 512>}, {transform_indices = @transform_2, window_bounds = array<i64: 32, 512>}]} {
    %c0 = arith.constant 0 : index
    %c0_0 = arith.constant 0 : index
    %0 = vector.load %arg1[%c0, %c0_0] : memref<32x64xbf16, #tpu.memory_space<vmem>>, vector<32x64xbf16>
    %c0_1 = arith.constant 0 : index
    %c0_2 = arith.constant 0 : index
    %1 = vector.load %arg2[%c0_1, %c0_2] : memref<64x512xbf16, #tpu.memory_space<vmem>>, vector<64x512xbf16>
    %cst = arith.constant dense<0.000000e+00> : vector<32x512xf32>
    %2 = tpu.matmul %0, %1, %cst {dimension_numbers = #tpu.dot_dimension_numbers<[1], [0], [0], [1], [0, 0, 1, 1], [], []>} : vector<32x64xbf16>, vector<64x512xbf16>, vector<32x512xf32> -> vector<32x512xf32>
    %c0_3 = arith.constant 0 : index
    %c0_4 = arith.constant 0 : index
    %3 = vector.load %arg3[%c0_3, %c0_4] : memref<32x512xf32, #tpu.memory_space<vmem>>, vector<32x512xf32>
    tpu.vector_store %arg3[%c0_3, %c0_4], %2 {strides = array<i32>} : memref<32x512xf32, #tpu.memory_space<vmem>>, vector<32x512xf32>,
    return
  }
  func.func @transform_0(%arg0: i32) -> (i32, i32) {
    %c0_i32 = arith.constant 0 : i32
    %c0_i32_0 = arith.constant 0 : i32
    return %arg0, %c0_i32 : i32, i32
  }
  func.func @transform_1(%arg0: i32) -> (i32, i32) {
    %c0_i32 = arith.constant 0 : i32
    %c0_i32_0 = arith.constant 0 : i32
    %c0_i32_1 = arith.constant 0 : i32
    return %c0_i32, %c0_i32_0 : i32, i32
  }
  func.func @transform_2(%arg0: i32) -> (i32, i32) {
    %c0_i32 = arith.constant 0 : i32
    %c0_i32_0 = arith.constant 0 : i32
    return %arg0, %c0_i32 : i32, i32
  }
}

module attributes {stable_mosaic.version = 11 : i64} {
  func.func @_matmul_kernel(%arg0: i32, %arg1: memref<128x32xbf16, #tpu.memory_space<vmem>>, %arg2: memref<32x256xbf16, #tpu.memory_space<vmem>>, %arg3: memref<128x256xf32, #tpu.memory_space<vmem>>) attributes {dimension_semantics = [#tpu.dimension_semantics<parallel>], iteration_bounds = array<i64: 1>, scalar_prefetch = 0 : i64, scratch_operands = 0 : i64, tpu.core_type = #tpu.core_type<tc>, window_params = [{transform_indices = @transform_0, window_bounds = array<i64: 128, 32>}, {pipeline_mode = #tpu.pipeline_mode<synchronous>, transform_indices = @transform_1, window_bounds = array<i64: 32, 256>}, {transform_indices = @transform_2, window_bounds = array<i64: 128, 256>}]} {
    %c0 = arith.constant 0 : index
    %c0_0 = arith.constant 0 : index
    %0 = vector.load %arg1[%c0, %c0_0] : memref<128x32xbf16, #tpu.memory_space<vmem>>, vector<128x32xbf16>
    %c0_1 = arith.constant 0 : index
    %c0_2 = arith.constant 0 : index
    %1 = vector.load %arg2[%c0_1, %c0_2] : memref<32x256xbf16, #tpu.memory_space<vmem>>, vector<32x256xbf16>
    %cst = arith.constant dense<0.000000e+00> : vector<128x256xf32>
    %2 = tpu.matmul %0, %1, %cst {dimension_numbers = #tpu.dot_dimension_numbers<[1], [0], [0], [1], [0, 0, 1, 1], [], []>} : vector<128x32xbf16>, vector<32x256xbf16>, vector<128x256xf32> -> vector<128x256xf32>
    %c0_3 = arith.constant 0 : index
    %c0_4 = arith.constant 0 : index
    %3 = vector.load %arg3[%c0_3, %c0_4] : memref<128x256xf32, #tpu.memory_space<vmem>>, vector<128x256xf32>
    tpu.vector_store %arg3[%c0_3, %c0_4], %2 {strides = array<i32>} : memref<128x256xf32, #tpu.memory_space<vmem>>, vector<128x256xf32>,
    return
  }
  func.func @transform_0(%arg0: i32) -> (i32, i32) {
    %c0_i32 = arith.constant 0 : i32
    %c0_i32_0 = arith.constant 0 : i32
    return %arg0, %c0_i32 : i32, i32
  }
  func.func @transform_1(%arg0: i32) -> (i32, i32) {
    %c0_i32 = arith.constant 0 : i32
    %c0_i32_0 = arith.constant 0 : i32
    %c0_i32_1 = arith.constant 0 : i32
    return %c0_i32, %c0_i32_0 : i32, i32
  }
  func.func @transform_2(%arg0: i32) -> (i32, i32) {
    %c0_i32 = arith.constant 0 : i32
    %c0_i32_0 = arith.constant 0 : i32
    return %arg0, %c0_i32 : i32, i32
  }
}

module attributes {stable_mosaic.version = 11 : i64} {
  func.func @_gn_relu_kernel(%arg0: i32, %arg1: memref<1x64x32xf32, #tpu.memory_space<vmem>>, %arg2: memref<1x32xf32, #tpu.memory_space<vmem>>, %arg3: memref<1x32xf32, #tpu.memory_space<vmem>>, %arg4: memref<32x32xf32, #tpu.memory_space<vmem>>, %arg5: memref<1x64x32xbf16, #tpu.memory_space<vmem>>) attributes {dimension_semantics = [#tpu.dimension_semantics<parallel>], iteration_bounds = array<i64: 2>, scalar_prefetch = 0 : i64, scratch_operands = 0 : i64, tpu.core_type = #tpu.core_type<tc>, window_params = [{transform_indices = @transform_0, window_bounds = array<i64: 1, 64, 32>}, {pipeline_mode = #tpu.pipeline_mode<synchronous>, transform_indices = @transform_1, window_bounds = array<i64: 1, 32>}, {pipeline_mode = #tpu.pipeline_mode<synchronous>, transform_indices = @transform_2, window_bounds = array<i64: 1, 32>}, {pipeline_mode = #tpu.pipeline_mode<synchronous>, transform_indices = @transform_3, window_bounds = array<i64: 32, 32>}, {transform_indices = @transform_4, window_bounds = array<i64: 1, 64, 32>}]} {
    %c0 = arith.constant 0 : index
    %c0_0 = arith.constant 0 : index
    %c0_1 = arith.constant 0 : index
    %0 = vector.load %arg1[%c0, %c0_0, %c0_1] : memref<1x64x32xf32, #tpu.memory_space<vmem>>, vector<1x64x32xf32>
    %1 = vector.shape_cast %0 : vector<1x64x32xf32> to vector<64x32xf32>
    %c0_2 = arith.constant 0 : index
    %c0_3 = arith.constant 0 : index
    %2 = vector.load %arg4[%c0_2, %c0_3] : memref<32x32xf32, #tpu.memory_space<vmem>>, vector<32x32xf32>
    %cst = arith.constant dense<0.000000e+00> : vector<32xf32>
    %3 = vector.multi_reduction <add>, %1, %cst [0] : vector<64x32xf32> to vector<32xf32>
    %4 = vector.shape_cast %3 : vector<32xf32> to vector<1x32xf32>
    %cst_4 = arith.constant dense<0.000000e+00> : vector<1x32xf32>
    %5 = tpu.matmul %4, %2, %cst_4 {dimension_numbers = #tpu.dot_dimension_numbers<[1], [0], [0], [1], [0, 0, 1, 1], [], []>} : vector<1x32xf32>, vector<32x32xf32>, vector<1x32xf32> -> vector<1x32xf32>
    %cst_5 = arith.constant 1.562500e-02 : f32
    %6 = vector.broadcast %cst_5 : f32 to vector<1x32xf32>
    %7 = arith.mulf %5, %6 : vector<1x32xf32>
    %8 = vector.broadcast %7 : vector<1x32xf32> to vector<64x32xf32>
    %9 = arith.subf %1, %8 : vector<64x32xf32>
    %10 = arith.mulf %9, %9 : vector<64x32xf32>
    %cst_6 = arith.constant dense<0.000000e+00> : vector<32xf32>
    %11 = vector.multi_reduction <add>, %10, %cst_6 [0] : vector<64x32xf32> to vector<32xf32>
    %12 = vector.shape_cast %11 : vector<32xf32> to vector<1x32xf32>
    %cst_7 = arith.constant dense<0.000000e+00> : vector<1x32xf32>
    %13 = tpu.matmul %12, %2, %cst_7 {dimension_numbers = #tpu.dot_dimension_numbers<[1], [0], [0], [1], [0, 0, 1, 1], [], []>} : vector<1x32xf32>, vector<32x32xf32>, vector<1x32xf32> -> vector<1x32xf32>
    %cst_8 = arith.constant 1.562500e-02 : f32
    %14 = vector.broadcast %cst_8 : f32 to vector<1x32xf32>
    %15 = arith.mulf %13, %14 : vector<1x32xf32>
    %cst_9 = arith.constant 9.99999974E-6 : f32
    %16 = vector.broadcast %cst_9 : f32 to vector<1x32xf32>
    %17 = arith.addf %15, %16 : vector<1x32xf32>
    %18 = math.rsqrt %17 : vector<1x32xf32>
    %19 = vector.broadcast %18 : vector<1x32xf32> to vector<64x32xf32>
    %20 = arith.mulf %9, %19 : vector<64x32xf32>
    %c0_10 = arith.constant 0 : index
    %c0_11 = arith.constant 0 : index
    %21 = vector.load %arg2[%c0_10, %c0_11] : memref<1x32xf32, #tpu.memory_space<vmem>>, vector<1x32xf32>
    %22 = vector.broadcast %21 : vector<1x32xf32> to vector<64x32xf32>
    %23 = arith.mulf %20, %22 : vector<64x32xf32>
    %c0_12 = arith.constant 0 : index
    %c0_13 = arith.constant 0 : index
    %24 = vector.load %arg3[%c0_12, %c0_13] : memref<1x32xf32, #tpu.memory_space<vmem>>, vector<1x32xf32>
    %25 = vector.broadcast %24 : vector<1x32xf32> to vector<64x32xf32>
    %26 = arith.addf %23, %25 : vector<64x32xf32>
    %cst_14 = arith.constant 0.000000e+00 : f32
    %27 = vector.broadcast %cst_14 : f32 to vector<64x32xf32>
    %28 = arith.maximumf %26, %27 : vector<64x32xf32>
    %29 = arith.truncf %28 : vector<64x32xf32> to vector<64x32xbf16>
    %c0_15 = arith.constant 0 : index
    %c0_16 = arith.constant 0 : index
    %c0_17 = arith.constant 0 : index
    %30 = vector.load %arg5[%c0_15, %c0_16, %c0_17] : memref<1x64x32xbf16, #tpu.memory_space<vmem>>, vector<1x64x32xbf16>
    %31 = vector.shape_cast %30 : vector<1x64x32xbf16> to vector<64x32xbf16>
    %32 = vector.shape_cast %29 : vector<64x32xbf16> to vector<1x64x32xbf16>
    tpu.vector_store %arg5[%c0_15, %c0_16, %c0_17], %32 {strides = array<i32>} : memref<1x64x32xbf16, #tpu.memory_space<vmem>>, vector<1x64x32xbf16>,
    return
  }
  func.func @transform_0(%arg0: i32) -> (i32, i32, i32) {
    %c0_i32 = arith.constant 0 : i32
    %c0_i32_0 = arith.constant 0 : i32
    %c0_i32_1 = arith.constant 0 : i32
    return %arg0, %c0_i32, %c0_i32_0 : i32, i32, i32
  }
  func.func @transform_1(%arg0: i32) -> (i32, i32) {
    %c0_i32 = arith.constant 0 : i32
    %c0_i32_0 = arith.constant 0 : i32
    %c0_i32_1 = arith.constant 0 : i32
    return %c0_i32, %c0_i32_0 : i32, i32
  }
  func.func @transform_2(%arg0: i32) -> (i32, i32) {
    %c0_i32 = arith.constant 0 : i32
    %c0_i32_0 = arith.constant 0 : i32
    %c0_i32_1 = arith.constant 0 : i32
    return %c0_i32, %c0_i32_0 : i32, i32
  }
  func.func @transform_3(%arg0: i32) -> (i32, i32) {
    %c0_i32 = arith.constant 0 : i32
    %c0_i32_0 = arith.constant 0 : i32
    %c0_i32_1 = arith.constant 0 : i32
    return %c0_i32, %c0_i32_0 : i32, i32
  }
  func.func @transform_4(%arg0: i32) -> (i32, i32, i32) {
    %c0_i32 = arith.constant 0 : i32
    %c0_i32_0 = arith.constant 0 : i32
    %c0_i32_1 = arith.constant 0 : i32
    return %arg0, %c0_i32, %c0_i32_0 : i32, i32, i32
  }
}

module attributes {stable_mosaic.version = 11 : i64} {
  func.func @_gn_relu_kernel(%arg0: i32, %arg1: memref<1x256x16xf32, #tpu.memory_space<vmem>>, %arg2: memref<1x16xf32, #tpu.memory_space<vmem>>, %arg3: memref<1x16xf32, #tpu.memory_space<vmem>>, %arg4: memref<16x16xf32, #tpu.memory_space<vmem>>, %arg5: memref<1x256x16xbf16, #tpu.memory_space<vmem>>) attributes {dimension_semantics = [#tpu.dimension_semantics<parallel>], iteration_bounds = array<i64: 2>, scalar_prefetch = 0 : i64, scratch_operands = 0 : i64, tpu.core_type = #tpu.core_type<tc>, window_params = [{transform_indices = @transform_0, window_bounds = array<i64: 1, 256, 16>}, {pipeline_mode = #tpu.pipeline_mode<synchronous>, transform_indices = @transform_1, window_bounds = array<i64: 1, 16>}, {pipeline_mode = #tpu.pipeline_mode<synchronous>, transform_indices = @transform_2, window_bounds = array<i64: 1, 16>}, {pipeline_mode = #tpu.pipeline_mode<synchronous>, transform_indices = @transform_3, window_bounds = array<i64: 16, 16>}, {transform_indices = @transform_4, window_bounds = array<i64: 1, 256, 16>}]} {
    %c0 = arith.constant 0 : index
    %c0_0 = arith.constant 0 : index
    %c0_1 = arith.constant 0 : index
    %0 = vector.load %arg1[%c0, %c0_0, %c0_1] : memref<1x256x16xf32, #tpu.memory_space<vmem>>, vector<1x256x16xf32>
    %1 = vector.shape_cast %0 : vector<1x256x16xf32> to vector<256x16xf32>
    %c0_2 = arith.constant 0 : index
    %c0_3 = arith.constant 0 : index
    %2 = vector.load %arg4[%c0_2, %c0_3] : memref<16x16xf32, #tpu.memory_space<vmem>>, vector<16x16xf32>
    %cst = arith.constant dense<0.000000e+00> : vector<16xf32>
    %3 = vector.multi_reduction <add>, %1, %cst [0] : vector<256x16xf32> to vector<16xf32>
    %4 = vector.shape_cast %3 : vector<16xf32> to vector<1x16xf32>
    %cst_4 = arith.constant dense<0.000000e+00> : vector<1x16xf32>
    %5 = tpu.matmul %4, %2, %cst_4 {dimension_numbers = #tpu.dot_dimension_numbers<[1], [0], [0], [1], [0, 0, 1, 1], [], []>} : vector<1x16xf32>, vector<16x16xf32>, vector<1x16xf32> -> vector<1x16xf32>
    %cst_5 = arith.constant 3.906250e-03 : f32
    %6 = vector.broadcast %cst_5 : f32 to vector<1x16xf32>
    %7 = arith.mulf %5, %6 : vector<1x16xf32>
    %8 = vector.broadcast %7 : vector<1x16xf32> to vector<256x16xf32>
    %9 = arith.subf %1, %8 : vector<256x16xf32>
    %10 = arith.mulf %9, %9 : vector<256x16xf32>
    %cst_6 = arith.constant dense<0.000000e+00> : vector<16xf32>
    %11 = vector.multi_reduction <add>, %10, %cst_6 [0] : vector<256x16xf32> to vector<16xf32>
    %12 = vector.shape_cast %11 : vector<16xf32> to vector<1x16xf32>
    %cst_7 = arith.constant dense<0.000000e+00> : vector<1x16xf32>
    %13 = tpu.matmul %12, %2, %cst_7 {dimension_numbers = #tpu.dot_dimension_numbers<[1], [0], [0], [1], [0, 0, 1, 1], [], []>} : vector<1x16xf32>, vector<16x16xf32>, vector<1x16xf32> -> vector<1x16xf32>
    %cst_8 = arith.constant 3.906250e-03 : f32
    %14 = vector.broadcast %cst_8 : f32 to vector<1x16xf32>
    %15 = arith.mulf %13, %14 : vector<1x16xf32>
    %cst_9 = arith.constant 9.99999974E-6 : f32
    %16 = vector.broadcast %cst_9 : f32 to vector<1x16xf32>
    %17 = arith.addf %15, %16 : vector<1x16xf32>
    %18 = math.rsqrt %17 : vector<1x16xf32>
    %19 = vector.broadcast %18 : vector<1x16xf32> to vector<256x16xf32>
    %20 = arith.mulf %9, %19 : vector<256x16xf32>
    %c0_10 = arith.constant 0 : index
    %c0_11 = arith.constant 0 : index
    %21 = vector.load %arg2[%c0_10, %c0_11] : memref<1x16xf32, #tpu.memory_space<vmem>>, vector<1x16xf32>
    %22 = vector.broadcast %21 : vector<1x16xf32> to vector<256x16xf32>
    %23 = arith.mulf %20, %22 : vector<256x16xf32>
    %c0_12 = arith.constant 0 : index
    %c0_13 = arith.constant 0 : index
    %24 = vector.load %arg3[%c0_12, %c0_13] : memref<1x16xf32, #tpu.memory_space<vmem>>, vector<1x16xf32>
    %25 = vector.broadcast %24 : vector<1x16xf32> to vector<256x16xf32>
    %26 = arith.addf %23, %25 : vector<256x16xf32>
    %cst_14 = arith.constant 0.000000e+00 : f32
    %27 = vector.broadcast %cst_14 : f32 to vector<256x16xf32>
    %28 = arith.maximumf %26, %27 : vector<256x16xf32>
    %29 = arith.truncf %28 : vector<256x16xf32> to vector<256x16xbf16>
    %c0_15 = arith.constant 0 : index
    %c0_16 = arith.constant 0 : index
    %c0_17 = arith.constant 0 : index
    %30 = vector.load %arg5[%c0_15, %c0_16, %c0_17] : memref<1x256x16xbf16, #tpu.memory_space<vmem>>, vector<1x256x16xbf16>
    %31 = vector.shape_cast %30 : vector<1x256x16xbf16> to vector<256x16xbf16>
    %32 = vector.shape_cast %29 : vector<256x16xbf16> to vector<1x256x16xbf16>
    tpu.vector_store %arg5[%c0_15, %c0_16, %c0_17], %32 {strides = array<i32>} : memref<1x256x16xbf16, #tpu.memory_space<vmem>>, vector<1x256x16xbf16>,
    return
  }
  func.func @transform_0(%arg0: i32) -> (i32, i32, i32) {
    %c0_i32 = arith.constant 0 : i32
    %c0_i32_0 = arith.constant 0 : i32
    %c0_i32_1 = arith.constant 0 : i32
    return %arg0, %c0_i32, %c0_i32_0 : i32, i32, i32
  }
  func.func @transform_1(%arg0: i32) -> (i32, i32) {
    %c0_i32 = arith.constant 0 : i32
    %c0_i32_0 = arith.constant 0 : i32
    %c0_i32_1 = arith.constant 0 : i32
    return %c0_i32, %c0_i32_0 : i32, i32
  }
  func.func @transform_2(%arg0: i32) -> (i32, i32) {
    %c0_i32 = arith.constant 0 : i32
    %c0_i32_0 = arith.constant 0 : i32
    %c0_i32_1 = arith.constant 0 : i32
    return %c0_i32, %c0_i32_0 : i32, i32
  }
  func.func @transform_3(%arg0: i32) -> (i32, i32) {
    %c0_i32 = arith.constant 0 : i32
    %c0_i32_0 = arith.constant 0 : i32
    %c0_i32_1 = arith.constant 0 : i32
    return %c0_i32, %c0_i32_0 : i32, i32
  }
  func.func @transform_4(%arg0: i32) -> (i32, i32, i32) {
    %c0_i32 = arith.constant 0 : i32
    %c0_i32_0 = arith.constant 0 : i32
    %c0_i32_1 = arith.constant 0 : i32
    return %arg0, %c0_i32, %c0_i32_0 : i32, i32, i32
  }
}

module attributes {stable_mosaic.version = 11 : i64} {
  func.func @_matmul_kernel(%arg0: i32, %arg1: memref<512x16xbf16, #tpu.memory_space<vmem>>, %arg2: memref<16x128xbf16, #tpu.memory_space<vmem>>, %arg3: memref<512x128xf32, #tpu.memory_space<vmem>>) attributes {dimension_semantics = [#tpu.dimension_semantics<parallel>], iteration_bounds = array<i64: 1>, scalar_prefetch = 0 : i64, scratch_operands = 0 : i64, tpu.core_type = #tpu.core_type<tc>, window_params = [{transform_indices = @transform_0, window_bounds = array<i64: 512, 16>}, {pipeline_mode = #tpu.pipeline_mode<synchronous>, transform_indices = @transform_1, window_bounds = array<i64: 16, 128>}, {transform_indices = @transform_2, window_bounds = array<i64: 512, 128>}]} {
    %c0 = arith.constant 0 : index
    %c0_0 = arith.constant 0 : index
    %0 = vector.load %arg1[%c0, %c0_0] : memref<512x16xbf16, #tpu.memory_space<vmem>>, vector<512x16xbf16>
    %c0_1 = arith.constant 0 : index
    %c0_2 = arith.constant 0 : index
    %1 = vector.load %arg2[%c0_1, %c0_2] : memref<16x128xbf16, #tpu.memory_space<vmem>>, vector<16x128xbf16>
    %cst = arith.constant dense<0.000000e+00> : vector<512x128xf32>
    %2 = tpu.matmul %0, %1, %cst {dimension_numbers = #tpu.dot_dimension_numbers<[1], [0], [0], [1], [0, 0, 1, 1], [], []>} : vector<512x16xbf16>, vector<16x128xbf16>, vector<512x128xf32> -> vector<512x128xf32>
    %c0_3 = arith.constant 0 : index
    %c0_4 = arith.constant 0 : index
    %3 = vector.load %arg3[%c0_3, %c0_4] : memref<512x128xf32, #tpu.memory_space<vmem>>, vector<512x128xf32>
    tpu.vector_store %arg3[%c0_3, %c0_4], %2 {strides = array<i32>} : memref<512x128xf32, #tpu.memory_space<vmem>>, vector<512x128xf32>,
    return
  }
  func.func @transform_0(%arg0: i32) -> (i32, i32) {
    %c0_i32 = arith.constant 0 : i32
    %c0_i32_0 = arith.constant 0 : i32
    return %arg0, %c0_i32 : i32, i32
  }
  func.func @transform_1(%arg0: i32) -> (i32, i32) {
    %c0_i32 = arith.constant 0 : i32
    %c0_i32_0 = arith.constant 0 : i32
    %c0_i32_1 = arith.constant 0 : i32
    return %c0_i32, %c0_i32_0 : i32, i32
  }
  func.func @transform_2(%arg0: i32) -> (i32, i32) {
    %c0_i32 = arith.constant 0 : i32
    %c0_i32_0 = arith.constant 0 : i32
    return %arg0, %c0_i32 : i32, i32
  }
}

module attributes {stable_mosaic.version = 11 : i64} {
  func.func @_gn_relu_kernel(%arg0: i32, %arg1: memref<1x1024x8xf32, #tpu.memory_space<vmem>>, %arg2: memref<1x8xf32, #tpu.memory_space<vmem>>, %arg3: memref<1x8xf32, #tpu.memory_space<vmem>>, %arg4: memref<8x8xf32, #tpu.memory_space<vmem>>, %arg5: memref<1x1024x8xbf16, #tpu.memory_space<vmem>>) attributes {dimension_semantics = [#tpu.dimension_semantics<parallel>], iteration_bounds = array<i64: 2>, scalar_prefetch = 0 : i64, scratch_operands = 0 : i64, tpu.core_type = #tpu.core_type<tc>, window_params = [{transform_indices = @transform_0, window_bounds = array<i64: 1, 1024, 8>}, {pipeline_mode = #tpu.pipeline_mode<synchronous>, transform_indices = @transform_1, window_bounds = array<i64: 1, 8>}, {pipeline_mode = #tpu.pipeline_mode<synchronous>, transform_indices = @transform_2, window_bounds = array<i64: 1, 8>}, {pipeline_mode = #tpu.pipeline_mode<synchronous>, transform_indices = @transform_3, window_bounds = array<i64: 8, 8>}, {transform_indices = @transform_4, window_bounds = array<i64: 1, 1024, 8>}]} {
    %c0 = arith.constant 0 : index
    %c0_0 = arith.constant 0 : index
    %c0_1 = arith.constant 0 : index
    %0 = vector.load %arg1[%c0, %c0_0, %c0_1] : memref<1x1024x8xf32, #tpu.memory_space<vmem>>, vector<1x1024x8xf32>
    %1 = vector.shape_cast %0 : vector<1x1024x8xf32> to vector<1024x8xf32>
    %c0_2 = arith.constant 0 : index
    %c0_3 = arith.constant 0 : index
    %2 = vector.load %arg4[%c0_2, %c0_3] : memref<8x8xf32, #tpu.memory_space<vmem>>, vector<8x8xf32>
    %cst = arith.constant dense<0.000000e+00> : vector<8xf32>
    %3 = vector.multi_reduction <add>, %1, %cst [0] : vector<1024x8xf32> to vector<8xf32>
    %4 = vector.shape_cast %3 : vector<8xf32> to vector<1x8xf32>
    %cst_4 = arith.constant dense<0.000000e+00> : vector<1x8xf32>
    %5 = tpu.matmul %4, %2, %cst_4 {dimension_numbers = #tpu.dot_dimension_numbers<[1], [0], [0], [1], [0, 0, 1, 1], [], []>} : vector<1x8xf32>, vector<8x8xf32>, vector<1x8xf32> -> vector<1x8xf32>
    %cst_5 = arith.constant 9.765625E-4 : f32
    %6 = vector.broadcast %cst_5 : f32 to vector<1x8xf32>
    %7 = arith.mulf %5, %6 : vector<1x8xf32>
    %8 = vector.broadcast %7 : vector<1x8xf32> to vector<1024x8xf32>
    %9 = arith.subf %1, %8 : vector<1024x8xf32>
    %10 = arith.mulf %9, %9 : vector<1024x8xf32>
    %cst_6 = arith.constant dense<0.000000e+00> : vector<8xf32>
    %11 = vector.multi_reduction <add>, %10, %cst_6 [0] : vector<1024x8xf32> to vector<8xf32>
    %12 = vector.shape_cast %11 : vector<8xf32> to vector<1x8xf32>
    %cst_7 = arith.constant dense<0.000000e+00> : vector<1x8xf32>
    %13 = tpu.matmul %12, %2, %cst_7 {dimension_numbers = #tpu.dot_dimension_numbers<[1], [0], [0], [1], [0, 0, 1, 1], [], []>} : vector<1x8xf32>, vector<8x8xf32>, vector<1x8xf32> -> vector<1x8xf32>
    %cst_8 = arith.constant 9.765625E-4 : f32
    %14 = vector.broadcast %cst_8 : f32 to vector<1x8xf32>
    %15 = arith.mulf %13, %14 : vector<1x8xf32>
    %cst_9 = arith.constant 9.99999974E-6 : f32
    %16 = vector.broadcast %cst_9 : f32 to vector<1x8xf32>
    %17 = arith.addf %15, %16 : vector<1x8xf32>
    %18 = math.rsqrt %17 : vector<1x8xf32>
    %19 = vector.broadcast %18 : vector<1x8xf32> to vector<1024x8xf32>
    %20 = arith.mulf %9, %19 : vector<1024x8xf32>
    %c0_10 = arith.constant 0 : index
    %c0_11 = arith.constant 0 : index
    %21 = vector.load %arg2[%c0_10, %c0_11] : memref<1x8xf32, #tpu.memory_space<vmem>>, vector<1x8xf32>
    %22 = vector.broadcast %21 : vector<1x8xf32> to vector<1024x8xf32>
    %23 = arith.mulf %20, %22 : vector<1024x8xf32>
    %c0_12 = arith.constant 0 : index
    %c0_13 = arith.constant 0 : index
    %24 = vector.load %arg3[%c0_12, %c0_13] : memref<1x8xf32, #tpu.memory_space<vmem>>, vector<1x8xf32>
    %25 = vector.broadcast %24 : vector<1x8xf32> to vector<1024x8xf32>
    %26 = arith.addf %23, %25 : vector<1024x8xf32>
    %cst_14 = arith.constant 0.000000e+00 : f32
    %27 = vector.broadcast %cst_14 : f32 to vector<1024x8xf32>
    %28 = arith.maximumf %26, %27 : vector<1024x8xf32>
    %29 = arith.truncf %28 : vector<1024x8xf32> to vector<1024x8xbf16>
    %c0_15 = arith.constant 0 : index
    %c0_16 = arith.constant 0 : index
    %c0_17 = arith.constant 0 : index
    %30 = vector.load %arg5[%c0_15, %c0_16, %c0_17] : memref<1x1024x8xbf16, #tpu.memory_space<vmem>>, vector<1x1024x8xbf16>
    %31 = vector.shape_cast %30 : vector<1x1024x8xbf16> to vector<1024x8xbf16>
    %32 = vector.shape_cast %29 : vector<1024x8xbf16> to vector<1x1024x8xbf16>
    tpu.vector_store %arg5[%c0_15, %c0_16, %c0_17], %32 {strides = array<i32>} : memref<1x1024x8xbf16, #tpu.memory_space<vmem>>, vector<1x1024x8xbf16>,
    return
  }
  func.func @transform_0(%arg0: i32) -> (i32, i32, i32) {
    %c0_i32 = arith.constant 0 : i32
    %c0_i32_0 = arith.constant 0 : i32
    %c0_i32_1 = arith.constant 0 : i32
    return %arg0, %c0_i32, %c0_i32_0 : i32, i32, i32
  }
  func.func @transform_1(%arg0: i32) -> (i32, i32) {
    %c0_i32 = arith.constant 0 : i32
    %c0_i32_0 = arith.constant 0 : i32
    %c0_i32_1 = arith.constant 0 : i32
    return %c0_i32, %c0_i32_0 : i32, i32
  }
  func.func @transform_2(%arg0: i32) -> (i32, i32) {
    %c0_i32 = arith.constant 0 : i32
    %c0_i32_0 = arith.constant 0 : i32
    %c0_i32_1 = arith.constant 0 : i32
    return %c0_i32, %c0_i32_0 : i32, i32
  }
  func.func @transform_3(%arg0: i32) -> (i32, i32) {
    %c0_i32 = arith.constant 0 : i32
    %c0_i32_0 = arith.constant 0 : i32
    %c0_i32_1 = arith.constant 0 : i32
    return %c0_i32, %c0_i32_0 : i32, i32
  }
  func.func @transform_4(%arg0: i32) -> (i32, i32, i32) {
    %c0_i32 = arith.constant 0 : i32
    %c0_i32_0 = arith.constant 0 : i32
    %c0_i32_1 = arith.constant 0 : i32
    return %arg0, %c0_i32, %c0_i32_0 : i32, i32, i32
  }
}

module attributes {stable_mosaic.version = 11 : i64} {
  func.func @_matmul_kernel(%arg0: i32, %arg1: memref<512x8xbf16, #tpu.memory_space<vmem>>, %arg2: memref<8x48xbf16, #tpu.memory_space<vmem>>, %arg3: memref<512x48xf32, #tpu.memory_space<vmem>>) attributes {dimension_semantics = [#tpu.dimension_semantics<parallel>], iteration_bounds = array<i64: 4>, scalar_prefetch = 0 : i64, scratch_operands = 0 : i64, tpu.core_type = #tpu.core_type<tc>, window_params = [{transform_indices = @transform_0, window_bounds = array<i64: 512, 8>}, {pipeline_mode = #tpu.pipeline_mode<synchronous>, transform_indices = @transform_1, window_bounds = array<i64: 8, 48>}, {transform_indices = @transform_2, window_bounds = array<i64: 512, 48>}]} {
    %c0 = arith.constant 0 : index
    %c0_0 = arith.constant 0 : index
    %0 = vector.load %arg1[%c0, %c0_0] : memref<512x8xbf16, #tpu.memory_space<vmem>>, vector<512x8xbf16>
    %c0_1 = arith.constant 0 : index
    %c0_2 = arith.constant 0 : index
    %1 = vector.load %arg2[%c0_1, %c0_2] : memref<8x48xbf16, #tpu.memory_space<vmem>>, vector<8x48xbf16>
    %cst = arith.constant dense<0.000000e+00> : vector<512x48xf32>
    %2 = tpu.matmul %0, %1, %cst {dimension_numbers = #tpu.dot_dimension_numbers<[1], [0], [0], [1], [0, 0, 1, 1], [], []>} : vector<512x8xbf16>, vector<8x48xbf16>, vector<512x48xf32> -> vector<512x48xf32>
    %c0_3 = arith.constant 0 : index
    %c0_4 = arith.constant 0 : index
    %3 = vector.load %arg3[%c0_3, %c0_4] : memref<512x48xf32, #tpu.memory_space<vmem>>, vector<512x48xf32>
    tpu.vector_store %arg3[%c0_3, %c0_4], %2 {strides = array<i32>} : memref<512x48xf32, #tpu.memory_space<vmem>>, vector<512x48xf32>,
    return
  }
  func.func @transform_0(%arg0: i32) -> (i32, i32) {
    %c0_i32 = arith.constant 0 : i32
    %c0_i32_0 = arith.constant 0 : i32
    return %arg0, %c0_i32 : i32, i32
  }
  func.func @transform_1(%arg0: i32) -> (i32, i32) {
    %c0_i32 = arith.constant 0 : i32
    %c0_i32_0 = arith.constant 0 : i32
    %c0_i32_1 = arith.constant 0 : i32
    return %c0_i32, %c0_i32_0 : i32, i32
  }
  func.func @transform_2(%arg0: i32) -> (i32, i32) {
    %c0_i32 = arith.constant 0 : i32
    %c0_i32_0 = arith.constant 0 : i32
    return %arg0, %c0_i32 : i32, i32
  }
}

</mosaic_0001>

<llo_original>
// kernel: generator_forward.10
$region0: #{generator_forward.10}
  #allocation0 [shape = 'u32[]', space=smem, size = 0x4, offset = 0x4, fixed_abs, tag = 'smem constant byte address 0x4 - core index']
  #allocation1 [shape = 'u32[72,128]{1,0:T(1,128)}', space=vmem, size = 0x9000, scoped, tag = 'internal scratch']
  %s0 = inlined_call_operand.vmem [shape: f32[2,16,64], index: 0, kind: input, shape index: {}]
  %s1 = inlined_call_operand.hbm [shape: f32[1,64], index: 1, kind: input, shape index: {}]
  %s2 = inlined_call_operand.hbm [shape: f32[1,64], index: 2, kind: input, shape index: {}]
  %s3 = inlined_call_operand.vmem [shape: f32[64,64], index: 3, kind: input, shape index: {}]
  %s4 = inlined_call_operand.vmem [shape: bf16[2,16,64], index: 4, kind: output, shape index: {}]
  %s5 = sld [smem:[#allocation0]]
  $region57: #{generator_forward.10} parent=0
    _
  %s7 = ssub.s32 1, %s5
  %s8 = scalar_select 0, %s7, %s5
  $region1: #{generator_forward.10} parent=0
    #allocation2 [shape = 'u8[512]{0}', space=vmem, size = 0x400, scoped, tag = 'input window, operand 1, single buffered']
    #allocation3 [shape = 's32[2]{0}', space=sflag, size = 0x8, scoped, tag = 'scoped memory for generator_forward.10']
    #allocation4 [shape = 'u8[512]{0}', space=vmem, size = 0x400, scoped, tag = 'input window, operand 2, single buffered']
    #allocation5 [shape = 's32[1]{0}', space=sflag, size = 0x4, scoped, tag = 'scoped memory for generator_forward.10']
    %9 = vsyncpa [#allocation3], 0
    %10 = vsyncpa [#allocation5], 0
    loop: start=0, step=1, limit=4
    $region2: #{generator_forward.10} parent=1 // loop_pre_header
      _
    $region3: #{generator_forward.10} parent=1 // loop_header
      %s12 = sphi 0, %s16
      %p13 = scmp.ge.s32.totalorder %s12, 4
      %s22 = sphi 0, %s24
      %s25 = sphi 0, %s22
      %s26 = sphi 0, %s25
      %s42 = sphi 0, %s26
      %s46 = sphi 0, %s46
      %s48 = sphi 0, %s46
      %s49 = sphi 0, %s48
      %s63 = sphi 0, %s49
      %s67 = sphi 0, %s67
      %s69 = sphi 0, %s67
      %s70 = sphi 0, %s69
      %s84 = sphi 0, %s70
      %s88 = sphi 0, %s88
      %s90 = sphi 0, %s88
      %s91 = sphi 0, %s90
      %s105 = sphi 0, %s91
      %s111 = sphi 0, %s113
      %s114 = sphi 0, %s111
      %s115 = sphi 0, %s114
      %s131 = sphi 0, %s115
    $region4: #{generator_forward.10} parent=1 // loop_header_branch
      %15 = sbr.rel (%p13) target = $region8
    $region5: #{generator_forward.10} parent=1 // loop_body
      %s17 = ssub.s32 %s12, 1
      %s18 = ssub.s32 %s12, 2
      %s19 = sadd.s32 %s12, 1
      %s20 = ssub.s32 %s12, %s19
      %p21 = scmp.eq.s32.totalorder %s20, 0
      %s23 = sadd.s32 %s22, 1
      %s24 = scalar_select %p21, %s22, %s23
      %p27 = pneg %p21
      %p28 = scmp.eq.s32.totalorder %s12, 1
      %p29 = por %p27, %p28
      %p30 = scmp.ne.s32.totalorder %s22, %s25
      %p31 = scmp.eq.s32.totalorder %s12, 0
      %p32 = por %p30, %p31
      %p33 = scmp.ne.s32.totalorder %s22, %s25
      %p34 = scmp.eq.s32.totalorder %s17, 1
      %p35 = por %p33, %p34
      %p36 = scmp.ne.s32.totalorder %s25, %s26
      %p37 = scmp.eq.s32.totalorder %s17, 0
      %p38 = por %p36, %p37
      %p39 = scmp.ne.s32.totalorder %s25, %s26
      %p40 = scmp.eq.s32.totalorder %s18, 1
      %p41 = por %p39, %p40
      %p43 = scmp.ne.s32.totalorder %s26, %s42
      %p44 = scmp.eq.s32.totalorder %s18, 0
      %p45 = por %p43, %p44
      %s47 = sadd.s32 %s46, 1
      %p50 = scmp.eq.s32.totalorder %s12, 1
      %p51 = scmp.ne.s32.totalorder %s46, %s48
      %p52 = scmp.eq.s32.totalorder %s12, 0
      %p53 = por %p51, %p52
      %p54 = scmp.ne.s32.totalorder %s46, %s48
      %p55 = scmp.eq.s32.totalorder %s17, 1
      %p56 = por %p54, %p55
      %p57 = scmp.ne.s32.totalorder %s48, %s49
      %p58 = scmp.eq.s32.totalorder %s17, 0
      %p59 = por %p57, %p58
      %p60 = scmp.ne.s32.totalorder %s48, %s49
      %p61 = scmp.eq.s32.totalorder %s18, 1
      %p62 = por %p60, %p61
      %p64 = scmp.ne.s32.totalorder %s49, %s63
      %p65 = scmp.eq.s32.totalorder %s18, 0
      %p66 = por %p64, %p65
      %s68 = sadd.s32 %s67, 1
      %p71 = scmp.eq.s32.totalorder %s12, 1
      %p72 = scmp.ne.s32.totalorder %s67, %s69
      %p73 = scmp.eq.s32.totalorder %s12, 0
      %p74 = por %p72, %p73
      %p75 = scmp.ne.s32.totalorder %s67, %s69
      %p76 = scmp.eq.s32.totalorder %s17, 1
      %p77 = por %p75, %p76
      %p78 = scmp.ne.s32.totalorder %s69, %s70
      %p79 = scmp.eq.s32.totalorder %s17, 0
      %p80 = por %p78, %p79
      %p81 = scmp.ne.s32.totalorder %s69, %s70
      %p82 = scmp.eq.s32.totalorder %s18, 1
      %p83 = por %p81, %p82
      %p85 = scmp.ne.s32.totalorder %s70, %s84
      %p86 = scmp.eq.s32.totalorder %s18, 0
      %p87 = por %p85, %p86
      %s89 = sadd.s32 %s88, 1
      %p92 = scmp.eq.s32.totalorder %s12, 1
      %p93 = scmp.ne.s32.totalorder %s88, %s90
      %p94 = scmp.eq.s32.totalorder %s12, 0
      %p95 = por %p93, %p94
      %p96 = scmp.ne.s32.totalorder %s88, %s90
      %p97 = scmp.eq.s32.totalorder %s17, 1
      %p98 = por %p96, %p97
      %p99 = scmp.ne.s32.totalorder %s90, %s91
      %p100 = scmp.eq.s32.totalorder %s17, 0
      %p101 = por %p99, %p100
      %p102 = scmp.ne.s32.totalorder %s90, %s91
      %p103 = scmp.eq.s32.totalorder %s18, 1
      %p104 = por %p102, %p103
      %p106 = scmp.ne.s32.totalorder %s91, %s105
      %p107 = scmp.eq.s32.totalorder %s18, 0
      %p108 = por %p106, %p107
      %s109 = ssub.s32 %s12, %s19
      %p110 = scmp.eq.s32.totalorder %s109, 0
      %s112 = sadd.s32 %s111, 1
      %s113 = scalar_select %p110, %s111, %s112
      %p116 = pneg %p110
      %p117 = scmp.eq.s32.totalorder %s12, 1
      %p118 = por %p116, %p117
      %p119 = scmp.ne.s32.totalorder %s111, %s114
      %p120 = scmp.eq.s32.totalorder %s12, 0
      %p121 = por %p119, %p120
      %p122 = scmp.ne.s32.totalorder %s111, %s114
      %p123 = scmp.eq.s32.totalorder %s17, 1
      %p124 = por %p122, %p123
      %p125 = scmp.ne.s32.totalorder %s114, %s115
      %p126 = scmp.eq.s32.totalorder %s17, 0
      %p127 = por %p125, %p126
      %p128 = scmp.ne.s32.totalorder %s114, %s115
      %p129 = scmp.eq.s32.totalorder %s18, 1
      %p130 = por %p128, %p129
      %p132 = scmp.ne.s32.totalorder %s115, %s131
      %p133 = scmp.eq.s32.totalorder %s18, 0
      %p134 = por %p132, %p133
      %p135 = scmp.le.s32.totalorder 1, %s12
      %p136 = scmp.lt.s32.totalorder %s12, 3
      %p137 = pnand %p135, %p136
      %p138 = pneg %p137
      // Predicated region
      $region9: #{generator_forward.10} parent=5 // pred_check
        _
      $region10: #{generator_forward.10} parent=5 // pred_check_branch
        %140 = sbr.rel (%p137) target = $region12
      $region11: #{generator_forward.10} parent=5 // pred_region
        %s141 = ssub.s32 %s12, 1
        // Predicated region
        $region13: #{generator_forward.10} parent=11 // pred_check
          %p142 = pneg %p59
        $region14: #{generator_forward.10} parent=11 // pred_check_branch
          %144 = sbr.rel (%p142) target = $region16
        $region15: #{generator_forward.10} parent=11 // pred_region
          %146 = vsyncadd [#allocation3], 0
          %s148 = sshll.u32 %s1, 4
          %s149 = int_to_ptr.hbm [resolvable:$true] %s148
          %s150 = sshll.u32 [#allocation2], 4
          %s151 = int_to_ptr.vmem [resolvable:$true] %s150
          %153 = dma.hbm_to_vmem [thread:$0]  %s149, 16, %s151, [#allocation3]
        $region16: #{generator_forward.10} parent=11 // pred_fallthru
          _
        // Predicated region
        $region17: #{generator_forward.10} parent=11 // pred_check
          %p154 = pneg %p80
        $region18: #{generator_forward.10} parent=11 // pred_check_branch
          %156 = sbr.rel (%p154) target = $region20
        $region19: #{generator_forward.10} parent=11 // pred_region
          %158 = vsyncadd [#allocation5], 0
          %s160 = sshll.u32 %s2, 4
          %s161 = int_to_ptr.hbm [resolvable:$true] %s160
          %s162 = sshll.u32 [#allocation4], 4
          %s163 = int_to_ptr.vmem [resolvable:$true] %s162
          %165 = dma.hbm_to_vmem [thread:$0]  %s161, 16, %s163, [#allocation5]
        $region20: #{generator_forward.10} parent=11 // pred_fallthru
          _
        // Predicated region
        $region21: #{generator_forward.10} parent=11 // pred_check
          %p166 = pneg %p101
        $region22: #{generator_forward.10} parent=11 // pred_check_branch
          %168 = sbr.rel (%p166) target = $region24
        $region23: #{generator_forward.10} parent=11 // pred_region
          _
        $region24: #{generator_forward.10} parent=11 // pred_fallthru
          _
      $region12: #{generator_forward.10} parent=5 // pred_fallthru
        _
      %p169 = scmp.lt.s32.totalorder %s12, 2
      // Predicated region
      $region25: #{generator_forward.10} parent=5 // pred_check
        %p170 = pneg %p169
      $region26: #{generator_forward.10} parent=5 // pred_check_branch
        %172 = sbr.rel (%p170) target = $region28
      $region27: #{generator_forward.10} parent=5 // pred_region
        // Predicated region
        $region29: #{generator_forward.10} parent=27 // pred_check
          %p173 = pneg %p32
        $region30: #{generator_forward.10} parent=27 // pred_check_branch
          %175 = sbr.rel (%p173) target = $region32
        $region31: #{generator_forward.10} parent=27 // pred_region
          %p176 = scmp.lt.s32.totalorder %s12, 1
          %s177 = scalar_select %p176, %s12, 1
          %s178 = smul.addr %s177, 2
          %s179 = smul.addr %s178, 8
          %s180 = scalar_lea.vmem %s0, %s179
        $region32: #{generator_forward.10} parent=27 // pred_fallthru
          _
      $region28: #{generator_forward.10} parent=5 // pred_fallthru
        _
      %p181 = scmp.le.s32.totalorder 1, %s12
      %p182 = scmp.lt.s32.totalorder %s12, 3
      %p183 = pnand %p181, %p182
      %p184 = pneg %p183
      // Predicated region
      $region33: #{generator_forward.10} parent=5 // pred_check
        _
      $region34: #{generator_forward.10} parent=5 // pred_check_branch
        %186 = sbr.rel (%p183) target = $region36
      $region35: #{generator_forward.10} parent=5 // pred_region
        %s187 = ssub.s32 %s12, 1
        // Predicated region
        $region37: #{generator_forward.10} parent=35 // pred_check
          %p188 = pneg %p59
        $region38: #{generator_forward.10} parent=35 // pred_check_branch
          %190 = sbr.rel (%p188) target = $region40
        $region39: #{generator_forward.10} parent=35 // pred_region
          %192 = dma.done [#allocation3], 16
        $region40: #{generator_forward.10} parent=35 // pred_fallthru
          _
        // Predicated region
        $region41: #{generator_forward.10} parent=35 // pred_check
          %p193 = pneg %p80
        $region42: #{generator_forward.10} parent=35 // pred_check_branch
          %195 = sbr.rel (%p193) target = $region44
        $region43: #{generator_forward.10} parent=35 // pred_region
          %197 = dma.done [#allocation5], 16
        $region44: #{generator_forward.10} parent=35 // pred_fallthru
          _
        %p198 = scmp.lt.s32.totalorder %s17, 1
        %s199 = scalar_select %p198, %s17, 1
        %s200 = smul.addr %s199, 2
        %s201 = smul.addr %s200, 8
        %s202 = scalar_lea.vmem %s0, %s201
        %p203 = pneg %p38
        %p204 = pneg %p35
        %p205 = pneg %p59
        %p206 = pneg %p56
        %p207 = pneg %p80
        %p208 = pneg %p77
        %p209 = pneg %p101
        %p210 = pneg %p98
        %p211 = pneg %p127
        %p212 = pneg %p124
        %p213 = scmp.lt.s32.totalorder %s17, 1
        %s214 = scalar_select %p213, %s17, 1
        %s215 = smul.addr %s214, 2
        %s216 = smul.addr %s215, 4
        %s217 = scalar_lea.vmem %s4, %s216
        %p218 = scmp.lt.s32.totalorder %s17, 1
        %s219 = scalar_select %p218, %s17, 1
        %s220 = smul.addr %s219, 2
        %s221 = smul.addr %s220, 8
        %s222 = scalar_lea.vmem %s0, %s221
        %p223 = scmp.lt.s32.totalorder %s17, 1
        %s224 = scalar_select %p223, %s17, 1
        %s225 = smul.addr %s224, 2
        %s226 = smul.addr %s225, 4
        %s227 = scalar_lea.vmem %s4, %s226
        %v228 = vld [vmem:[%s222] sm:$0xff]
        %v229 = vld [vmem:[%s222 + $0x8] sm:$0xff]
        %v230 = vld [vmem:[%s3] sm:$0xff]
        %v231 = vld [vmem:[%s3 + $0x8] sm:$0xff]
        %v232 = vld [vmem:[%s3 + $0x10] sm:$0xff]
        %v233 = vld [vmem:[%s3 + $0x18] sm:$0xff]
        %v234 = vld [vmem:[%s3 + $0x20] sm:$0xff]
        %v235 = vld [vmem:[%s3 + $0x28] sm:$0xff]
        %v236 = vld [vmem:[%s3 + $0x30] sm:$0xff]
        %v237 = vld [vmem:[%s3 + $0x38] sm:$0xff]
        %vm238 = vcmask 523264
        %v239 = vsel %vm238, %v228, 0.0
        %v240 = vsel %vm238, %v229, 0.0
        %v241 = vadd.f32 %v239, %v240
        %v242 = vrot.slane %v241, 4
        %v243 = vadd.f32 %v241, %v242
        %v244 = vrot.slane %v243, 2
        %v245 = vadd.f32 %v243, %v244
        %v246 = vrot.slane %v245, 1
        %v247 = vadd.f32 %v245, %v246
        %v249 = vsel %vm238, %v247, 0
        %251 = vmatpush.msra.mxu0 0.0
        %252 = vmatpush.msra.mxu0 0.0
        %253 = vmatpush.msra.mxu0 0.0
        %254 = vmatpush.msra.mxu0 0.0
        %255 = vmatpush.msra.mxu0 0.0
        %256 = vmatpush.msra.mxu0 0.0
        %257 = vmatpush.msra.mxu0 0.0
        %258 = vmatpush.msra.mxu0 0.0
        %259 = vmatpush.msra.mxu0 %v237
        %260 = vmatpush.msra.mxu0 %v236
        %261 = vmatpush.msra.mxu0 %v235
        %262 = vmatpush.msra.mxu0 %v234
        %263 = vmatpush.msra.mxu0 %v233
        %264 = vmatpush.msra.mxu0 %v232
        %265 = vmatpush.msra.mxu0 %v231
        %266 = vmatpush.msra.mxu0 %v230
        %267 = vmatmul.f32.gmra.mxu0 %v249
        %v268 = vpop.f32.mrf.mxu0
        %v269 = vadd.f32 0.0, %v268
        %270 = vdwg.mxu0
        %v271 = vmul.f32 %v269, 0.03125
        %v272 = vperm.slane %v271, 0
        %v273 = vsub.f32 %v228, %v272
        %v274 = vsub.f32 %v229, %v272
        %v275 = vmul.f32 %v273, %v273
        %v276 = vmul.f32 %v274, %v274
        %v277 = vsel %vm238, %v275, 0.0
        %v278 = vsel %vm238, %v276, 0.0
        %v279 = vadd.f32 %v277, %v278
        %v280 = vrot.slane %v279, 4
        %v281 = vadd.f32 %v279, %v280
        %v282 = vrot.slane %v281, 2
        %v283 = vadd.f32 %v281, %v282
        %v284 = vrot.slane %v283, 1
        %v285 = vadd.f32 %v283, %v284
        %v287 = vsel %vm238, %v285, 0
        %289 = vmatpush.msra.mxu0 0.0
        %290 = vmatpush.msra.mxu0 0.0
        %291 = vmatpush.msra.mxu0 0.0
        %292 = vmatpush.msra.mxu0 0.0
        %293 = vmatpush.msra.mxu0 0.0
        %294 = vmatpush.msra.mxu0 0.0
        %295 = vmatpush.msra.mxu0 0.0
        %296 = vmatpush.msra.mxu0 0.0
        %297 = vmatpush.msra.mxu0 %v237
        %298 = vmatpush.msra.mxu0 %v236
        %299 = vmatpush.msra.mxu0 %v235
        %300 = vmatpush.msra.mxu0 %v234
        %301 = vmatpush.msra.mxu0 %v233
        %302 = vmatpush.msra.mxu0 %v232
        %303 = vmatpush.msra.mxu0 %v231
        %304 = vmatpush.msra.mxu0 %v230
        %305 = vmatmul.f32.gmra.mxu0 %v287
        %v306 = vpop.f32.mrf.mxu0
        %v307 = vadd.f32 0.0, %v306
        %308 = vdwg.mxu0
        %v309 = vmul.f32 %v307, 0.03125
        %v310 = vadd.f32 %v309, 1e-05
        %v311 = vrsqrt.pop %v310
        %v312 = vmul.f32 %v311, %v310
        %v313 = vmul.f32 %v312, %v311
        %v314 = vmul.f32 0.5, %v313
        %v315 = vsub.f32 1.5, %v314
        %v316 = vmul.f32 %v311, %v315
        %vm317 = vweird.f32 %v310
        %vm318 = vweird.f32 %v311
        %vm319 = vmor %vm317, %vm318
        %v320 = vsel %vm319, %v311, %v316
        %v321 = vperm.slane %v320, 0
        %v322 = vmul.f32 %v273, %v321
        %v323 = vmul.f32 %v274, %v321
        %v324 = vld [vmem:[#allocation2] sm:$0x1]
        %v326 = vperm.slane %v324, 0
        %v328 = vmul.f32 %v322, %v326
        %v329 = vmul.f32 %v323, %v326
        %v330 = vld [vmem:[#allocation4] sm:$0x1]
        %v332 = vperm.slane %v330, 0
        %v334 = vadd.f32 %v328, %v332
        %v335 = vadd.f32 %v329, %v332
        %v336 = vmax.f32 %v334, 0.0
        %v337 = vmax.f32 %v335, 0.0
        %v338 = vpack.c.bf16 %v336, %v336
        %v339 = vpack.c.bf16 %v337, %v337
        %vm340 = vcmask 519168
        %341 = vst.msk [vmem:[%s227] sm:$0xf] %vm340, %v338
        %342 = vst.msk [vmem:[%s227 + $0x4] sm:$0xf] %vm340, %v339
        %p343 = scmp.lt.s32.totalorder %s17, 1
        %s344 = scalar_select %p343, %s17, 1
        %s345 = smul.addr %s344, 2
        %s346 = smul.addr %s345, 4
        %s347 = scalar_lea.vmem %s4, %s346
        // Predicated region
        $region45: #{generator_forward.10} parent=35 // pred_check
          %p348 = pneg %p124
        $region46: #{generator_forward.10} parent=35 // pred_check_branch
          %350 = sbr.rel (%p348) target = $region48
        $region47: #{generator_forward.10} parent=35 // pred_region
          _
        $region48: #{generator_forward.10} parent=35 // pred_fallthru
          _
      $region36: #{generator_forward.10} parent=5 // pred_fallthru
        _
      %p351 = scmp.le.s32.totalorder 2, %s12
      // Predicated region
      $region49: #{generator_forward.10} parent=5 // pred_check
        %p352 = pneg %p351
      $region50: #{generator_forward.10} parent=5 // pred_check_branch
        %354 = sbr.rel (%p352) target = $region52
      $region51: #{generator_forward.10} parent=5 // pred_region
        %s355 = ssub.s32 %s12, 2
        // Predicated region
        $region53: #{generator_forward.10} parent=51 // pred_check
          %p356 = pneg %p130
        $region54: #{generator_forward.10} parent=51 // pred_check_branch
          %358 = sbr.rel (%p356) target = $region56
        $region55: #{generator_forward.10} parent=51 // pred_region
          %p359 = scmp.lt.s32.totalorder %s18, 1
          %s360 = scalar_select %p359, %s18, 1
          %s361 = smul.addr %s360, 2
          %s362 = smul.addr %s361, 4
          %s363 = scalar_lea.vmem %s4, %s362
        $region56: #{generator_forward.10} parent=51 // pred_fallthru
          _
      $region52: #{generator_forward.10} parent=5 // pred_fallthru
        _
    $region6: #{generator_forward.10} parent=1 // loop_footer
      %s16 = sadd.s32 1, %s12
    $region7: #{generator_forward.10} parent=1 // loop_footer_branch
      %11 = sbr.rel target = $region3
    $region8: #{generator_forward.10} parent=1 // loop_exit
      _
    %364 = vsyncpa [#allocation3], 1
    %s365 = scalar_lea.sflag [#allocation3], 1
    %366 = vsyncpa %s365, 1
    %367 = vsyncpa [#allocation5], 1

// kernel: generator_forward.9
$region0: #{generator_forward.9}
  #allocation0 [shape = 'u32[]', space=smem, size = 0x4, offset = 0x4, fixed_abs, tag = 'smem constant byte address 0x4 - core index']
  #allocation1 [shape = 'u32[72,128]{1,0:T(1,128)}', space=vmem, size = 0x9000, scoped, tag = 'internal scratch']
  %s0 = inlined_call_operand.vmem [shape: bf16[2,16], index: 0, kind: input, shape index: {}]
  %s1 = inlined_call_operand.hbm [shape: bf16[16,1024], index: 1, kind: input, shape index: {}]
  %s2 = inlined_call_operand.vmem [shape: f32[2,1024], index: 2, kind: output, shape index: {}]
  %s3 = sld [smem:[#allocation0]]
  $region22: #{generator_forward.9} parent=0
    _
  %s5 = ssub.s32 1, %s3
  %s6 = scalar_select 0, %s5, %s3
  $region1: #{generator_forward.9} parent=0
    #allocation2 [shape = 'u8[32768]{0}', space=vmem, size = 0x8000, scoped, tag = 'input window, operand 1, single buffered']
    #allocation3 [shape = 's32[1]{0}', space=sflag, size = 0x4, scoped, tag = 'scoped memory for generator_forward.9']
    %7 = vsyncpa [#allocation3], 0
    // Predicated region
    $region2: #{generator_forward.9} parent=1 // pred_check
      _
    $region3: #{generator_forward.9} parent=1 // pred_check_branch
      %9 = sbr.rel (0) target = $region5
    $region4: #{generator_forward.9} parent=1 // pred_region
      _
    $region5: #{generator_forward.9} parent=1 // pred_fallthru
      _
    // Predicated region
    $region6: #{generator_forward.9} parent=1 // pred_check
      _
    $region7: #{generator_forward.9} parent=1 // pred_check_branch
      %11 = sbr.rel (0) target = $region9
    $region8: #{generator_forward.9} parent=1 // pred_region
      %13 = vsyncadd [#allocation3], 0
      %s14 = sshll.u32 %s1, 4
      %s15 = int_to_ptr.hbm [resolvable:$true] %s14
      %s16 = sshll.u32 [#allocation2], 4
      %s17 = int_to_ptr.vmem [resolvable:$true] %s16
      %22 = dma.hbm_to_vmem [thread:$0]  %s15, 1024, %s17, [#allocation3], 512, 512, 32
    $region9: #{generator_forward.9} parent=1 // pred_fallthru
      _
    // Predicated region
    $region10: #{generator_forward.9} parent=1 // pred_check
      _
    $region11: #{generator_forward.9} parent=1 // pred_check_branch
      %24 = sbr.rel (0) target = $region13
    $region12: #{generator_forward.9} parent=1 // pred_region
      %26 = dma.done [#allocation3], 1024
    $region13: #{generator_forward.9} parent=1 // pred_fallthru
      _
    %v28 = vld [vmem:[%s0] sm:$0x1]
    %v29 = vld [vmem:[#allocation2] sm:$0xff]
    %v30 = vld [vmem:[#allocation2 + $0x8] sm:$0xff]
    %v31 = vld [vmem:[#allocation2 + $0x10] sm:$0xff]
    %v32 = vld [vmem:[#allocation2 + $0x18] sm:$0xff]
    %v33 = vld [vmem:[#allocation2 + $0x20] sm:$0xff]
    %v34 = vld [vmem:[#allocation2 + $0x28] sm:$0xff]
    %v35 = vld [vmem:[#allocation2 + $0x30] sm:$0xff]
    %v36 = vld [vmem:[#allocation2 + $0x38] sm:$0xff]
    %v45 = vunpack.c.l.b16 %v29
    %v46 = vunpack.c.h.b16 %v29
    %v47 = vunpack.c.l.b16 %v30
    %v48 = vunpack.c.h.b16 %v30
    %v49 = vunpack.c.l.b16 %v31
    %v50 = vunpack.c.h.b16 %v31
    %v51 = vunpack.c.l.b16 %v32
    %v52 = vunpack.c.h.b16 %v32
    %v53 = vunpack.c.l.b16 %v33
    %v54 = vunpack.c.h.b16 %v33
    %v55 = vunpack.c.l.b16 %v34
    %v56 = vunpack.c.h.b16 %v34
    %v57 = vunpack.c.l.b16 %v35
    %v58 = vunpack.c.h.b16 %v35
    %v59 = vunpack.c.l.b16 %v36
    %v60 = vunpack.c.h.b16 %v36
    %v61 = vpack.c.b16 %v53, %v45
    %v62 = vpack.c.b16 %v54, %v46
    %v63 = vpack.c.b16 %v55, %v47
    %v64 = vpack.c.b16 %v56, %v48
    %v65 = vpack.c.b16 %v57, %v49
    %v66 = vpack.c.b16 %v58, %v50
    %v67 = vpack.c.b16 %v59, %v51
    %v68 = vpack.c.b16 %v60, %v52
    %vm77 = vcmask 130048
    %v79 = vsel %vm77, %v28, 0
    %81 = vmatpush.bf16.msra.mxu0 0
    %82 = vmatpush.bf16.msra.mxu0 0
    %83 = vmatpush.bf16.msra.mxu0 0
    %84 = vmatpush.bf16.msra.mxu0 0
    %85 = vmatpush.bf16.msra.mxu0 0
    %86 = vmatpush.bf16.msra.mxu0 0
    %87 = vmatpush.bf16.msra.mxu0 0
    %88 = vmatpush.bf16.msra.mxu0 %v61
    %89 = vmatmul.bf16.gmra.mxu0 %v79
    %v90 = vpop.f32.mrf.mxu0
    %v91 = vadd.f32 0.0, %v90
    %v92 = vpop.f32.mrf.mxu0
    %93 = vdwg.mxu0
    %94 = vmatpush.bf16.msra.mxu0 0
    %95 = vmatpush.bf16.msra.mxu0 0
    %96 = vmatpush.bf16.msra.mxu0 0
    %97 = vmatpush.bf16.msra.mxu0 0
    %98 = vmatpush.bf16.msra.mxu0 0
    %99 = vmatpush.bf16.msra.mxu0 0
    %100 = vmatpush.bf16.msra.mxu0 0
    %101 = vmatpush.bf16.msra.mxu0 %v62
    %102 = vmatmul.bf16.gmra.mxu0 %v79
    %v103 = vpop.f32.mrf.mxu0
    %v104 = vadd.f32 0.0, %v103
    %v105 = vpop.f32.mrf.mxu0
    %106 = vdwg.mxu0
    %107 = vmatpush.bf16.msra.mxu0 0
    %108 = vmatpush.bf16.msra.mxu0 0
    %109 = vmatpush.bf16.msra.mxu0 0
    %110 = vmatpush.bf16.msra.mxu0 0
    %111 = vmatpush.bf16.msra.mxu0 0
    %112 = vmatpush.bf16.msra.mxu0 0
    %113 = vmatpush.bf16.msra.mxu0 0
    %114 = vmatpush.bf16.msra.mxu0 %v63
    %115 = vmatmul.bf16.gmra.mxu0 %v79
    %v116 = vpop.f32.mrf.mxu0
    %v117 = vadd.f32 0.0, %v116
    %v118 = vpop.f32.mrf.mxu0
    %119 = vdwg.mxu0
    %120 = vmatpush.bf16.msra.mxu0 0
    %121 = vmatpush.bf16.msra.mxu0 0
    %122 = vmatpush.bf16.msra.mxu0 0
    %123 = vmatpush.bf16.msra.mxu0 0
    %124 = vmatpush.bf16.msra.mxu0 0
    %125 = vmatpush.bf16.msra.mxu0 0
    %126 = vmatpush.bf16.msra.mxu0 0
    %127 = vmatpush.bf16.msra.mxu0 %v64
    %128 = vmatmul.bf16.gmra.mxu0 %v79
    %v129 = vpop.f32.mrf.mxu0
    %v130 = vadd.f32 0.0, %v129
    %v131 = vpop.f32.mrf.mxu0
    %132 = vdwg.mxu0
    %133 = vmatpush.bf16.msra.mxu0 0
    %134 = vmatpush.bf16.msra.mxu0 0
    %135 = vmatpush.bf16.msra.mxu0 0
    %136 = vmatpush.bf16.msra.mxu0 0
    %137 = vmatpush.bf16.msra.mxu0 0
    %138 = vmatpush.bf16.msra.mxu0 0
    %139 = vmatpush.bf16.msra.mxu0 0
    %140 = vmatpush.bf16.msra.mxu0 %v65
    %141 = vmatmul.bf16.gmra.mxu0 %v79
    %v142 = vpop.f32.mrf.mxu0
    %v143 = vadd.f32 0.0, %v142
    %v144 = vpop.f32.mrf.mxu0
    %145 = vdwg.mxu0
    %146 = vmatpush.bf16.msra.mxu0 0
    %147 = vmatpush.bf16.msra.mxu0 0
    %148 = vmatpush.bf16.msra.mxu0 0
    %149 = vmatpush.bf16.msra.mxu0 0
    %150 = vmatpush.bf16.msra.mxu0 0
    %151 = vmatpush.bf16.msra.mxu0 0
    %152 = vmatpush.bf16.msra.mxu0 0
    %153 = vmatpush.bf16.msra.mxu0 %v66
    %154 = vmatmul.bf16.gmra.mxu0 %v79
    %v155 = vpop.f32.mrf.mxu0
    %v156 = vadd.f32 0.0, %v155
    %v157 = vpop.f32.mrf.mxu0
    %158 = vdwg.mxu0
    %159 = vmatpush.bf16.msra.mxu0 0
    %160 = vmatpush.bf16.msra.mxu0 0
    %161 = vmatpush.bf16.msra.mxu0 0
    %162 = vmatpush.bf16.msra.mxu0 0
    %163 = vmatpush.bf16.msra.mxu0 0
    %164 = vmatpush.bf16.msra.mxu0 0
    %165 = vmatpush.bf16.msra.mxu0 0
    %166 = vmatpush.bf16.msra.mxu0 %v67
    %167 = vmatmul.bf16.gmra.mxu0 %v79
    %v168 = vpop.f32.mrf.mxu0
    %v169 = vadd.f32 0.0, %v168
    %v170 = vpop.f32.mrf.mxu0
    %171 = vdwg.mxu0
    %172 = vmatpush.bf16.msra.mxu0 0
    %173 = vmatpush.bf16.msra.mxu0 0
    %174 = vmatpush.bf16.msra.mxu0 0
    %175 = vmatpush.bf16.msra.mxu0 0
    %176 = vmatpush.bf16.msra.mxu0 0
    %177 = vmatpush.bf16.msra.mxu0 0
    %178 = vmatpush.bf16.msra.mxu0 0
    %179 = vmatpush.bf16.msra.mxu0 %v68
    %180 = vmatmul.bf16.gmra.mxu0 %v79
    %v181 = vpop.f32.mrf.mxu0
    %v182 = vadd.f32 0.0, %v181
    %v183 = vpop.f32.mrf.mxu0
    %184 = vdwg.mxu0
    %v193 = vrot.slane %v104, 6
    %v194 = vrot.slane %v117, 4
    %v195 = vrot.slane %v130, 2
    %v196 = vrot.slane %v156, 6
    %v197 = vrot.slane %v169, 4
    %v198 = vrot.slane %v182, 2
    %vm199 = vcmask 1041408
    %v200 = vsel %vm199, %v91, %v193
    %vm201 = vcmask 1045508
    %v202 = vsel %vm201, %v194, %v195
    %vm203 = vcmask 1043456
    %v204 = vsel %vm203, %v200, %v202
    %v205 = vsel %vm199, %v143, %v196
    %v206 = vsel %vm201, %v197, %v198
    %v207 = vsel %vm203, %v205, %v206
    %210 = vst [vmem:[%s2] sm:$0xff] %v204
    %211 = vst [vmem:[%s2 + $0x8] sm:$0xff] %v207
    // Predicated region
    $region14: #{generator_forward.9} parent=1 // pred_check
      _
    $region15: #{generator_forward.9} parent=1 // pred_check_branch
      %213 = sbr.rel (0) target = $region17
    $region16: #{generator_forward.9} parent=1 // pred_region
      _
    $region17: #{generator_forward.9} parent=1 // pred_fallthru
      _
    // Predicated region
    $region18: #{generator_forward.9} parent=1 // pred_check
      _
    $region19: #{generator_forward.9} parent=1 // pred_check_branch
      %215 = sbr.rel (0) target = $region21
    $region20: #{generator_forward.9} parent=1 // pred_region
      _
    $region21: #{generator_forward.9} parent=1 // pred_fallthru
      _
    %216 = vsyncpa [#allocation3], 1

// kernel: generator_forward.11
$region0: #{generator_forward.11}
  #allocation0 [shape = 'u32[]', space=smem, size = 0x4, offset = 0x4, fixed_abs, tag = 'smem constant byte address 0x4 - core index']
  #allocation1 [shape = 'u32[72,128]{1,0:T(1,128)}', space=vmem, size = 0x9000, scoped, tag = 'internal scratch']
  %s0 = inlined_call_operand.vmem [shape: bf16[32,64], index: 0, kind: input, shape index: {}]
  %s1 = inlined_call_operand.hbm [shape: bf16[64,512], index: 1, kind: input, shape index: {}]
  %s2 = inlined_call_operand.vmem [shape: f32[32,512], index: 2, kind: output, shape index: {}]
  %s3 = sld [smem:[#allocation0]]
  $region22: #{generator_forward.11} parent=0
    _
  %s5 = ssub.s32 1, %s3
  %s6 = scalar_select 0, %s5, %s3
  $region1: #{generator_forward.11} parent=0
    #allocation2 [shape = 'u8[65536]{0}', space=vmem, size = 0x10000, scoped, tag = 'input window, operand 1, single buffered']
    #allocation3 [shape = 's32[1]{0}', space=sflag, size = 0x4, scoped, tag = 'scoped memory for generator_forward.11']
    %7 = vsyncpa [#allocation3], 0
    // Predicated region
    $region2: #{generator_forward.11} parent=1 // pred_check
      _
    $region3: #{generator_forward.11} parent=1 // pred_check_branch
      %9 = sbr.rel (0) target = $region5
    $region4: #{generator_forward.11} parent=1 // pred_region
      _
    $region5: #{generator_forward.11} parent=1 // pred_fallthru
      _
    // Predicated region
    $region6: #{generator_forward.11} parent=1 // pred_check
      _
    $region7: #{generator_forward.11} parent=1 // pred_check_branch
      %11 = sbr.rel (0) target = $region9
    $region8: #{generator_forward.11} parent=1 // pred_region
      %13 = vsyncadd [#allocation3], 0
      %s14 = sshll.u32 %s1, 4
      %s15 = int_to_ptr.hbm [resolvable:$true] %s14
      %s16 = sshll.u32 [#allocation2], 4
      %s17 = int_to_ptr.vmem [resolvable:$true] %s16
      %22 = dma.hbm_to_vmem [thread:$0]  %s15, 2048, %s17, [#allocation3], 256, 256, 16
    $region9: #{generator_forward.11} parent=1 // pred_fallthru
      _
    // Predicated region
    $region10: #{generator_forward.11} parent=1 // pred_check
      _
    $region11: #{generator_forward.11} parent=1 // pred_check_branch
      %24 = sbr.rel (0) target = $region13
    $region12: #{generator_forward.11} parent=1 // pred_region
      %26 = dma.done [#allocation3], 2048
    $region13: #{generator_forward.11} parent=1 // pred_fallthru
      _
    %v28 = vld [vmem:[%s0] sm:$0xf]
    %v29 = vld [vmem:[%s0 + $0x4] sm:$0xf]
    %v30 = vld [vmem:[%s0 + $0x8] sm:$0xf]
    %v31 = vld [vmem:[%s0 + $0xc] sm:$0xf]
    %v32 = vld [vmem:[#allocation2] sm:$0xff]
    %v33 = vld [vmem:[#allocation2 + $0x8] sm:$0xff]
    %v34 = vld [vmem:[#allocation2 + $0x10] sm:$0xff]
    %v35 = vld [vmem:[#allocation2 + $0x18] sm:$0xff]
    %v36 = vld [vmem:[#allocation2 + $0x20] sm:$0xff]
    %v37 = vld [vmem:[#allocation2 + $0x28] sm:$0xff]
    %v38 = vld [vmem:[#allocation2 + $0x30] sm:$0xff]
    %v39 = vld [vmem:[#allocation2 + $0x38] sm:$0xff]
    %v40 = vld [vmem:[#allocation2 + $0x40] sm:$0xff]
    %v41 = vld [vmem:[#allocation2 + $0x48] sm:$0xff]
    %v42 = vld [vmem:[#allocation2 + $0x50] sm:$0xff]
    %v43 = vld [vmem:[#allocation2 + $0x58] sm:$0xff]
    %v44 = vld [vmem:[#allocation2 + $0x60] sm:$0xff]
    %v45 = vld [vmem:[#allocation2 + $0x68] sm:$0xff]
    %v46 = vld [vmem:[#allocation2 + $0x70] sm:$0xff]
    %v47 = vld [vmem:[#allocation2 + $0x78] sm:$0xff]
    %v52 = vunpack.c.l.b16 %v28
    %v53 = vunpack.c.l.b16 %v29
    %v54 = vunpack.c.l.b16 %v30
    %v55 = vunpack.c.l.b16 %v31
    %v56 = vpack.c.b16 %v53, %v52
    %v57 = vpack.c.b16 %v55, %v54
    %v74 = vunpack.c.l.b16 %v32
    %v75 = vunpack.c.h.b16 %v32
    %v76 = vunpack.c.l.b16 %v33
    %v77 = vunpack.c.h.b16 %v33
    %v78 = vunpack.c.l.b16 %v34
    %v79 = vunpack.c.h.b16 %v34
    %v80 = vunpack.c.l.b16 %v35
    %v81 = vunpack.c.h.b16 %v35
    %v82 = vunpack.c.l.b16 %v36
    %v83 = vunpack.c.h.b16 %v36
    %v84 = vunpack.c.l.b16 %v37
    %v85 = vunpack.c.h.b16 %v37
    %v86 = vunpack.c.l.b16 %v38
    %v87 = vunpack.c.h.b16 %v38
    %v88 = vunpack.c.l.b16 %v39
    %v89 = vunpack.c.h.b16 %v39
    %v90 = vunpack.c.l.b16 %v40
    %v91 = vunpack.c.h.b16 %v40
    %v92 = vunpack.c.l.b16 %v41
    %v93 = vunpack.c.h.b16 %v41
    %v94 = vunpack.c.l.b16 %v42
    %v95 = vunpack.c.h.b16 %v42
    %v96 = vunpack.c.l.b16 %v43
    %v97 = vunpack.c.h.b16 %v43
    %v98 = vunpack.c.l.b16 %v44
    %v99 = vunpack.c.h.b16 %v44
    %v100 = vunpack.c.l.b16 %v45
    %v101 = vunpack.c.h.b16 %v45
    %v102 = vunpack.c.l.b16 %v46
    %v103 = vunpack.c.h.b16 %v46
    %v104 = vunpack.c.l.b16 %v47
    %v105 = vunpack.c.h.b16 %v47
    %v106 = vpack.c.b16 %v78, %v74
    %v107 = vpack.c.b16 %v79, %v75
    %v108 = vpack.c.b16 %v80, %v76
    %v109 = vpack.c.b16 %v81, %v77
    %v110 = vpack.c.b16 %v86, %v82
    %v111 = vpack.c.b16 %v87, %v83
    %v112 = vpack.c.b16 %v88, %v84
    %v113 = vpack.c.b16 %v89, %v85
    %v114 = vpack.c.b16 %v94, %v90
    %v115 = vpack.c.b16 %v95, %v91
    %v116 = vpack.c.b16 %v96, %v92
    %v117 = vpack.c.b16 %v97, %v93
    %v118 = vpack.c.b16 %v102, %v98
    %v119 = vpack.c.b16 %v103, %v99
    %v120 = vpack.c.b16 %v104, %v100
    %v121 = vpack.c.b16 %v105, %v101
    %vm138 = vcmask 523264
    %v140 = vsel %vm138, %v56, 0
    %v143 = vsel %vm138, %v57, 0
    %145 = vmatpush.bf16.msra.mxu0 0
    %146 = vmatpush.bf16.msra.mxu0 0
    %147 = vmatpush.bf16.msra.mxu0 0
    %148 = vmatpush.bf16.msra.mxu0 0
    %149 = vmatpush.bf16.msra.mxu0 %v118
    %150 = vmatpush.bf16.msra.mxu0 %v114
    %151 = vmatpush.bf16.msra.mxu0 %v110
    %152 = vmatpush.bf16.msra.mxu0 %v106
    %153 = vmatmul.bf16.gmra.mxu0 %v140
    %v154 = vpop.f32.mrf.mxu0
    %v155 = vadd.f32 0.0, %v154
    %v156 = vpop.f32.mrf.mxu0
    %v157 = vadd.f32 0.0, %v156
    %158 = vmatmul.bf16.gmra.mxu0 %v143
    %v159 = vpop.f32.mrf.mxu0
    %v160 = vadd.f32 0.0, %v159
    %v161 = vpop.f32.mrf.mxu0
    %v162 = vadd.f32 0.0, %v161
    %163 = vdwg.mxu0
    %164 = vmatpush.bf16.msra.mxu0 0
    %165 = vmatpush.bf16.msra.mxu0 0
    %166 = vmatpush.bf16.msra.mxu0 0
    %167 = vmatpush.bf16.msra.mxu0 0
    %168 = vmatpush.bf16.msra.mxu0 %v119
    %169 = vmatpush.bf16.msra.mxu0 %v115
    %170 = vmatpush.bf16.msra.mxu0 %v111
    %171 = vmatpush.bf16.msra.mxu0 %v107
    %172 = vmatmul.bf16.gmra.mxu0 %v140
    %v173 = vpop.f32.mrf.mxu0
    %v174 = vadd.f32 0.0, %v173
    %v175 = vpop.f32.mrf.mxu0
    %v176 = vadd.f32 0.0, %v175
    %177 = vmatmul.bf16.gmra.mxu0 %v143
    %v178 = vpop.f32.mrf.mxu0
    %v179 = vadd.f32 0.0, %v178
    %v180 = vpop.f32.mrf.mxu0
    %v181 = vadd.f32 0.0, %v180
    %182 = vdwg.mxu0
    %183 = vmatpush.bf16.msra.mxu0 0
    %184 = vmatpush.bf16.msra.mxu0 0
    %185 = vmatpush.bf16.msra.mxu0 0
    %186 = vmatpush.bf16.msra.mxu0 0
    %187 = vmatpush.bf16.msra.mxu0 %v120
    %188 = vmatpush.bf16.msra.mxu0 %v116
    %189 = vmatpush.bf16.msra.mxu0 %v112
    %190 = vmatpush.bf16.msra.mxu0 %v108
    %191 = vmatmul.bf16.gmra.mxu0 %v140
    %v192 = vpop.f32.mrf.mxu0
    %v193 = vadd.f32 0.0, %v192
    %v194 = vpop.f32.mrf.mxu0
    %v195 = vadd.f32 0.0, %v194
    %196 = vmatmul.bf16.gmra.mxu0 %v143
    %v197 = vpop.f32.mrf.mxu0
    %v198 = vadd.f32 0.0, %v197
    %v199 = vpop.f32.mrf.mxu0
    %v200 = vadd.f32 0.0, %v199
    %201 = vdwg.mxu0
    %202 = vmatpush.bf16.msra.mxu0 0
    %203 = vmatpush.bf16.msra.mxu0 0
    %204 = vmatpush.bf16.msra.mxu0 0
    %205 = vmatpush.bf16.msra.mxu0 0
    %206 = vmatpush.bf16.msra.mxu0 %v121
    %207 = vmatpush.bf16.msra.mxu0 %v117
    %208 = vmatpush.bf16.msra.mxu0 %v113
    %209 = vmatpush.bf16.msra.mxu0 %v109
    %210 = vmatmul.bf16.gmra.mxu0 %v140
    %v211 = vpop.f32.mrf.mxu0
    %v212 = vadd.f32 0.0, %v211
    %v213 = vpop.f32.mrf.mxu0
    %v214 = vadd.f32 0.0, %v213
    %215 = vmatmul.bf16.gmra.mxu0 %v143
    %v216 = vpop.f32.mrf.mxu0
    %v217 = vadd.f32 0.0, %v216
    %v218 = vpop.f32.mrf.mxu0
    %v219 = vadd.f32 0.0, %v218
    %220 = vdwg.mxu0
    %221 = vst [vmem:[%s2] sm:$0xff] %v155
    %222 = vst [vmem:[%s2 + $0x8] sm:$0xff] %v174
    %223 = vst [vmem:[%s2 + $0x10] sm:$0xff] %v193
    %224 = vst [vmem:[%s2 + $0x18] sm:$0xff] %v212
    %225 = vst [vmem:[%s2 + $0x20] sm:$0xff] %v157
    %226 = vst [vmem:[%s2 + $0x28] sm:$0xff] %v176
    %227 = vst [vmem:[%s2 + $0x30] sm:$0xff] %v195
    %228 = vst [vmem:[%s2 + $0x38] sm:$0xff] %v214
    %229 = vst [vmem:[%s2 + $0x40] sm:$0xff] %v160
    %230 = vst [vmem:[%s2 + $0x48] sm:$0xff] %v179
    %231 = vst [vmem:[%s2 + $0x50] sm:$0xff] %v198
    %232 = vst [vmem:[%s2 + $0x58] sm:$0xff] %v217
    %233 = vst [vmem:[%s2 + $0x60] sm:$0xff] %v162
    %234 = vst [vmem:[%s2 + $0x68] sm:$0xff] %v181
    %235 = vst [vmem:[%s2 + $0x70] sm:$0xff] %v200
    %236 = vst [vmem:[%s2 + $0x78] sm:$0xff] %v219
    // Predicated region
    $region14: #{generator_forward.11} parent=1 // pred_check
      _
    $region15: #{generator_forward.11} parent=1 // pred_check_branch
      %238 = sbr.rel (0) target = $region17
    $region16: #{generator_forward.11} parent=1 // pred_region
      _
    $region17: #{generator_forward.11} parent=1 // pred_fallthru
      _
    // Predicated region
    $region18: #{generator_forward.11} parent=1 // pred_check
      _
    $region19: #{generator_forward.11} parent=1 // pred_check_branch
      %240 = sbr.rel (0) target = $region21
    $region20: #{generator_forward.11} parent=1 // pred_region
      _
    $region21: #{generator_forward.11} parent=1 // pred_fallthru
      _
    %241 = vsyncpa [#allocation3], 1

// kernel: generator_forward.13
$region0: #{generator_forward.13}
  #allocation0 [shape = 'u32[]', space=smem, size = 0x4, offset = 0x4, fixed_abs, tag = 'smem constant byte address 0x4 - core index']
  #allocation1 [shape = 'u32[72,128]{1,0:T(1,128)}', space=vmem, size = 0x9000, scoped, tag = 'internal scratch']
  %s0 = inlined_call_operand.vmem [shape: bf16[128,32], index: 0, kind: input, shape index: {}]
  %s1 = inlined_call_operand.vmem [shape: bf16[32,256], index: 1, kind: input, shape index: {}]
  %s2 = inlined_call_operand.vmem [shape: f32[128,256], index: 2, kind: output, shape index: {}]
  %s3 = sld [smem:[#allocation0]]
  $region18: #{generator_forward.13} parent=0
    _
  %s5 = ssub.s32 1, %s3
  %s6 = scalar_select 0, %s5, %s3
  // Predicated region
  $region2: #{generator_forward.13} parent=0 // pred_check
    _
  $region3: #{generator_forward.13} parent=0 // pred_check_branch
    %8 = sbr.rel (0) target = $region5
  $region4: #{generator_forward.13} parent=0 // pred_region
    _
  $region5: #{generator_forward.13} parent=0 // pred_fallthru
    _
  // Predicated region
  $region6: #{generator_forward.13} parent=0 // pred_check
    _
  $region7: #{generator_forward.13} parent=0 // pred_check_branch
    %10 = sbr.rel (0) target = $region9
  $region8: #{generator_forward.13} parent=0 // pred_region
    _
  $region9: #{generator_forward.13} parent=0 // pred_fallthru
    _
  %v12 = vld [vmem:[%s0] sm:$0xf]
  %v13 = vld [vmem:[%s0 + $0x4] sm:$0xf]
  %v14 = vld [vmem:[%s0 + $0x8] sm:$0xf]
  %v15 = vld [vmem:[%s0 + $0xc] sm:$0xf]
  %v16 = vld [vmem:[%s0 + $0x10] sm:$0xf]
  %v17 = vld [vmem:[%s0 + $0x14] sm:$0xf]
  %v18 = vld [vmem:[%s0 + $0x18] sm:$0xf]
  %v19 = vld [vmem:[%s0 + $0x1c] sm:$0xf]
  %v20 = vld [vmem:[%s0 + $0x20] sm:$0xf]
  %v21 = vld [vmem:[%s0 + $0x24] sm:$0xf]
  %v22 = vld [vmem:[%s0 + $0x28] sm:$0xf]
  %v23 = vld [vmem:[%s0 + $0x2c] sm:$0xf]
  %v24 = vld [vmem:[%s0 + $0x30] sm:$0xf]
  %v25 = vld [vmem:[%s0 + $0x34] sm:$0xf]
  %v26 = vld [vmem:[%s0 + $0x38] sm:$0xf]
  %v27 = vld [vmem:[%s0 + $0x3c] sm:$0xf]
  %v28 = vld [vmem:[%s1] sm:$0xff]
  %v29 = vld [vmem:[%s1 + $0x8] sm:$0xff]
  %v30 = vld [vmem:[%s1 + $0x10] sm:$0xff]
  %v31 = vld [vmem:[%s1 + $0x18] sm:$0xff]
  %v48 = vunpack.c.l.b16 %v12
  %v49 = vunpack.c.l.b16 %v13
  %v50 = vunpack.c.l.b16 %v14
  %v51 = vunpack.c.l.b16 %v15
  %v52 = vunpack.c.l.b16 %v16
  %v53 = vunpack.c.l.b16 %v17
  %v54 = vunpack.c.l.b16 %v18
  %v55 = vunpack.c.l.b16 %v19
  %v56 = vunpack.c.l.b16 %v20
  %v57 = vunpack.c.l.b16 %v21
  %v58 = vunpack.c.l.b16 %v22
  %v59 = vunpack.c.l.b16 %v23
  %v60 = vunpack.c.l.b16 %v24
  %v61 = vunpack.c.l.b16 %v25
  %v62 = vunpack.c.l.b16 %v26
  %v63 = vunpack.c.l.b16 %v27
  %v64 = vpack.c.b16 %v49, %v48
  %v65 = vpack.c.b16 %v51, %v50
  %v66 = vpack.c.b16 %v53, %v52
  %v67 = vpack.c.b16 %v55, %v54
  %v68 = vpack.c.b16 %v57, %v56
  %v69 = vpack.c.b16 %v59, %v58
  %v70 = vpack.c.b16 %v61, %v60
  %v71 = vpack.c.b16 %v63, %v62
  %v76 = vunpack.c.l.b16 %v28
  %v77 = vunpack.c.h.b16 %v28
  %v78 = vunpack.c.l.b16 %v29
  %v79 = vunpack.c.h.b16 %v29
  %v80 = vunpack.c.l.b16 %v30
  %v81 = vunpack.c.h.b16 %v30
  %v82 = vunpack.c.l.b16 %v31
  %v83 = vunpack.c.h.b16 %v31
  %v84 = vpack.c.b16 %v78, %v76
  %v85 = vpack.c.b16 %v79, %v77
  %v86 = vpack.c.b16 %v82, %v80
  %v87 = vpack.c.b16 %v83, %v81
  %vm92 = vcmask 261120
  %v94 = vsel %vm92, %v64, 0
  %v97 = vsel %vm92, %v65, 0
  %v100 = vsel %vm92, %v66, 0
  %v103 = vsel %vm92, %v67, 0
  %v106 = vsel %vm92, %v68, 0
  %v109 = vsel %vm92, %v69, 0
  %v112 = vsel %vm92, %v70, 0
  %v115 = vsel %vm92, %v71, 0
  %117 = vmatpush.bf16.msra.mxu0 0
  %118 = vmatpush.bf16.msra.mxu0 0
  %119 = vmatpush.bf16.msra.mxu0 0
  %120 = vmatpush.bf16.msra.mxu0 0
  %121 = vmatpush.bf16.msra.mxu0 0
  %122 = vmatpush.bf16.msra.mxu0 0
  %123 = vmatpush.bf16.msra.mxu0 %v86
  %124 = vmatpush.bf16.msra.mxu0 %v84
  %125 = vmatmul.bf16.gmra.mxu0 %v94
  %v126 = vpop.f32.mrf.mxu0
  %v127 = vadd.f32 0.0, %v126
  %v128 = vpop.f32.mrf.mxu0
  %v129 = vadd.f32 0.0, %v128
  %130 = vmatmul.bf16.gmra.mxu0 %v97
  %v131 = vpop.f32.mrf.mxu0
  %v132 = vadd.f32 0.0, %v131
  %v133 = vpop.f32.mrf.mxu0
  %v134 = vadd.f32 0.0, %v133
  %135 = vmatmul.bf16.gmra.mxu0 %v100
  %v136 = vpop.f32.mrf.mxu0
  %v137 = vadd.f32 0.0, %v136
  %v138 = vpop.f32.mrf.mxu0
  %v139 = vadd.f32 0.0, %v138
  %140 = vmatmul.bf16.gmra.mxu0 %v103
  %v141 = vpop.f32.mrf.mxu0
  %v142 = vadd.f32 0.0, %v141
  %v143 = vpop.f32.mrf.mxu0
  %v144 = vadd.f32 0.0, %v143
  %145 = vmatmul.bf16.gmra.mxu0 %v106
  %v146 = vpop.f32.mrf.mxu0
  %v147 = vadd.f32 0.0, %v146
  %v148 = vpop.f32.mrf.mxu0
  %v149 = vadd.f32 0.0, %v148
  %150 = vmatmul.bf16.gmra.mxu0 %v109
  %v151 = vpop.f32.mrf.mxu0
  %v152 = vadd.f32 0.0, %v151
  %v153 = vpop.f32.mrf.mxu0
  %v154 = vadd.f32 0.0, %v153
  %155 = vmatmul.bf16.gmra.mxu0 %v112
  %v156 = vpop.f32.mrf.mxu0
  %v157 = vadd.f32 0.0, %v156
  %v158 = vpop.f32.mrf.mxu0
  %v159 = vadd.f32 0.0, %v158
  %160 = vmatmul.bf16.gmra.mxu0 %v115
  %v161 = vpop.f32.mrf.mxu0
  %v162 = vadd.f32 0.0, %v161
  %v163 = vpop.f32.mrf.mxu0
  %v164 = vadd.f32 0.0, %v163
  %165 = vdwg.mxu0
  %166 = vmatpush.bf16.msra.mxu0 0
  %167 = vmatpush.bf16.msra.mxu0 0
  %168 = vmatpush.bf16.msra.mxu0 0
  %169 = vmatpush.bf16.msra.mxu0 0
  %170 = vmatpush.bf16.msra.mxu0 0
  %171 = vmatpush.bf16.msra.mxu0 0
  %172 = vmatpush.bf16.msra.mxu0 %v87
  %173 = vmatpush.bf16.msra.mxu0 %v85
  %174 = vmatmul.bf16.gmra.mxu0 %v94
  %v175 = vpop.f32.mrf.mxu0
  %v176 = vadd.f32 0.0, %v175
  %v177 = vpop.f32.mrf.mxu0
  %v178 = vadd.f32 0.0, %v177
  %179 = vmatmul.bf16.gmra.mxu0 %v97
  %v180 = vpop.f32.mrf.mxu0
  %v181 = vadd.f32 0.0, %v180
  %v182 = vpop.f32.mrf.mxu0
  %v183 = vadd.f32 0.0, %v182
  %184 = vmatmul.bf16.gmra.mxu0 %v100
  %v185 = vpop.f32.mrf.mxu0
  %v186 = vadd.f32 0.0, %v185
  %v187 = vpop.f32.mrf.mxu0
  %v188 = vadd.f32 0.0, %v187
  %189 = vmatmul.bf16.gmra.mxu0 %v103
  %v190 = vpop.f32.mrf.mxu0
  %v191 = vadd.f32 0.0, %v190
  %v192 = vpop.f32.mrf.mxu0
  %v193 = vadd.f32 0.0, %v192
  %194 = vmatmul.bf16.gmra.mxu0 %v106
  %v195 = vpop.f32.mrf.mxu0
  %v196 = vadd.f32 0.0, %v195
  %v197 = vpop.f32.mrf.mxu0
  %v198 = vadd.f32 0.0, %v197
  %199 = vmatmul.bf16.gmra.mxu0 %v109
  %v200 = vpop.f32.mrf.mxu0
  %v201 = vadd.f32 0.0, %v200
  %v202 = vpop.f32.mrf.mxu0
  %v203 = vadd.f32 0.0, %v202
  %204 = vmatmul.bf16.gmra.mxu0 %v112
  %v205 = vpop.f32.mrf.mxu0
  %v206 = vadd.f32 0.0, %v205
  %v207 = vpop.f32.mrf.mxu0
  %v208 = vadd.f32 0.0, %v207
  %209 = vmatmul.bf16.gmra.mxu0 %v115
  %v210 = vpop.f32.mrf.mxu0
  %v211 = vadd.f32 0.0, %v210
  %v212 = vpop.f32.mrf.mxu0
  %v213 = vadd.f32 0.0, %v212
  %214 = vdwg.mxu0
  %215 = vst [vmem:[%s2] sm:$0xff] %v127
  %216 = vst [vmem:[%s2 + $0x8] sm:$0xff] %v176
  %217 = vst [vmem:[%s2 + $0x10] sm:$0xff] %v129
  %218 = vst [vmem:[%s2 + $0x18] sm:$0xff] %v178
  %219 = vst [vmem:[%s2 + $0x20] sm:$0xff] %v132
  %220 = vst [vmem:[%s2 + $0x28] sm:$0xff] %v181
  %221 = vst [vmem:[%s2 + $0x30] sm:$0xff] %v134
  %222 = vst [vmem:[%s2 + $0x38] sm:$0xff] %v183
  %223 = vst [vmem:[%s2 + $0x40] sm:$0xff] %v137
  %224 = vst [vmem:[%s2 + $0x48] sm:$0xff] %v186
  %225 = vst [vmem:[%s2 + $0x50] sm:$0xff] %v139
  %226 = vst [vmem:[%s2 + $0x58] sm:$0xff] %v188
  %227 = vst [vmem:[%s2 + $0x60] sm:$0xff] %v142
  %228 = vst [vmem:[%s2 + $0x68] sm:$0xff] %v191
  %229 = vst [vmem:[%s2 + $0x70] sm:$0xff] %v144
  %230 = vst [vmem:[%s2 + $0x78] sm:$0xff] %v193
  %231 = vst [vmem:[%s2 + $0x80] sm:$0xff] %v147
  %232 = vst [vmem:[%s2 + $0x88] sm:$0xff] %v196
  %233 = vst [vmem:[%s2 + $0x90] sm:$0xff] %v149
  %234 = vst [vmem:[%s2 + $0x98] sm:$0xff] %v198
  %235 = vst [vmem:[%s2 + $0xa0] sm:$0xff] %v152
  %236 = vst [vmem:[%s2 + $0xa8] sm:$0xff] %v201
  %237 = vst [vmem:[%s2 + $0xb0] sm:$0xff] %v154
  %238 = vst [vmem:[%s2 + $0xb8] sm:$0xff] %v203
  %239 = vst [vmem:[%s2 + $0xc0] sm:$0xff] %v157
  %240 = vst [vmem:[%s2 + $0xc8] sm:$0xff] %v206
  %241 = vst [vmem:[%s2 + $0xd0] sm:$0xff] %v159
  %242 = vst [vmem:[%s2 + $0xd8] sm:$0xff] %v208
  %243 = vst [vmem:[%s2 + $0xe0] sm:$0xff] %v162
  %244 = vst [vmem:[%s2 + $0xe8] sm:$0xff] %v211
  %245 = vst [vmem:[%s2 + $0xf0] sm:$0xff] %v164
  %246 = vst [vmem:[%s2 + $0xf8] sm:$0xff] %v213
  // Predicated region
  $region10: #{generator_forward.13} parent=0 // pred_check
    _
  $region11: #{generator_forward.13} parent=0 // pred_check_branch
    %248 = sbr.rel (0) target = $region13
  $region12: #{generator_forward.13} parent=0 // pred_region
    _
  $region13: #{generator_forward.13} parent=0 // pred_fallthru
    _
  // Predicated region
  $region14: #{generator_forward.13} parent=0 // pred_check
    _
  $region15: #{generator_forward.13} parent=0 // pred_check_branch
    %250 = sbr.rel (0) target = $region17
  $region16: #{generator_forward.13} parent=0 // pred_region
    _
  $region17: #{generator_forward.13} parent=0 // pred_fallthru
    _

// kernel: generator_forward.12
$region0: #{generator_forward.12}
  #allocation0 [shape = 'u32[]', space=smem, size = 0x4, offset = 0x4, fixed_abs, tag = 'smem constant byte address 0x4 - core index']
  #allocation1 [shape = 'u32[72,128]{1,0:T(1,128)}', space=vmem, size = 0x9000, scoped, tag = 'internal scratch']
  %s0 = inlined_call_operand.vmem [shape: f32[2,64,32], index: 0, kind: input, shape index: {}]
  %s1 = inlined_call_operand.vmem [shape: f32[1,32], index: 1, kind: input, shape index: {}]
  %s2 = inlined_call_operand.vmem [shape: f32[1,32], index: 2, kind: input, shape index: {}]
  %s3 = inlined_call_operand.vmem [shape: f32[32,32], index: 3, kind: input, shape index: {}]
  %s4 = inlined_call_operand.vmem [shape: bf16[2,64,32], index: 4, kind: output, shape index: {}]
  %s5 = sld [smem:[#allocation0]]
  $region49: #{generator_forward.12} parent=0
    _
  %s7 = ssub.s32 1, %s5
  %s8 = scalar_select 0, %s7, %s5
  loop: start=0, step=1, limit=4
  $region2: #{generator_forward.12} parent=0 // loop_pre_header
    _
  $region3: #{generator_forward.12} parent=0 // loop_header
    %s10 = sphi 0, %s14
    %p11 = scmp.ge.s32.totalorder %s10, 4
    %s20 = sphi 0, %s22
    %s23 = sphi 0, %s20
    %s24 = sphi 0, %s23
    %s40 = sphi 0, %s24
    %s44 = sphi 0, %s44
    %s46 = sphi 0, %s44
    %s47 = sphi 0, %s46
    %s61 = sphi 0, %s47
    %s65 = sphi 0, %s65
    %s67 = sphi 0, %s65
    %s68 = sphi 0, %s67
    %s82 = sphi 0, %s68
    %s86 = sphi 0, %s86
    %s88 = sphi 0, %s86
    %s89 = sphi 0, %s88
    %s103 = sphi 0, %s89
    %s109 = sphi 0, %s111
    %s112 = sphi 0, %s109
    %s113 = sphi 0, %s112
    %s129 = sphi 0, %s113
  $region4: #{generator_forward.12} parent=0 // loop_header_branch
    %13 = sbr.rel (%p11) target = $region8
  $region5: #{generator_forward.12} parent=0 // loop_body
    %s15 = ssub.s32 %s10, 1
    %s16 = ssub.s32 %s10, 2
    %s17 = sadd.s32 %s10, 1
    %s18 = ssub.s32 %s10, %s17
    %p19 = scmp.eq.s32.totalorder %s18, 0
    %s21 = sadd.s32 %s20, 1
    %s22 = scalar_select %p19, %s20, %s21
    %p25 = pneg %p19
    %p26 = scmp.eq.s32.totalorder %s10, 1
    %p27 = por %p25, %p26
    %p28 = scmp.ne.s32.totalorder %s20, %s23
    %p29 = scmp.eq.s32.totalorder %s10, 0
    %p30 = por %p28, %p29
    %p31 = scmp.ne.s32.totalorder %s20, %s23
    %p32 = scmp.eq.s32.totalorder %s15, 1
    %p33 = por %p31, %p32
    %p34 = scmp.ne.s32.totalorder %s23, %s24
    %p35 = scmp.eq.s32.totalorder %s15, 0
    %p36 = por %p34, %p35
    %p37 = scmp.ne.s32.totalorder %s23, %s24
    %p38 = scmp.eq.s32.totalorder %s16, 1
    %p39 = por %p37, %p38
    %p41 = scmp.ne.s32.totalorder %s24, %s40
    %p42 = scmp.eq.s32.totalorder %s16, 0
    %p43 = por %p41, %p42
    %s45 = sadd.s32 %s44, 1
    %p48 = scmp.eq.s32.totalorder %s10, 1
    %p49 = scmp.ne.s32.totalorder %s44, %s46
    %p50 = scmp.eq.s32.totalorder %s10, 0
    %p51 = por %p49, %p50
    %p52 = scmp.ne.s32.totalorder %s44, %s46
    %p53 = scmp.eq.s32.totalorder %s15, 1
    %p54 = por %p52, %p53
    %p55 = scmp.ne.s32.totalorder %s46, %s47
    %p56 = scmp.eq.s32.totalorder %s15, 0
    %p57 = por %p55, %p56
    %p58 = scmp.ne.s32.totalorder %s46, %s47
    %p59 = scmp.eq.s32.totalorder %s16, 1
    %p60 = por %p58, %p59
    %p62 = scmp.ne.s32.totalorder %s47, %s61
    %p63 = scmp.eq.s32.totalorder %s16, 0
    %p64 = por %p62, %p63
    %s66 = sadd.s32 %s65, 1
    %p69 = scmp.eq.s32.totalorder %s10, 1
    %p70 = scmp.ne.s32.totalorder %s65, %s67
    %p71 = scmp.eq.s32.totalorder %s10, 0
    %p72 = por %p70, %p71
    %p73 = scmp.ne.s32.totalorder %s65, %s67
    %p74 = scmp.eq.s32.totalorder %s15, 1
    %p75 = por %p73, %p74
    %p76 = scmp.ne.s32.totalorder %s67, %s68
    %p77 = scmp.eq.s32.totalorder %s15, 0
    %p78 = por %p76, %p77
    %p79 = scmp.ne.s32.totalorder %s67, %s68
    %p80 = scmp.eq.s32.totalorder %s16, 1
    %p81 = por %p79, %p80
    %p83 = scmp.ne.s32.totalorder %s68, %s82
    %p84 = scmp.eq.s32.totalorder %s16, 0
    %p85 = por %p83, %p84
    %s87 = sadd.s32 %s86, 1
    %p90 = scmp.eq.s32.totalorder %s10, 1
    %p91 = scmp.ne.s32.totalorder %s86, %s88
    %p92 = scmp.eq.s32.totalorder %s10, 0
    %p93 = por %p91, %p92
    %p94 = scmp.ne.s32.totalorder %s86, %s88
    %p95 = scmp.eq.s32.totalorder %s15, 1
    %p96 = por %p94, %p95
    %p97 = scmp.ne.s32.totalorder %s88, %s89
    %p98 = scmp.eq.s32.totalorder %s15, 0
    %p99 = por %p97, %p98
    %p100 = scmp.ne.s32.totalorder %s88, %s89
    %p101 = scmp.eq.s32.totalorder %s16, 1
    %p102 = por %p100, %p101
    %p104 = scmp.ne.s32.totalorder %s89, %s103
    %p105 = scmp.eq.s32.totalorder %s16, 0
    %p106 = por %p104, %p105
    %s107 = ssub.s32 %s10, %s17
    %p108 = scmp.eq.s32.totalorder %s107, 0
    %s110 = sadd.s32 %s109, 1
    %s111 = scalar_select %p108, %s109, %s110
    %p114 = pneg %p108
    %p115 = scmp.eq.s32.totalorder %s10, 1
    %p116 = por %p114, %p115
    %p117 = scmp.ne.s32.totalorder %s109, %s112
    %p118 = scmp.eq.s32.totalorder %s10, 0
    %p119 = por %p117, %p118
    %p120 = scmp.ne.s32.totalorder %s109, %s112
    %p121 = scmp.eq.s32.totalorder %s15, 1
    %p122 = por %p120, %p121
    %p123 = scmp.ne.s32.totalorder %s112, %s113
    %p124 = scmp.eq.s32.totalorder %s15, 0
    %p125 = por %p123, %p124
    %p126 = scmp.ne.s32.totalorder %s112, %s113
    %p127 = scmp.eq.s32.totalorder %s16, 1
    %p128 = por %p126, %p127
    %p130 = scmp.ne.s32.totalorder %s113, %s129
    %p131 = scmp.eq.s32.totalorder %s16, 0
    %p132 = por %p130, %p131
    %p133 = scmp.le.s32.totalorder 1, %s10
    %p134 = scmp.lt.s32.totalorder %s10, 3
    %p135 = pnand %p133, %p134
    %p136 = pneg %p135
    // Predicated region
    $region9: #{generator_forward.12} parent=5 // pred_check
      _
    $region10: #{generator_forward.12} parent=5 // pred_check_branch
      %138 = sbr.rel (%p135) target = $region12
    $region11: #{generator_forward.12} parent=5 // pred_region
      %s139 = ssub.s32 %s10, 1
      // Predicated region
      $region13: #{generator_forward.12} parent=11 // pred_check
        %p140 = pneg %p57
      $region14: #{generator_forward.12} parent=11 // pred_check_branch
        %142 = sbr.rel (%p140) target = $region16
      $region15: #{generator_forward.12} parent=11 // pred_region
        _
      $region16: #{generator_forward.12} parent=11 // pred_fallthru
        _
      // Predicated region
      $region17: #{generator_forward.12} parent=11 // pred_check
        %p143 = pneg %p78
      $region18: #{generator_forward.12} parent=11 // pred_check_branch
        %145 = sbr.rel (%p143) target = $region20
      $region19: #{generator_forward.12} parent=11 // pred_region
        _
      $region20: #{generator_forward.12} parent=11 // pred_fallthru
        _
      // Predicated region
      $region21: #{generator_forward.12} parent=11 // pred_check
        %p146 = pneg %p99
      $region22: #{generator_forward.12} parent=11 // pred_check_branch
        %148 = sbr.rel (%p146) target = $region24
      $region23: #{generator_forward.12} parent=11 // pred_region
        _
      $region24: #{generator_forward.12} parent=11 // pred_fallthru
        _
    $region12: #{generator_forward.12} parent=5 // pred_fallthru
      _
    %p149 = scmp.lt.s32.totalorder %s10, 2
    // Predicated region
    $region25: #{generator_forward.12} parent=5 // pred_check
      %p150 = pneg %p149
    $region26: #{generator_forward.12} parent=5 // pred_check_branch
      %152 = sbr.rel (%p150) target = $region28
    $region27: #{generator_forward.12} parent=5 // pred_region
      // Predicated region
      $region29: #{generator_forward.12} parent=27 // pred_check
        %p153 = pneg %p30
      $region30: #{generator_forward.12} parent=27 // pred_check_branch
        %155 = sbr.rel (%p153) target = $region32
      $region31: #{generator_forward.12} parent=27 // pred_region
        %p156 = scmp.lt.s32.totalorder %s10, 1
        %s157 = scalar_select %p156, %s10, 1
        %s158 = smul.addr %s157, 8
        %s159 = smul.addr %s158, 8
        %s160 = scalar_lea.vmem %s0, %s159
      $region32: #{generator_forward.12} parent=27 // pred_fallthru
        _
    $region28: #{generator_forward.12} parent=5 // pred_fallthru
      _
    %p161 = scmp.le.s32.totalorder 1, %s10
    %p162 = scmp.lt.s32.totalorder %s10, 3
    %p163 = pnand %p161, %p162
    %p164 = pneg %p163
    // Predicated region
    $region33: #{generator_forward.12} parent=5 // pred_check
      _
    $region34: #{generator_forward.12} parent=5 // pred_check_branch
      %166 = sbr.rel (%p163) target = $region36
    $region35: #{generator_forward.12} parent=5 // pred_region
      %s167 = ssub.s32 %s10, 1
      %p168 = scmp.lt.s32.totalorder %s15, 1
      %s169 = scalar_select %p168, %s15, 1
      %s170 = smul.addr %s169, 8
      %s171 = smul.addr %s170, 8
      %s172 = scalar_lea.vmem %s0, %s171
      %p173 = pneg %p36
      %p174 = pneg %p33
      %p175 = pneg %p57
      %p176 = pneg %p54
      %p177 = pneg %p78
      %p178 = pneg %p75
      %p179 = pneg %p99
      %p180 = pneg %p96
      %p181 = pneg %p125
      %p182 = pneg %p122
      %p183 = scmp.lt.s32.totalorder %s15, 1
      %s184 = scalar_select %p183, %s15, 1
      %s185 = smul.addr %s184, 8
      %s186 = smul.addr %s185, 4
      %s187 = scalar_lea.vmem %s4, %s186
      %p188 = scmp.lt.s32.totalorder %s15, 1
      %s189 = scalar_select %p188, %s15, 1
      %s190 = smul.addr %s189, 8
      %s191 = smul.addr %s190, 8
      %s192 = scalar_lea.vmem %s0, %s191
      %p193 = scmp.lt.s32.totalorder %s15, 1
      %s194 = scalar_select %p193, %s15, 1
      %s195 = smul.addr %s194, 8
      %s196 = smul.addr %s195, 4
      %s197 = scalar_lea.vmem %s4, %s196
      %v198 = vld [vmem:[%s192] sm:$0xff]
      %v199 = vld [vmem:[%s192 + $0x8] sm:$0xff]
      %v200 = vld [vmem:[%s192 + $0x10] sm:$0xff]
      %v201 = vld [vmem:[%s192 + $0x18] sm:$0xff]
      %v202 = vld [vmem:[%s192 + $0x20] sm:$0xff]
      %v203 = vld [vmem:[%s192 + $0x28] sm:$0xff]
      %v204 = vld [vmem:[%s192 + $0x30] sm:$0xff]
      %v205 = vld [vmem:[%s192 + $0x38] sm:$0xff]
      %v206 = vld [vmem:[%s3] sm:$0xff]
      %v207 = vld [vmem:[%s3 + $0x8] sm:$0xff]
      %v208 = vld [vmem:[%s3 + $0x10] sm:$0xff]
      %v209 = vld [vmem:[%s3 + $0x18] sm:$0xff]
      %vm210 = vcmask 261120
      %v211 = vsel %vm210, %v198, 0.0
      %v212 = vsel %vm210, %v199, 0.0
      %v213 = vadd.f32 %v211, %v212
      %v214 = vsel %vm210, %v200, 0.0
      %v215 = vadd.f32 %v213, %v214
      %v216 = vsel %vm210, %v201, 0.0
      %v217 = vadd.f32 %v215, %v216
      %v218 = vsel %vm210, %v202, 0.0
      %v219 = vadd.f32 %v217, %v218
      %v220 = vsel %vm210, %v203, 0.0
      %v221 = vadd.f32 %v219, %v220
      %v222 = vsel %vm210, %v204, 0.0
      %v223 = vadd.f32 %v221, %v222
      %v224 = vsel %vm210, %v205, 0.0
      %v225 = vadd.f32 %v223, %v224
      %v226 = vrot.slane %v225, 4
      %v227 = vadd.f32 %v225, %v226
      %v228 = vrot.slane %v227, 2
      %v229 = vadd.f32 %v227, %v228
      %v230 = vrot.slane %v229, 1
      %v231 = vadd.f32 %v229, %v230
      %v233 = vsel %vm210, %v231, 0
      %235 = vmatpush.msra.mxu0 0.0
      %236 = vmatpush.msra.mxu0 0.0
      %237 = vmatpush.msra.mxu0 0.0
      %238 = vmatpush.msra.mxu0 0.0
      %239 = vmatpush.msra.mxu0 0.0
      %240 = vmatpush.msra.mxu0 0.0
      %241 = vmatpush.msra.mxu0 0.0
      %242 = vmatpush.msra.mxu0 0.0
      %243 = vmatpush.msra.mxu0 0.0
      %244 = vmatpush.msra.mxu0 0.0
      %245 = vmatpush.msra.mxu0 0.0
      %246 = vmatpush.msra.mxu0 0.0
      %247 = vmatpush.msra.mxu0 %v209
      %248 = vmatpush.msra.mxu0 %v208
      %249 = vmatpush.msra.mxu0 %v207
      %250 = vmatpush.msra.mxu0 %v206
      %251 = vmatmul.f32.gmra.mxu0 %v233
      %v252 = vpop.f32.mrf.mxu0
      %v253 = vadd.f32 0.0, %v252
      %254 = vdwg.mxu0
      %v255 = vmul.f32 %v253, 0.015625
      %v256 = vperm.slane %v255, 0
      %v257 = vsub.f32 %v198, %v256
      %v258 = vsub.f32 %v199, %v256
      %v259 = vsub.f32 %v200, %v256
      %v260 = vsub.f32 %v201, %v256
      %v261 = vsub.f32 %v202, %v256
      %v262 = vsub.f32 %v203, %v256
      %v263 = vsub.f32 %v204, %v256
      %v264 = vsub.f32 %v205, %v256
      %v265 = vmul.f32 %v257, %v257
      %v266 = vmul.f32 %v258, %v258
      %v267 = vmul.f32 %v259, %v259
      %v268 = vmul.f32 %v260, %v260
      %v269 = vmul.f32 %v261, %v261
      %v270 = vmul.f32 %v262, %v262
      %v271 = vmul.f32 %v263, %v263
      %v272 = vmul.f32 %v264, %v264
      %v273 = vsel %vm210, %v265, 0.0
      %v274 = vsel %vm210, %v266, 0.0
      %v275 = vadd.f32 %v273, %v274
      %v276 = vsel %vm210, %v267, 0.0
      %v277 = vadd.f32 %v275, %v276
      %v278 = vsel %vm210, %v268, 0.0
      %v279 = vadd.f32 %v277, %v278
      %v280 = vsel %vm210, %v269, 0.0
      %v281 = vadd.f32 %v279, %v280
      %v282 = vsel %vm210, %v270, 0.0
      %v283 = vadd.f32 %v281, %v282
      %v284 = vsel %vm210, %v271, 0.0
      %v285 = vadd.f32 %v283, %v284
      %v286 = vsel %vm210, %v272, 0.0
      %v287 = vadd.f32 %v285, %v286
      %v288 = vrot.slane %v287, 4
      %v289 = vadd.f32 %v287, %v288
      %v290 = vrot.slane %v289, 2
      %v291 = vadd.f32 %v289, %v290
      %v292 = vrot.slane %v291, 1
      %v293 = vadd.f32 %v291, %v292
      %v295 = vsel %vm210, %v293, 0
      %297 = vmatpush.msra.mxu0 0.0
      %298 = vmatpush.msra.mxu0 0.0
      %299 = vmatpush.msra.mxu0 0.0
      %300 = vmatpush.msra.mxu0 0.0
      %301 = vmatpush.msra.mxu0 0.0
      %302 = vmatpush.msra.mxu0 0.0
      %303 = vmatpush.msra.mxu0 0.0
      %304 = vmatpush.msra.mxu0 0.0
      %305 = vmatpush.msra.mxu0 0.0
      %306 = vmatpush.msra.mxu0 0.0
      %307 = vmatpush.msra.mxu0 0.0
      %308 = vmatpush.msra.mxu0 0.0
      %309 = vmatpush.msra.mxu0 %v209
      %310 = vmatpush.msra.mxu0 %v208
      %311 = vmatpush.msra.mxu0 %v207
      %312 = vmatpush.msra.mxu0 %v206
      %313 = vmatmul.f32.gmra.mxu0 %v295
      %v314 = vpop.f32.mrf.mxu0
      %v315 = vadd.f32 0.0, %v314
      %316 = vdwg.mxu0
      %v317 = vmul.f32 %v315, 0.015625
      %v318 = vadd.f32 %v317, 1e-05
      %v319 = vrsqrt.pop %v318
      %v320 = vmul.f32 %v319, %v318
      %v321 = vmul.f32 %v320, %v319
      %v322 = vmul.f32 0.5, %v321
      %v323 = vsub.f32 1.5, %v322
      %v324 = vmul.f32 %v319, %v323
      %vm325 = vweird.f32 %v318
      %vm326 = vweird.f32 %v319
      %vm327 = vmor %vm325, %vm326
      %v328 = vsel %vm327, %v319, %v324
      %v329 = vperm.slane %v328, 0
      %v330 = vmul.f32 %v257, %v329
      %v331 = vmul.f32 %v258, %v329
      %v332 = vmul.f32 %v259, %v329
      %v333 = vmul.f32 %v260, %v329
      %v334 = vmul.f32 %v261, %v329
      %v335 = vmul.f32 %v262, %v329
      %v336 = vmul.f32 %v263, %v329
      %v337 = vmul.f32 %v264, %v329
      %v338 = vld [vmem:[%s1] sm:$0x1]
      %v340 = vperm.slane %v338, 0
      %v342 = vmul.f32 %v330, %v340
      %v343 = vmul.f32 %v331, %v340
      %v344 = vmul.f32 %v332, %v340
      %v345 = vmul.f32 %v333, %v340
      %v346 = vmul.f32 %v334, %v340
      %v347 = vmul.f32 %v335, %v340
      %v348 = vmul.f32 %v336, %v340
      %v349 = vmul.f32 %v337, %v340
      %v350 = vld [vmem:[%s2] sm:$0x1]
      %v352 = vperm.slane %v350, 0
      %v354 = vadd.f32 %v342, %v352
      %v355 = vadd.f32 %v343, %v352
      %v356 = vadd.f32 %v344, %v352
      %v357 = vadd.f32 %v345, %v352
      %v358 = vadd.f32 %v346, %v352
      %v359 = vadd.f32 %v347, %v352
      %v360 = vadd.f32 %v348, %v352
      %v361 = vadd.f32 %v349, %v352
      %v362 = vmax.f32 %v354, 0.0
      %v363 = vmax.f32 %v355, 0.0
      %v364 = vmax.f32 %v356, 0.0
      %v365 = vmax.f32 %v357, 0.0
      %v366 = vmax.f32 %v358, 0.0
      %v367 = vmax.f32 %v359, 0.0
      %v368 = vmax.f32 %v360, 0.0
      %v369 = vmax.f32 %v361, 0.0
      %v370 = vpack.c.bf16 %v362, %v362
      %v371 = vpack.c.bf16 %v363, %v363
      %v372 = vpack.c.bf16 %v364, %v364
      %v373 = vpack.c.bf16 %v365, %v365
      %v374 = vpack.c.bf16 %v366, %v366
      %v375 = vpack.c.bf16 %v367, %v367
      %v376 = vpack.c.bf16 %v368, %v368
      %v377 = vpack.c.bf16 %v369, %v369
      %vm378 = vcmask 257024
      %379 = vst.msk [vmem:[%s197] sm:$0xf] %vm378, %v370
      %380 = vst.msk [vmem:[%s197 + $0x4] sm:$0xf] %vm378, %v371
      %381 = vst.msk [vmem:[%s197 + $0x8] sm:$0xf] %vm378, %v372
      %382 = vst.msk [vmem:[%s197 + $0xc] sm:$0xf] %vm378, %v373
      %383 = vst.msk [vmem:[%s197 + $0x10] sm:$0xf] %vm378, %v374
      %384 = vst.msk [vmem:[%s197 + $0x14] sm:$0xf] %vm378, %v375
      %385 = vst.msk [vmem:[%s197 + $0x18] sm:$0xf] %vm378, %v376
      %386 = vst.msk [vmem:[%s197 + $0x1c] sm:$0xf] %vm378, %v377
      %p387 = scmp.lt.s32.totalorder %s15, 1
      %s388 = scalar_select %p387, %s15, 1
      %s389 = smul.addr %s388, 8
      %s390 = smul.addr %s389, 4
      %s391 = scalar_lea.vmem %s4, %s390
      // Predicated region
      $region37: #{generator_forward.12} parent=35 // pred_check
        %p392 = pneg %p122
      $region38: #{generator_forward.12} parent=35 // pred_check_branch
        %394 = sbr.rel (%p392) target = $region40
      $region39: #{generator_forward.12} parent=35 // pred_region
        _
      $region40: #{generator_forward.12} parent=35 // pred_fallthru
        _
    $region36: #{generator_forward.12} parent=5 // pred_fallthru
      _
    %p395 = scmp.le.s32.totalorder 2, %s10
    // Predicated region
    $region41: #{generator_forward.12} parent=5 // pred_check
      %p396 = pneg %p395
    $region42: #{generator_forward.12} parent=5 // pred_check_branch
      %398 = sbr.rel (%p396) target = $region44
    $region43: #{generator_forward.12} parent=5 // pred_region
      %s399 = ssub.s32 %s10, 2
      // Predicated region
      $region45: #{generator_forward.12} parent=43 // pred_check
        %p400 = pneg %p128
      $region46: #{generator_forward.12} parent=43 // pred_check_branch
        %402 = sbr.rel (%p400) target = $region48
      $region47: #{generator_forward.12} parent=43 // pred_region
        %p403 = scmp.lt.s32.totalorder %s16, 1
        %s404 = scalar_select %p403, %s16, 1
        %s405 = smul.addr %s404, 8
        %s406 = smul.addr %s405, 4
        %s407 = scalar_lea.vmem %s4, %s406
      $region48: #{generator_forward.12} parent=43 // pred_fallthru
        _
    $region44: #{generator_forward.12} parent=5 // pred_fallthru
      _
  $region6: #{generator_forward.12} parent=0 // loop_footer
    %s14 = sadd.s32 1, %s10
  $region7: #{generator_forward.12} parent=0 // loop_footer_branch
    %9 = sbr.rel target = $region3
  $region8: #{generator_forward.12} parent=0 // loop_exit
    _

// kernel: generator_forward.14
$region0: #{generator_forward.14}
  #allocation0 [shape = 'u32[]', space=smem, size = 0x4, offset = 0x4, fixed_abs, tag = 'smem constant byte address 0x4 - core index']
  #allocation1 [shape = 'u32[72,128]{1,0:T(1,128)}', space=vmem, size = 0x9000, scoped, tag = 'internal scratch']
  %s0 = inlined_call_operand.vmem [shape: f32[2,256,16], index: 0, kind: input, shape index: {}]
  %s1 = inlined_call_operand.vmem [shape: f32[1,16], index: 1, kind: input, shape index: {}]
  %s2 = inlined_call_operand.vmem [shape: f32[1,16], index: 2, kind: input, shape index: {}]
  %s3 = inlined_call_operand.vmem [shape: f32[16,16], index: 3, kind: input, shape index: {}]
  %s4 = inlined_call_operand.vmem [shape: bf16[2,256,16], index: 4, kind: output, shape index: {}]
  %s5 = sld [smem:[#allocation0]]
  $region49: #{generator_forward.14} parent=0
    _
  %s7 = ssub.s32 1, %s5
  %s8 = scalar_select 0, %s7, %s5
  loop: start=0, step=1, limit=4
  $region2: #{generator_forward.14} parent=0 // loop_pre_header
    _
  $region3: #{generator_forward.14} parent=0 // loop_header
    %s10 = sphi 0, %s14
    %p11 = scmp.ge.s32.totalorder %s10, 4
    %s20 = sphi 0, %s22
    %s23 = sphi 0, %s20
    %s24 = sphi 0, %s23
    %s40 = sphi 0, %s24
    %s44 = sphi 0, %s44
    %s46 = sphi 0, %s44
    %s47 = sphi 0, %s46
    %s61 = sphi 0, %s47
    %s65 = sphi 0, %s65
    %s67 = sphi 0, %s65
    %s68 = sphi 0, %s67
    %s82 = sphi 0, %s68
    %s86 = sphi 0, %s86
    %s88 = sphi 0, %s86
    %s89 = sphi 0, %s88
    %s103 = sphi 0, %s89
    %s109 = sphi 0, %s111
    %s112 = sphi 0, %s109
    %s113 = sphi 0, %s112
    %s129 = sphi 0, %s113
  $region4: #{generator_forward.14} parent=0 // loop_header_branch
    %13 = sbr.rel (%p11) target = $region8
  $region5: #{generator_forward.14} parent=0 // loop_body
    %s15 = ssub.s32 %s10, 1
    %s16 = ssub.s32 %s10, 2
    %s17 = sadd.s32 %s10, 1
    %s18 = ssub.s32 %s10, %s17
    %p19 = scmp.eq.s32.totalorder %s18, 0
    %s21 = sadd.s32 %s20, 1
    %s22 = scalar_select %p19, %s20, %s21
    %p25 = pneg %p19
    %p26 = scmp.eq.s32.totalorder %s10, 1
    %p27 = por %p25, %p26
    %p28 = scmp.ne.s32.totalorder %s20, %s23
    %p29 = scmp.eq.s32.totalorder %s10, 0
    %p30 = por %p28, %p29
    %p31 = scmp.ne.s32.totalorder %s20, %s23
    %p32 = scmp.eq.s32.totalorder %s15, 1
    %p33 = por %p31, %p32
    %p34 = scmp.ne.s32.totalorder %s23, %s24
    %p35 = scmp.eq.s32.totalorder %s15, 0
    %p36 = por %p34, %p35
    %p37 = scmp.ne.s32.totalorder %s23, %s24
    %p38 = scmp.eq.s32.totalorder %s16, 1
    %p39 = por %p37, %p38
    %p41 = scmp.ne.s32.totalorder %s24, %s40
    %p42 = scmp.eq.s32.totalorder %s16, 0
    %p43 = por %p41, %p42
    %s45 = sadd.s32 %s44, 1
    %p48 = scmp.eq.s32.totalorder %s10, 1
    %p49 = scmp.ne.s32.totalorder %s44, %s46
    %p50 = scmp.eq.s32.totalorder %s10, 0
    %p51 = por %p49, %p50
    %p52 = scmp.ne.s32.totalorder %s44, %s46
    %p53 = scmp.eq.s32.totalorder %s15, 1
    %p54 = por %p52, %p53
    %p55 = scmp.ne.s32.totalorder %s46, %s47
    %p56 = scmp.eq.s32.totalorder %s15, 0
    %p57 = por %p55, %p56
    %p58 = scmp.ne.s32.totalorder %s46, %s47
    %p59 = scmp.eq.s32.totalorder %s16, 1
    %p60 = por %p58, %p59
    %p62 = scmp.ne.s32.totalorder %s47, %s61
    %p63 = scmp.eq.s32.totalorder %s16, 0
    %p64 = por %p62, %p63
    %s66 = sadd.s32 %s65, 1
    %p69 = scmp.eq.s32.totalorder %s10, 1
    %p70 = scmp.ne.s32.totalorder %s65, %s67
    %p71 = scmp.eq.s32.totalorder %s10, 0
    %p72 = por %p70, %p71
    %p73 = scmp.ne.s32.totalorder %s65, %s67
    %p74 = scmp.eq.s32.totalorder %s15, 1
    %p75 = por %p73, %p74
    %p76 = scmp.ne.s32.totalorder %s67, %s68
    %p77 = scmp.eq.s32.totalorder %s15, 0
    %p78 = por %p76, %p77
    %p79 = scmp.ne.s32.totalorder %s67, %s68
    %p80 = scmp.eq.s32.totalorder %s16, 1
    %p81 = por %p79, %p80
    %p83 = scmp.ne.s32.totalorder %s68, %s82
    %p84 = scmp.eq.s32.totalorder %s16, 0
    %p85 = por %p83, %p84
    %s87 = sadd.s32 %s86, 1
    %p90 = scmp.eq.s32.totalorder %s10, 1
    %p91 = scmp.ne.s32.totalorder %s86, %s88
    %p92 = scmp.eq.s32.totalorder %s10, 0
    %p93 = por %p91, %p92
    %p94 = scmp.ne.s32.totalorder %s86, %s88
    %p95 = scmp.eq.s32.totalorder %s15, 1
    %p96 = por %p94, %p95
    %p97 = scmp.ne.s32.totalorder %s88, %s89
    %p98 = scmp.eq.s32.totalorder %s15, 0
    %p99 = por %p97, %p98
    %p100 = scmp.ne.s32.totalorder %s88, %s89
    %p101 = scmp.eq.s32.totalorder %s16, 1
    %p102 = por %p100, %p101
    %p104 = scmp.ne.s32.totalorder %s89, %s103
    %p105 = scmp.eq.s32.totalorder %s16, 0
    %p106 = por %p104, %p105
    %s107 = ssub.s32 %s10, %s17
    %p108 = scmp.eq.s32.totalorder %s107, 0
    %s110 = sadd.s32 %s109, 1
    %s111 = scalar_select %p108, %s109, %s110
    %p114 = pneg %p108
    %p115 = scmp.eq.s32.totalorder %s10, 1
    %p116 = por %p114, %p115
    %p117 = scmp.ne.s32.totalorder %s109, %s112
    %p118 = scmp.eq.s32.totalorder %s10, 0
    %p119 = por %p117, %p118
    %p120 = scmp.ne.s32.totalorder %s109, %s112
    %p121 = scmp.eq.s32.totalorder %s15, 1
    %p122 = por %p120, %p121
    %p123 = scmp.ne.s32.totalorder %s112, %s113
    %p124 = scmp.eq.s32.totalorder %s15, 0
    %p125 = por %p123, %p124
    %p126 = scmp.ne.s32.totalorder %s112, %s113
    %p127 = scmp.eq.s32.totalorder %s16, 1
    %p128 = por %p126, %p127
    %p130 = scmp.ne.s32.totalorder %s113, %s129
    %p131 = scmp.eq.s32.totalorder %s16, 0
    %p132 = por %p130, %p131
    %p133 = scmp.le.s32.totalorder 1, %s10
    %p134 = scmp.lt.s32.totalorder %s10, 3
    %p135 = pnand %p133, %p134
    %p136 = pneg %p135
    // Predicated region
    $region9: #{generator_forward.14} parent=5 // pred_check
      _
    $region10: #{generator_forward.14} parent=5 // pred_check_branch
      %138 = sbr.rel (%p135) target = $region12
    $region11: #{generator_forward.14} parent=5 // pred_region
      %s139 = ssub.s32 %s10, 1
      // Predicated region
      $region13: #{generator_forward.14} parent=11 // pred_check
        %p140 = pneg %p57
      $region14: #{generator_forward.14} parent=11 // pred_check_branch
        %142 = sbr.rel (%p140) target = $region16
      $region15: #{generator_forward.14} parent=11 // pred_region
        _
      $region16: #{generator_forward.14} parent=11 // pred_fallthru
        _
      // Predicated region
      $region17: #{generator_forward.14} parent=11 // pred_check
        %p143 = pneg %p78
      $region18: #{generator_forward.14} parent=11 // pred_check_branch
        %145 = sbr.rel (%p143) target = $region20
      $region19: #{generator_forward.14} parent=11 // pred_region
        _
      $region20: #{generator_forward.14} parent=11 // pred_fallthru
        _
      // Predicated region
      $region21: #{generator_forward.14} parent=11 // pred_check
        %p146 = pneg %p99
      $region22: #{generator_forward.14} parent=11 // pred_check_branch
        %148 = sbr.rel (%p146) target = $region24
      $region23: #{generator_forward.14} parent=11 // pred_region
        _
      $region24: #{generator_forward.14} parent=11 // pred_fallthru
        _
    $region12: #{generator_forward.14} parent=5 // pred_fallthru
      _
    %p149 = scmp.lt.s32.totalorder %s10, 2
    // Predicated region
    $region25: #{generator_forward.14} parent=5 // pred_check
      %p150 = pneg %p149
    $region26: #{generator_forward.14} parent=5 // pred_check_branch
      %152 = sbr.rel (%p150) target = $region28
    $region27: #{generator_forward.14} parent=5 // pred_region
      // Predicated region
      $region29: #{generator_forward.14} parent=27 // pred_check
        %p153 = pneg %p30
      $region30: #{generator_forward.14} parent=27 // pred_check_branch
        %155 = sbr.rel (%p153) target = $region32
      $region31: #{generator_forward.14} parent=27 // pred_region
        %p156 = scmp.lt.s32.totalorder %s10, 1
        %s157 = scalar_select %p156, %s10, 1
        %s158 = smul.addr %s157, 32
        %s159 = smul.addr %s158, 8
        %s160 = scalar_lea.vmem %s0, %s159
      $region32: #{generator_forward.14} parent=27 // pred_fallthru
        _
    $region28: #{generator_forward.14} parent=5 // pred_fallthru
      _
    %p161 = scmp.le.s32.totalorder 1, %s10
    %p162 = scmp.lt.s32.totalorder %s10, 3
    %p163 = pnand %p161, %p162
    %p164 = pneg %p163
    // Predicated region
    $region33: #{generator_forward.14} parent=5 // pred_check
      _
    $region34: #{generator_forward.14} parent=5 // pred_check_branch
      %166 = sbr.rel (%p163) target = $region36
    $region35: #{generator_forward.14} parent=5 // pred_region
      %s167 = ssub.s32 %s10, 1
      %p168 = scmp.lt.s32.totalorder %s15, 1
      %s169 = scalar_select %p168, %s15, 1
      %s170 = smul.addr %s169, 32
      %s171 = smul.addr %s170, 8
      %s172 = scalar_lea.vmem %s0, %s171
      %p173 = pneg %p36
      %p174 = pneg %p33
      %p175 = pneg %p57
      %p176 = pneg %p54
      %p177 = pneg %p78
      %p178 = pneg %p75
      %p179 = pneg %p99
      %p180 = pneg %p96
      %p181 = pneg %p125
      %p182 = pneg %p122
      %p183 = scmp.lt.s32.totalorder %s15, 1
      %s184 = scalar_select %p183, %s15, 1
      %s185 = smul.addr %s184, 32
      %s186 = smul.addr %s185, 4
      %s187 = scalar_lea.vmem %s4, %s186
      %p188 = scmp.lt.s32.totalorder %s15, 1
      %s189 = scalar_select %p188, %s15, 1
      %s190 = smul.addr %s189, 32
      %s191 = smul.addr %s190, 8
      %s192 = scalar_lea.vmem %s0, %s191
      %p193 = scmp.lt.s32.totalorder %s15, 1
      %s194 = scalar_select %p193, %s15, 1
      %s195 = smul.addr %s194, 32
      %s196 = smul.addr %s195, 4
      %s197 = scalar_lea.vmem %s4, %s196
      %v198 = vld [vmem:[%s192] sm:$0xff]
      %v199 = vld [vmem:[%s192 + $0x8] sm:$0xff]
      %v200 = vld [vmem:[%s192 + $0x10] sm:$0xff]
      %v201 = vld [vmem:[%s192 + $0x18] sm:$0xff]
      %v202 = vld [vmem:[%s192 + $0x20] sm:$0xff]
      %v203 = vld [vmem:[%s192 + $0x28] sm:$0xff]
      %v204 = vld [vmem:[%s192 + $0x30] sm:$0xff]
      %v205 = vld [vmem:[%s192 + $0x38] sm:$0xff]
      %v206 = vld [vmem:[%s192 + $0x40] sm:$0xff]
      %v207 = vld [vmem:[%s192 + $0x48] sm:$0xff]
      %v208 = vld [vmem:[%s192 + $0x50] sm:$0xff]
      %v209 = vld [vmem:[%s192 + $0x58] sm:$0xff]
      %v210 = vld [vmem:[%s192 + $0x60] sm:$0xff]
      %v211 = vld [vmem:[%s192 + $0x68] sm:$0xff]
      %v212 = vld [vmem:[%s192 + $0x70] sm:$0xff]
      %v213 = vld [vmem:[%s192 + $0x78] sm:$0xff]
      %v214 = vld [vmem:[%s192 + $0x80] sm:$0xff]
      %v215 = vld [vmem:[%s192 + $0x88] sm:$0xff]
      %v216 = vld [vmem:[%s192 + $0x90] sm:$0xff]
      %v217 = vld [vmem:[%s192 + $0x98] sm:$0xff]
      %v218 = vld [vmem:[%s192 + $0xa0] sm:$0xff]
      %v219 = vld [vmem:[%s192 + $0xa8] sm:$0xff]
      %v220 = vld [vmem:[%s192 + $0xb0] sm:$0xff]
      %v221 = vld [vmem:[%s192 + $0xb8] sm:$0xff]
      %v222 = vld [vmem:[%s192 + $0xc0] sm:$0xff]
      %v223 = vld [vmem:[%s192 + $0xc8] sm:$0xff]
      %v224 = vld [vmem:[%s192 + $0xd0] sm:$0xff]
      %v225 = vld [vmem:[%s192 + $0xd8] sm:$0xff]
      %v226 = vld [vmem:[%s192 + $0xe0] sm:$0xff]
      %v227 = vld [vmem:[%s192 + $0xe8] sm:$0xff]
      %v228 = vld [vmem:[%s192 + $0xf0] sm:$0xff]
      %v229 = vld [vmem:[%s192 + $0xf8] sm:$0xff]
      %v230 = vld [vmem:[%s3] sm:$0xff]
      %v231 = vld [vmem:[%s3 + $0x8] sm:$0xff]
      %vm232 = vcmask 130048
      %v233 = vsel %vm232, %v198, 0.0
      %v234 = vsel %vm232, %v199, 0.0
      %v235 = vadd.f32 %v233, %v234
      %v236 = vsel %vm232, %v200, 0.0
      %v237 = vadd.f32 %v235, %v236
      %v238 = vsel %vm232, %v201, 0.0
      %v239 = vadd.f32 %v237, %v238
      %v240 = vsel %vm232, %v202, 0.0
      %v241 = vadd.f32 %v239, %v240
      %v242 = vsel %vm232, %v203, 0.0
      %v243 = vadd.f32 %v241, %v242
      %v244 = vsel %vm232, %v204, 0.0
      %v245 = vadd.f32 %v243, %v244
      %v246 = vsel %vm232, %v205, 0.0
      %v247 = vadd.f32 %v245, %v246
      %v248 = vsel %vm232, %v206, 0.0
      %v249 = vadd.f32 %v247, %v248
      %v250 = vsel %vm232, %v207, 0.0
      %v251 = vadd.f32 %v249, %v250
      %v252 = vsel %vm232, %v208, 0.0
      %v253 = vadd.f32 %v251, %v252
      %v254 = vsel %vm232, %v209, 0.0
      %v255 = vadd.f32 %v253, %v254
      %v256 = vsel %vm232, %v210, 0.0
      %v257 = vadd.f32 %v255, %v256
      %v258 = vsel %vm232, %v211, 0.0
      %v259 = vadd.f32 %v257, %v258
      %v260 = vsel %vm232, %v212, 0.0
      %v261 = vadd.f32 %v259, %v260
      %v262 = vsel %vm232, %v213, 0.0
      %v263 = vadd.f32 %v261, %v262
      %v264 = vsel %vm232, %v214, 0.0
      %v265 = vadd.f32 %v263, %v264
      %v266 = vsel %vm232, %v215, 0.0
      %v267 = vadd.f32 %v265, %v266
      %v268 = vsel %vm232, %v216, 0.0
      %v269 = vadd.f32 %v267, %v268
      %v270 = vsel %vm232, %v217, 0.0
      %v271 = vadd.f32 %v269, %v270
      %v272 = vsel %vm232, %v218, 0.0
      %v273 = vadd.f32 %v271, %v272
      %v274 = vsel %vm232, %v219, 0.0
      %v275 = vadd.f32 %v273, %v274
      %v276 = vsel %vm232, %v220, 0.0
      %v277 = vadd.f32 %v275, %v276
      %v278 = vsel %vm232, %v221, 0.0
      %v279 = vadd.f32 %v277, %v278
      %v280 = vsel %vm232, %v222, 0.0
      %v281 = vadd.f32 %v279, %v280
      %v282 = vsel %vm232, %v223, 0.0
      %v283 = vadd.f32 %v281, %v282
      %v284 = vsel %vm232, %v224, 0.0
      %v285 = vadd.f32 %v283, %v284
      %v286 = vsel %vm232, %v225, 0.0
      %v287 = vadd.f32 %v285, %v286
      %v288 = vsel %vm232, %v226, 0.0
      %v289 = vadd.f32 %v287, %v288
      %v290 = vsel %vm232, %v227, 0.0
      %v291 = vadd.f32 %v289, %v290
      %v292 = vsel %vm232, %v228, 0.0
      %v293 = vadd.f32 %v291, %v292
      %v294 = vsel %vm232, %v229, 0.0
      %v295 = vadd.f32 %v293, %v294
      %v296 = vrot.slane %v295, 4
      %v297 = vadd.f32 %v295, %v296
      %v298 = vrot.slane %v297, 2
      %v299 = vadd.f32 %v297, %v298
      %v300 = vrot.slane %v299, 1
      %v301 = vadd.f32 %v299, %v300
      %v303 = vsel %vm232, %v301, 0
      %305 = vmatpush.msra.mxu0 0.0
      %306 = vmatpush.msra.mxu0 0.0
      %307 = vmatpush.msra.mxu0 0.0
      %308 = vmatpush.msra.mxu0 0.0
      %309 = vmatpush.msra.mxu0 0.0
      %310 = vmatpush.msra.mxu0 0.0
      %311 = vmatpush.msra.mxu0 0.0
      %312 = vmatpush.msra.mxu0 0.0
      %313 = vmatpush.msra.mxu0 0.0
      %314 = vmatpush.msra.mxu0 0.0
      %315 = vmatpush.msra.mxu0 0.0
      %316 = vmatpush.msra.mxu0 0.0
      %317 = vmatpush.msra.mxu0 0.0
      %318 = vmatpush.msra.mxu0 0.0
      %319 = vmatpush.msra.mxu0 %v231
      %320 = vmatpush.msra.mxu0 %v230
      %321 = vmatmul.f32.gmra.mxu0 %v303
      %v322 = vpop.f32.mrf.mxu0
      %v323 = vadd.f32 0.0, %v322
      %324 = vdwg.mxu0
      %v325 = vmul.f32 %v323, 0.00390625
      %v326 = vperm.slane %v325, 0
      %v327 = vsub.f32 %v198, %v326
      %v328 = vsub.f32 %v199, %v326
      %v329 = vsub.f32 %v200, %v326
      %v330 = vsub.f32 %v201, %v326
      %v331 = vsub.f32 %v202, %v326
      %v332 = vsub.f32 %v203, %v326
      %v333 = vsub.f32 %v204, %v326
      %v334 = vsub.f32 %v205, %v326
      %v335 = vsub.f32 %v206, %v326
      %v336 = vsub.f32 %v207, %v326
      %v337 = vsub.f32 %v208, %v326
      %v338 = vsub.f32 %v209, %v326
      %v339 = vsub.f32 %v210, %v326
      %v340 = vsub.f32 %v211, %v326
      %v341 = vsub.f32 %v212, %v326
      %v342 = vsub.f32 %v213, %v326
      %v343 = vsub.f32 %v214, %v326
      %v344 = vsub.f32 %v215, %v326
      %v345 = vsub.f32 %v216, %v326
      %v346 = vsub.f32 %v217, %v326
      %v347 = vsub.f32 %v218, %v326
      %v348 = vsub.f32 %v219, %v326
      %v349 = vsub.f32 %v220, %v326
      %v350 = vsub.f32 %v221, %v326
      %v351 = vsub.f32 %v222, %v326
      %v352 = vsub.f32 %v223, %v326
      %v353 = vsub.f32 %v224, %v326
      %v354 = vsub.f32 %v225, %v326
      %v355 = vsub.f32 %v226, %v326
      %v356 = vsub.f32 %v227, %v326
      %v357 = vsub.f32 %v228, %v326
      %v358 = vsub.f32 %v229, %v326
      %v359 = vmul.f32 %v327, %v327
      %v360 = vmul.f32 %v328, %v328
      %v361 = vmul.f32 %v329, %v329
      %v362 = vmul.f32 %v330, %v330
      %v363 = vmul.f32 %v331, %v331
      %v364 = vmul.f32 %v332, %v332
      %v365 = vmul.f32 %v333, %v333
      %v366 = vmul.f32 %v334, %v334
      %v367 = vmul.f32 %v335, %v335
      %v368 = vmul.f32 %v336, %v336
      %v369 = vmul.f32 %v337, %v337
      %v370 = vmul.f32 %v338, %v338
      %v371 = vmul.f32 %v339, %v339
      %v372 = vmul.f32 %v340, %v340
      %v373 = vmul.f32 %v341, %v341
      %v374 = vmul.f32 %v342, %v342
      %v375 = vmul.f32 %v343, %v343
      %v376 = vmul.f32 %v344, %v344
      %v377 = vmul.f32 %v345, %v345
      %v378 = vmul.f32 %v346, %v346
      %v379 = vmul.f32 %v347, %v347
      %v380 = vmul.f32 %v348, %v348
      %v381 = vmul.f32 %v349, %v349
      %v382 = vmul.f32 %v350, %v350
      %v383 = vmul.f32 %v351, %v351
      %v384 = vmul.f32 %v352, %v352
      %v385 = vmul.f32 %v353, %v353
      %v386 = vmul.f32 %v354, %v354
      %v387 = vmul.f32 %v355, %v355
      %v388 = vmul.f32 %v356, %v356
      %v389 = vmul.f32 %v357, %v357
      %v390 = vmul.f32 %v358, %v358
      %v391 = vsel %vm232, %v359, 0.0
      %v392 = vsel %vm232, %v360, 0.0
      %v393 = vadd.f32 %v391, %v392
      %v394 = vsel %vm232, %v361, 0.0
      %v395 = vadd.f32 %v393, %v394
      %v396 = vsel %vm232, %v362, 0.0
      %v397 = vadd.f32 %v395, %v396
      %v398 = vsel %vm232, %v363, 0.0
      %v399 = vadd.f32 %v397, %v398
      %v400 = vsel %vm232, %v364, 0.0
      %v401 = vadd.f32 %v399, %v400
      %v402 = vsel %vm232, %v365, 0.0
      %v403 = vadd.f32 %v401, %v402
      %v404 = vsel %vm232, %v366, 0.0
      %v405 = vadd.f32 %v403, %v404
      %v406 = vsel %vm232, %v367, 0.0
      %v407 = vadd.f32 %v405, %v406
      %v408 = vsel %vm232, %v368, 0.0
      %v409 = vadd.f32 %v407, %v408
      %v410 = vsel %vm232, %v369, 0.0
      %v411 = vadd.f32 %v409, %v410
      %v412 = vsel %vm232, %v370, 0.0
      %v413 = vadd.f32 %v411, %v412
      %v414 = vsel %vm232, %v371, 0.0
      %v415 = vadd.f32 %v413, %v414
      %v416 = vsel %vm232, %v372, 0.0
      %v417 = vadd.f32 %v415, %v416
      %v418 = vsel %vm232, %v373, 0.0
      %v419 = vadd.f32 %v417, %v418
      %v420 = vsel %vm232, %v374, 0.0
      %v421 = vadd.f32 %v419, %v420
      %v422 = vsel %vm232, %v375, 0.0
      %v423 = vadd.f32 %v421, %v422
      %v424 = vsel %vm232, %v376, 0.0
      %v425 = vadd.f32 %v423, %v424
      %v426 = vsel %vm232, %v377, 0.0
      %v427 = vadd.f32 %v425, %v426
      %v428 = vsel %vm232, %v378, 0.0
      %v429 = vadd.f32 %v427, %v428
      %v430 = vsel %vm232, %v379, 0.0
      %v431 = vadd.f32 %v429, %v430
      %v432 = vsel %vm232, %v380, 0.0
      %v433 = vadd.f32 %v431, %v432
      %v434 = vsel %vm232, %v381, 0.0
      %v435 = vadd.f32 %v433, %v434
      %v436 = vsel %vm232, %v382, 0.0
      %v437 = vadd.f32 %v435, %v436
      %v438 = vsel %vm232, %v383, 0.0
      %v439 = vadd.f32 %v437, %v438
      %v440 = vsel %vm232, %v384, 0.0
      %v441 = vadd.f32 %v439, %v440
      %v442 = vsel %vm232, %v385, 0.0
      %v443 = vadd.f32 %v441, %v442
      %v444 = vsel %vm232, %v386, 0.0
      %v445 = vadd.f32 %v443, %v444
      %v446 = vsel %vm232, %v387, 0.0
      %v447 = vadd.f32 %v445, %v446
      %v448 = vsel %vm232, %v388, 0.0
      %v449 = vadd.f32 %v447, %v448
      %v450 = vsel %vm232, %v389, 0.0
      %v451 = vadd.f32 %v449, %v450
      %v452 = vsel %vm232, %v390, 0.0
      %v453 = vadd.f32 %v451, %v452
      %v454 = vrot.slane %v453, 4
      %v455 = vadd.f32 %v453, %v454
      %v456 = vrot.slane %v455, 2
      %v457 = vadd.f32 %v455, %v456
      %v458 = vrot.slane %v457, 1
      %v459 = vadd.f32 %v457, %v458
      %v461 = vsel %vm232, %v459, 0
      %463 = vmatpush.msra.mxu0 0.0
      %464 = vmatpush.msra.mxu0 0.0
      %465 = vmatpush.msra.mxu0 0.0
      %466 = vmatpush.msra.mxu0 0.0
      %467 = vmatpush.msra.mxu0 0.0
      %468 = vmatpush.msra.mxu0 0.0
      %469 = vmatpush.msra.mxu0 0.0
      %470 = vmatpush.msra.mxu0 0.0
      %471 = vmatpush.msra.mxu0 0.0
      %472 = vmatpush.msra.mxu0 0.0
      %473 = vmatpush.msra.mxu0 0.0
      %474 = vmatpush.msra.mxu0 0.0
      %475 = vmatpush.msra.mxu0 0.0
      %476 = vmatpush.msra.mxu0 0.0
      %477 = vmatpush.msra.mxu0 %v231
      %478 = vmatpush.msra.mxu0 %v230
      %479 = vmatmul.f32.gmra.mxu0 %v461
      %v480 = vpop.f32.mrf.mxu0
      %v481 = vadd.f32 0.0, %v480
      %482 = vdwg.mxu0
      %v483 = vmul.f32 %v481, 0.00390625
      %v484 = vadd.f32 %v483, 1e-05
      %v485 = vrsqrt.pop %v484
      %v486 = vmul.f32 %v485, %v484
      %v487 = vmul.f32 %v486, %v485
      %v488 = vmul.f32 0.5, %v487
      %v489 = vsub.f32 1.5, %v488
      %v490 = vmul.f32 %v485, %v489
      %vm491 = vweird.f32 %v484
      %vm492 = vweird.f32 %v485
      %vm493 = vmor %vm491, %vm492
      %v494 = vsel %vm493, %v485, %v490
      %v495 = vperm.slane %v494, 0
      %v496 = vmul.f32 %v327, %v495
      %v497 = vmul.f32 %v328, %v495
      %v498 = vmul.f32 %v329, %v495
      %v499 = vmul.f32 %v330, %v495
      %v500 = vmul.f32 %v331, %v495
      %v501 = vmul.f32 %v332, %v495
      %v502 = vmul.f32 %v333, %v495
      %v503 = vmul.f32 %v334, %v495
      %v504 = vmul.f32 %v335, %v495
      %v505 = vmul.f32 %v336, %v495
      %v506 = vmul.f32 %v337, %v495
      %v507 = vmul.f32 %v338, %v495
      %v508 = vmul.f32 %v339, %v495
      %v509 = vmul.f32 %v340, %v495
      %v510 = vmul.f32 %v341, %v495
      %v511 = vmul.f32 %v342, %v495
      %v512 = vmul.f32 %v343, %v495
      %v513 = vmul.f32 %v344, %v495
      %v514 = vmul.f32 %v345, %v495
      %v515 = vmul.f32 %v346, %v495
      %v516 = vmul.f32 %v347, %v495
      %v517 = vmul.f32 %v348, %v495
      %v518 = vmul.f32 %v349, %v495
      %v519 = vmul.f32 %v350, %v495
      %v520 = vmul.f32 %v351, %v495
      %v521 = vmul.f32 %v352, %v495
      %v522 = vmul.f32 %v353, %v495
      %v523 = vmul.f32 %v354, %v495
      %v524 = vmul.f32 %v355, %v495
      %v525 = vmul.f32 %v356, %v495
      %v526 = vmul.f32 %v357, %v495
      %v527 = vmul.f32 %v358, %v495
      %v528 = vld [vmem:[%s1] sm:$0x1]
      %v530 = vperm.slane %v528, 0
      %v532 = vmul.f32 %v496, %v530
      %v533 = vmul.f32 %v497, %v530
      %v534 = vmul.f32 %v498, %v530
      %v535 = vmul.f32 %v499, %v530
      %v536 = vmul.f32 %v500, %v530
      %v537 = vmul.f32 %v501, %v530
      %v538 = vmul.f32 %v502, %v530
      %v539 = vmul.f32 %v503, %v530
      %v540 = vmul.f32 %v504, %v530
      %v541 = vmul.f32 %v505, %v530
      %v542 = vmul.f32 %v506, %v530
      %v543 = vmul.f32 %v507, %v530
      %v544 = vmul.f32 %v508, %v530
      %v545 = vmul.f32 %v509, %v530
      %v546 = vmul.f32 %v510, %v530
      %v547 = vmul.f32 %v511, %v530
      %v548 = vmul.f32 %v512, %v530
      %v549 = vmul.f32 %v513, %v530
      %v550 = vmul.f32 %v514, %v530
      %v551 = vmul.f32 %v515, %v530
      %v552 = vmul.f32 %v516, %v530
      %v553 = vmul.f32 %v517, %v530
      %v554 = vmul.f32 %v518, %v530
      %v555 = vmul.f32 %v519, %v530
      %v556 = vmul.f32 %v520, %v530
      %v557 = vmul.f32 %v521, %v530
      %v558 = vmul.f32 %v522, %v530
      %v559 = vmul.f32 %v523, %v530
      %v560 = vmul.f32 %v524, %v530
      %v561 = vmul.f32 %v525, %v530
      %v562 = vmul.f32 %v526, %v530
      %v563 = vmul.f32 %v527, %v530
      %v564 = vld [vmem:[%s2] sm:$0x1]
      %v566 = vperm.slane %v564, 0
      %v568 = vadd.f32 %v532, %v566
      %v569 = vadd.f32 %v533, %v566
      %v570 = vadd.f32 %v534, %v566
      %v571 = vadd.f32 %v535, %v566
      %v572 = vadd.f32 %v536, %v566
      %v573 = vadd.f32 %v537, %v566
      %v574 = vadd.f32 %v538, %v566
      %v575 = vadd.f32 %v539, %v566
      %v576 = vadd.f32 %v540, %v566
      %v577 = vadd.f32 %v541, %v566
      %v578 = vadd.f32 %v542, %v566
      %v579 = vadd.f32 %v543, %v566
      %v580 = vadd.f32 %v544, %v566
      %v581 = vadd.f32 %v545, %v566
      %v582 = vadd.f32 %v546, %v566
      %v583 = vadd.f32 %v547, %v566
      %v584 = vadd.f32 %v548, %v566
      %v585 = vadd.f32 %v549, %v566
      %v586 = vadd.f32 %v550, %v566
      %v587 = vadd.f32 %v551, %v566
      %v588 = vadd.f32 %v552, %v566
      %v589 = vadd.f32 %v553, %v566
      %v590 = vadd.f32 %v554, %v566
      %v591 = vadd.f32 %v555, %v566
      %v592 = vadd.f32 %v556, %v566
      %v593 = vadd.f32 %v557, %v566
      %v594 = vadd.f32 %v558, %v566
      %v595 = vadd.f32 %v559, %v566
      %v596 = vadd.f32 %v560, %v566
      %v597 = vadd.f32 %v561, %v566
      %v598 = vadd.f32 %v562, %v566
      %v599 = vadd.f32 %v563, %v566
      %v600 = vmax.f32 %v568, 0.0
      %v601 = vmax.f32 %v569, 0.0
      %v602 = vmax.f32 %v570, 0.0
      %v603 = vmax.f32 %v571, 0.0
      %v604 = vmax.f32 %v572, 0.0
      %v605 = vmax.f32 %v573, 0.0
      %v606 = vmax.f32 %v574, 0.0
      %v607 = vmax.f32 %v575, 0.0
      %v608 = vmax.f32 %v576, 0.0
      %v609 = vmax.f32 %v577, 0.0
      %v610 = vmax.f32 %v578, 0.0
      %v611 = vmax.f32 %v579, 0.0
      %v612 = vmax.f32 %v580, 0.0
      %v613 = vmax.f32 %v581, 0.0
      %v614 = vmax.f32 %v582, 0.0
      %v615 = vmax.f32 %v583, 0.0
      %v616 = vmax.f32 %v584, 0.0
      %v617 = vmax.f32 %v585, 0.0
      %v618 = vmax.f32 %v586, 0.0
      %v619 = vmax.f32 %v587, 0.0
      %v620 = vmax.f32 %v588, 0.0
      %v621 = vmax.f32 %v589, 0.0
      %v622 = vmax.f32 %v590, 0.0
      %v623 = vmax.f32 %v591, 0.0
      %v624 = vmax.f32 %v592, 0.0
      %v625 = vmax.f32 %v593, 0.0
      %v626 = vmax.f32 %v594, 0.0
      %v627 = vmax.f32 %v595, 0.0
      %v628 = vmax.f32 %v596, 0.0
      %v629 = vmax.f32 %v597, 0.0
      %v630 = vmax.f32 %v598, 0.0
      %v631 = vmax.f32 %v599, 0.0
      %v632 = vpack.c.bf16 %v600, %v600
      %v633 = vpack.c.bf16 %v601, %v601
      %v634 = vpack.c.bf16 %v602, %v602
      %v635 = vpack.c.bf16 %v603, %v603
      %v636 = vpack.c.bf16 %v604, %v604
      %v637 = vpack.c.bf16 %v605, %v605
      %v638 = vpack.c.bf16 %v606, %v606
      %v639 = vpack.c.bf16 %v607, %v607
      %v640 = vpack.c.bf16 %v608, %v608
      %v641 = vpack.c.bf16 %v609, %v609
      %v642 = vpack.c.bf16 %v610, %v610
      %v643 = vpack.c.bf16 %v611, %v611
      %v644 = vpack.c.bf16 %v612, %v612
      %v645 = vpack.c.bf16 %v613, %v613
      %v646 = vpack.c.bf16 %v614, %v614
      %v647 = vpack.c.bf16 %v615, %v615
      %v648 = vpack.c.bf16 %v616, %v616
      %v649 = vpack.c.bf16 %v617, %v617
      %v650 = vpack.c.bf16 %v618, %v618
      %v651 = vpack.c.bf16 %v619, %v619
      %v652 = vpack.c.bf16 %v620, %v620
      %v653 = vpack.c.bf16 %v621, %v621
      %v654 = vpack.c.bf16 %v622, %v622
      %v655 = vpack.c.bf16 %v623, %v623
      %v656 = vpack.c.bf16 %v624, %v624
      %v657 = vpack.c.bf16 %v625, %v625
      %v658 = vpack.c.bf16 %v626, %v626
      %v659 = vpack.c.bf16 %v627, %v627
      %v660 = vpack.c.bf16 %v628, %v628
      %v661 = vpack.c.bf16 %v629, %v629
      %v662 = vpack.c.bf16 %v630, %v630
      %v663 = vpack.c.bf16 %v631, %v631
      %vm664 = vcmask 125952
      %665 = vst.msk [vmem:[%s197] sm:$0xf] %vm664, %v632
      %666 = vst.msk [vmem:[%s197 + $0x4] sm:$0xf] %vm664, %v633
      %667 = vst.msk [vmem:[%s197 + $0x8] sm:$0xf] %vm664, %v634
      %668 = vst.msk [vmem:[%s197 + $0xc] sm:$0xf] %vm664, %v635
      %669 = vst.msk [vmem:[%s197 + $0x10] sm:$0xf] %vm664, %v636
      %670 = vst.msk [vmem:[%s197 + $0x14] sm:$0xf] %vm664, %v637
      %671 = vst.msk [vmem:[%s197 + $0x18] sm:$0xf] %vm664, %v638
      %672 = vst.msk [vmem:[%s197 + $0x1c] sm:$0xf] %vm664, %v639
      %673 = vst.msk [vmem:[%s197 + $0x20] sm:$0xf] %vm664, %v640
      %674 = vst.msk [vmem:[%s197 + $0x24] sm:$0xf] %vm664, %v641
      %675 = vst.msk [vmem:[%s197 + $0x28] sm:$0xf] %vm664, %v642
      %676 = vst.msk [vmem:[%s197 + $0x2c] sm:$0xf] %vm664, %v643
      %677 = vst.msk [vmem:[%s197 + $0x30] sm:$0xf] %vm664, %v644
      %678 = vst.msk [vmem:[%s197 + $0x34] sm:$0xf] %vm664, %v645
      %679 = vst.msk [vmem:[%s197 + $0x38] sm:$0xf] %vm664, %v646
      %680 = vst.msk [vmem:[%s197 + $0x3c] sm:$0xf] %vm664, %v647
      %681 = vst.msk [vmem:[%s197 + $0x40] sm:$0xf] %vm664, %v648
      %682 = vst.msk [vmem:[%s197 + $0x44] sm:$0xf] %vm664, %v649
      %683 = vst.msk [vmem:[%s197 + $0x48] sm:$0xf] %vm664, %v650
      %684 = vst.msk [vmem:[%s197 + $0x4c] sm:$0xf] %vm664, %v651
      %685 = vst.msk [vmem:[%s197 + $0x50] sm:$0xf] %vm664, %v652
      %686 = vst.msk [vmem:[%s197 + $0x54] sm:$0xf] %vm664, %v653
      %687 = vst.msk [vmem:[%s197 + $0x58] sm:$0xf] %vm664, %v654
      %688 = vst.msk [vmem:[%s197 + $0x5c] sm:$0xf] %vm664, %v655
      %689 = vst.msk [vmem:[%s197 + $0x60] sm:$0xf] %vm664, %v656
      %690 = vst.msk [vmem:[%s197 + $0x64] sm:$0xf] %vm664, %v657
      %691 = vst.msk [vmem:[%s197 + $0x68] sm:$0xf] %vm664, %v658
      %692 = vst.msk [vmem:[%s197 + $0x6c] sm:$0xf] %vm664, %v659
      %693 = vst.msk [vmem:[%s197 + $0x70] sm:$0xf] %vm664, %v660
      %694 = vst.msk [vmem:[%s197 + $0x74] sm:$0xf] %vm664, %v661
      %695 = vst.msk [vmem:[%s197 + $0x78] sm:$0xf] %vm664, %v662
      %696 = vst.msk [vmem:[%s197 + $0x7c] sm:$0xf] %vm664, %v663
      %p697 = scmp.lt.s32.totalorder %s15, 1
      %s698 = scalar_select %p697, %s15, 1
      %s699 = smul.addr %s698, 32
      %s700 = smul.addr %s699, 4
      %s701 = scalar_lea.vmem %s4, %s700
      // Predicated region
      $region37: #{generator_forward.14} parent=35 // pred_check
        %p702 = pneg %p122
      $region38: #{generator_forward.14} parent=35 // pred_check_branch
        %704 = sbr.rel (%p702) target = $region40
      $region39: #{generator_forward.14} parent=35 // pred_region
        _
      $region40: #{generator_forward.14} parent=35 // pred_fallthru
        _
    $region36: #{generator_forward.14} parent=5 // pred_fallthru
      _
    %p705 = scmp.le.s32.totalorder 2, %s10
    // Predicated region
    $region41: #{generator_forward.14} parent=5 // pred_check
      %p706 = pneg %p705
    $region42: #{generator_forward.14} parent=5 // pred_check_branch
      %708 = sbr.rel (%p706) target = $region44
    $region43: #{generator_forward.14} parent=5 // pred_region
      %s709 = ssub.s32 %s10, 2
      // Predicated region
      $region45: #{generator_forward.14} parent=43 // pred_check
        %p710 = pneg %p128
      $region46: #{generator_forward.14} parent=43 // pred_check_branch
        %712 = sbr.rel (%p710) target = $region48
      $region47: #{generator_forward.14} parent=43 // pred_region
        %p713 = scmp.lt.s32.totalorder %s16, 1
        %s714 = scalar_select %p713, %s16, 1
        %s715 = smul.addr %s714, 32
        %s716 = smul.addr %s715, 4
        %s717 = scalar_lea.vmem %s4, %s716
      $region48: #{generator_forward.14} parent=43 // pred_fallthru
        _
    $region44: #{generator_forward.14} parent=5 // pred_fallthru
      _
  $region6: #{generator_forward.14} parent=0 // loop_footer
    %s14 = sadd.s32 1, %s10
  $region7: #{generator_forward.14} parent=0 // loop_footer_branch
    %9 = sbr.rel target = $region3
  $region8: #{generator_forward.14} parent=0 // loop_exit
    _

// kernel: generator_forward.15
$region0: #{generator_forward.15}
  #allocation0 [shape = 'u32[]', space=smem, size = 0x4, offset = 0x4, fixed_abs, tag = 'smem constant byte address 0x4 - core index']
  #allocation1 [shape = 'u32[72,128]{1,0:T(1,128)}', space=vmem, size = 0x9000, scoped, tag = 'internal scratch']
  %s0 = inlined_call_operand.vmem [shape: bf16[512,16], index: 0, kind: input, shape index: {}]
  %s1 = inlined_call_operand.vmem [shape: bf16[16,128], index: 1, kind: input, shape index: {}]
  %s2 = inlined_call_operand.vmem [shape: f32[512,128], index: 2, kind: output, shape index: {}]
  %s3 = sld [smem:[#allocation0]]
  $region18: #{generator_forward.15} parent=0
    _
  %s5 = ssub.s32 1, %s3
  %s6 = scalar_select 0, %s5, %s3
  // Predicated region
  $region2: #{generator_forward.15} parent=0 // pred_check
    _
  $region3: #{generator_forward.15} parent=0 // pred_check_branch
    %8 = sbr.rel (0) target = $region5
  $region4: #{generator_forward.15} parent=0 // pred_region
    _
  $region5: #{generator_forward.15} parent=0 // pred_fallthru
    _
  // Predicated region
  $region6: #{generator_forward.15} parent=0 // pred_check
    _
  $region7: #{generator_forward.15} parent=0 // pred_check_branch
    %10 = sbr.rel (0) target = $region9
  $region8: #{generator_forward.15} parent=0 // pred_region
    _
  $region9: #{generator_forward.15} parent=0 // pred_fallthru
    _
  %v12 = vld [vmem:[%s0] sm:$0xf]
  %v13 = vld [vmem:[%s0 + $0x4] sm:$0xf]
  %v14 = vld [vmem:[%s0 + $0x8] sm:$0xf]
  %v15 = vld [vmem:[%s0 + $0xc] sm:$0xf]
  %v16 = vld [vmem:[%s0 + $0x10] sm:$0xf]
  %v17 = vld [vmem:[%s0 + $0x14] sm:$0xf]
  %v18 = vld [vmem:[%s0 + $0x18] sm:$0xf]
  %v19 = vld [vmem:[%s0 + $0x1c] sm:$0xf]
  %v20 = vld [vmem:[%s0 + $0x20] sm:$0xf]
  %v21 = vld [vmem:[%s0 + $0x24] sm:$0xf]
  %v22 = vld [vmem:[%s0 + $0x28] sm:$0xf]
  %v23 = vld [vmem:[%s0 + $0x2c] sm:$0xf]
  %v24 = vld [vmem:[%s0 + $0x30] sm:$0xf]
  %v25 = vld [vmem:[%s0 + $0x34] sm:$0xf]
  %v26 = vld [vmem:[%s0 + $0x38] sm:$0xf]
  %v27 = vld [vmem:[%s0 + $0x3c] sm:$0xf]
  %v28 = vld [vmem:[%s0 + $0x40] sm:$0xf]
  %v29 = vld [vmem:[%s0 + $0x44] sm:$0xf]
  %v30 = vld [vmem:[%s0 + $0x48] sm:$0xf]
  %v31 = vld [vmem:[%s0 + $0x4c] sm:$0xf]
  %v32 = vld [vmem:[%s0 + $0x50] sm:$0xf]
  %v33 = vld [vmem:[%s0 + $0x54] sm:$0xf]
  %v34 = vld [vmem:[%s0 + $0x58] sm:$0xf]
  %v35 = vld [vmem:[%s0 + $0x5c] sm:$0xf]
  %v36 = vld [vmem:[%s0 + $0x60] sm:$0xf]
  %v37 = vld [vmem:[%s0 + $0x64] sm:$0xf]
  %v38 = vld [vmem:[%s0 + $0x68] sm:$0xf]
  %v39 = vld [vmem:[%s0 + $0x6c] sm:$0xf]
  %v40 = vld [vmem:[%s0 + $0x70] sm:$0xf]
  %v41 = vld [vmem:[%s0 + $0x74] sm:$0xf]
  %v42 = vld [vmem:[%s0 + $0x78] sm:$0xf]
  %v43 = vld [vmem:[%s0 + $0x7c] sm:$0xf]
  %v44 = vld [vmem:[%s0 + $0x80] sm:$0xf]
  %v45 = vld [vmem:[%s0 + $0x84] sm:$0xf]
  %v46 = vld [vmem:[%s0 + $0x88] sm:$0xf]
  %v47 = vld [vmem:[%s0 + $0x8c] sm:$0xf]
  %v48 = vld [vmem:[%s0 + $0x90] sm:$0xf]
  %v49 = vld [vmem:[%s0 + $0x94] sm:$0xf]
  %v50 = vld [vmem:[%s0 + $0x98] sm:$0xf]
  %v51 = vld [vmem:[%s0 + $0x9c] sm:$0xf]
  %v52 = vld [vmem:[%s0 + $0xa0] sm:$0xf]
  %v53 = vld [vmem:[%s0 + $0xa4] sm:$0xf]
  %v54 = vld [vmem:[%s0 + $0xa8] sm:$0xf]
  %v55 = vld [vmem:[%s0 + $0xac] sm:$0xf]
  %v56 = vld [vmem:[%s0 + $0xb0] sm:$0xf]
  %v57 = vld [vmem:[%s0 + $0xb4] sm:$0xf]
  %v58 = vld [vmem:[%s0 + $0xb8] sm:$0xf]
  %v59 = vld [vmem:[%s0 + $0xbc] sm:$0xf]
  %v60 = vld [vmem:[%s0 + $0xc0] sm:$0xf]
  %v61 = vld [vmem:[%s0 + $0xc4] sm:$0xf]
  %v62 = vld [vmem:[%s0 + $0xc8] sm:$0xf]
  %v63 = vld [vmem:[%s0 + $0xcc] sm:$0xf]
  %v64 = vld [vmem:[%s0 + $0xd0] sm:$0xf]
  %v65 = vld [vmem:[%s0 + $0xd4] sm:$0xf]
  %v66 = vld [vmem:[%s0 + $0xd8] sm:$0xf]
  %v67 = vld [vmem:[%s0 + $0xdc] sm:$0xf]
  %v68 = vld [vmem:[%s0 + $0xe0] sm:$0xf]
  %v69 = vld [vmem:[%s0 + $0xe4] sm:$0xf]
  %v70 = vld [vmem:[%s0 + $0xe8] sm:$0xf]
  %v71 = vld [vmem:[%s0 + $0xec] sm:$0xf]
  %v72 = vld [vmem:[%s0 + $0xf0] sm:$0xf]
  %v73 = vld [vmem:[%s0 + $0xf4] sm:$0xf]
  %v74 = vld [vmem:[%s0 + $0xf8] sm:$0xf]
  %v75 = vld [vmem:[%s0 + $0xfc] sm:$0xf]
  %v76 = vld [vmem:[%s1] sm:$0xf]
  %v77 = vld [vmem:[%s1 + $0x4] sm:$0xf]
  %v142 = vunpack.c.l.b16 %v12
  %v143 = vunpack.c.l.b16 %v13
  %v144 = vunpack.c.l.b16 %v14
  %v145 = vunpack.c.l.b16 %v15
  %v146 = vunpack.c.l.b16 %v16
  %v147 = vunpack.c.l.b16 %v17
  %v148 = vunpack.c.l.b16 %v18
  %v149 = vunpack.c.l.b16 %v19
  %v150 = vunpack.c.l.b16 %v20
  %v151 = vunpack.c.l.b16 %v21
  %v152 = vunpack.c.l.b16 %v22
  %v153 = vunpack.c.l.b16 %v23
  %v154 = vunpack.c.l.b16 %v24
  %v155 = vunpack.c.l.b16 %v25
  %v156 = vunpack.c.l.b16 %v26
  %v157 = vunpack.c.l.b16 %v27
  %v158 = vunpack.c.l.b16 %v28
  %v159 = vunpack.c.l.b16 %v29
  %v160 = vunpack.c.l.b16 %v30
  %v161 = vunpack.c.l.b16 %v31
  %v162 = vunpack.c.l.b16 %v32
  %v163 = vunpack.c.l.b16 %v33
  %v164 = vunpack.c.l.b16 %v34
  %v165 = vunpack.c.l.b16 %v35
  %v166 = vunpack.c.l.b16 %v36
  %v167 = vunpack.c.l.b16 %v37
  %v168 = vunpack.c.l.b16 %v38
  %v169 = vunpack.c.l.b16 %v39
  %v170 = vunpack.c.l.b16 %v40
  %v171 = vunpack.c.l.b16 %v41
  %v172 = vunpack.c.l.b16 %v42
  %v173 = vunpack.c.l.b16 %v43
  %v174 = vunpack.c.l.b16 %v44
  %v175 = vunpack.c.l.b16 %v45
  %v176 = vunpack.c.l.b16 %v46
  %v177 = vunpack.c.l.b16 %v47
  %v178 = vunpack.c.l.b16 %v48
  %v179 = vunpack.c.l.b16 %v49
  %v180 = vunpack.c.l.b16 %v50
  %v181 = vunpack.c.l.b16 %v51
  %v182 = vunpack.c.l.b16 %v52
  %v183 = vunpack.c.l.b16 %v53
  %v184 = vunpack.c.l.b16 %v54
  %v185 = vunpack.c.l.b16 %v55
  %v186 = vunpack.c.l.b16 %v56
  %v187 = vunpack.c.l.b16 %v57
  %v188 = vunpack.c.l.b16 %v58
  %v189 = vunpack.c.l.b16 %v59
  %v190 = vunpack.c.l.b16 %v60
  %v191 = vunpack.c.l.b16 %v61
  %v192 = vunpack.c.l.b16 %v62
  %v193 = vunpack.c.l.b16 %v63
  %v194 = vunpack.c.l.b16 %v64
  %v195 = vunpack.c.l.b16 %v65
  %v196 = vunpack.c.l.b16 %v66
  %v197 = vunpack.c.l.b16 %v67
  %v198 = vunpack.c.l.b16 %v68
  %v199 = vunpack.c.l.b16 %v69
  %v200 = vunpack.c.l.b16 %v70
  %v201 = vunpack.c.l.b16 %v71
  %v202 = vunpack.c.l.b16 %v72
  %v203 = vunpack.c.l.b16 %v73
  %v204 = vunpack.c.l.b16 %v74
  %v205 = vunpack.c.l.b16 %v75
  %v206 = vpack.c.b16 %v143, %v142
  %v207 = vpack.c.b16 %v145, %v144
  %v208 = vpack.c.b16 %v147, %v146
  %v209 = vpack.c.b16 %v149, %v148
  %v210 = vpack.c.b16 %v151, %v150
  %v211 = vpack.c.b16 %v153, %v152
  %v212 = vpack.c.b16 %v155, %v154
  %v213 = vpack.c.b16 %v157, %v156
  %v214 = vpack.c.b16 %v159, %v158
  %v215 = vpack.c.b16 %v161, %v160
  %v216 = vpack.c.b16 %v163, %v162
  %v217 = vpack.c.b16 %v165, %v164
  %v218 = vpack.c.b16 %v167, %v166
  %v219 = vpack.c.b16 %v169, %v168
  %v220 = vpack.c.b16 %v171, %v170
  %v221 = vpack.c.b16 %v173, %v172
  %v222 = vpack.c.b16 %v175, %v174
  %v223 = vpack.c.b16 %v177, %v176
  %v224 = vpack.c.b16 %v179, %v178
  %v225 = vpack.c.b16 %v181, %v180
  %v226 = vpack.c.b16 %v183, %v182
  %v227 = vpack.c.b16 %v185, %v184
  %v228 = vpack.c.b16 %v187, %v186
  %v229 = vpack.c.b16 %v189, %v188
  %v230 = vpack.c.b16 %v191, %v190
  %v231 = vpack.c.b16 %v193, %v192
  %v232 = vpack.c.b16 %v195, %v194
  %v233 = vpack.c.b16 %v197, %v196
  %v234 = vpack.c.b16 %v199, %v198
  %v235 = vpack.c.b16 %v201, %v200
  %v236 = vpack.c.b16 %v203, %v202
  %v237 = vpack.c.b16 %v205, %v204
  %v240 = vunpack.c.l.b16 %v76
  %v241 = vunpack.c.l.b16 %v77
  %v242 = vpack.c.b16 %v241, %v240
  %vm244 = vcmask 130048
  %v246 = vsel %vm244, %v206, 0
  %v249 = vsel %vm244, %v207, 0
  %v252 = vsel %vm244, %v208, 0
  %v255 = vsel %vm244, %v209, 0
  %v258 = vsel %vm244, %v210, 0
  %v261 = vsel %vm244, %v211, 0
  %v264 = vsel %vm244, %v212, 0
  %v267 = vsel %vm244, %v213, 0
  %v270 = vsel %vm244, %v214, 0
  %v273 = vsel %vm244, %v215, 0
  %v276 = vsel %vm244, %v216, 0
  %v279 = vsel %vm244, %v217, 0
  %v282 = vsel %vm244, %v218, 0
  %v285 = vsel %vm244, %v219, 0
  %v288 = vsel %vm244, %v220, 0
  %v291 = vsel %vm244, %v221, 0
  %v294 = vsel %vm244, %v222, 0
  %v297 = vsel %vm244, %v223, 0
  %v300 = vsel %vm244, %v224, 0
  %v303 = vsel %vm244, %v225, 0
  %v306 = vsel %vm244, %v226, 0
  %v309 = vsel %vm244, %v227, 0
  %v312 = vsel %vm244, %v228, 0
  %v315 = vsel %vm244, %v229, 0
  %v318 = vsel %vm244, %v230, 0
  %v321 = vsel %vm244, %v231, 0
  %v324 = vsel %vm244, %v232, 0
  %v327 = vsel %vm244, %v233, 0
  %v330 = vsel %vm244, %v234, 0
  %v333 = vsel %vm244, %v235, 0
  %v336 = vsel %vm244, %v236, 0
  %v339 = vsel %vm244, %v237, 0
  %341 = vmatpush.bf16.msra.mxu0 0
  %342 = vmatpush.bf16.msra.mxu0 0
  %343 = vmatpush.bf16.msra.mxu0 0
  %344 = vmatpush.bf16.msra.mxu0 0
  %345 = vmatpush.bf16.msra.mxu0 0
  %346 = vmatpush.bf16.msra.mxu0 0
  %347 = vmatpush.bf16.msra.mxu0 0
  %348 = vmatpush.bf16.msra.mxu0 %v242
  %349 = vmatmul.bf16.gmra.mxu0 %v246
  %v350 = vpop.f32.mrf.mxu0
  %v351 = vadd.f32 0.0, %v350
  %v352 = vpop.f32.mrf.mxu0
  %v353 = vadd.f32 0.0, %v352
  %354 = vmatmul.bf16.gmra.mxu0 %v249
  %v355 = vpop.f32.mrf.mxu0
  %v356 = vadd.f32 0.0, %v355
  %v357 = vpop.f32.mrf.mxu0
  %v358 = vadd.f32 0.0, %v357
  %359 = vmatmul.bf16.gmra.mxu0 %v252
  %v360 = vpop.f32.mrf.mxu0
  %v361 = vadd.f32 0.0, %v360
  %v362 = vpop.f32.mrf.mxu0
  %v363 = vadd.f32 0.0, %v362
  %364 = vmatmul.bf16.gmra.mxu0 %v255
  %v365 = vpop.f32.mrf.mxu0
  %v366 = vadd.f32 0.0, %v365
  %v367 = vpop.f32.mrf.mxu0
  %v368 = vadd.f32 0.0, %v367
  %369 = vmatmul.bf16.gmra.mxu0 %v258
  %v370 = vpop.f32.mrf.mxu0
  %v371 = vadd.f32 0.0, %v370
  %v372 = vpop.f32.mrf.mxu0
  %v373 = vadd.f32 0.0, %v372
  %374 = vmatmul.bf16.gmra.mxu0 %v261
  %v375 = vpop.f32.mrf.mxu0
  %v376 = vadd.f32 0.0, %v375
  %v377 = vpop.f32.mrf.mxu0
  %v378 = vadd.f32 0.0, %v377
  %379 = vmatmul.bf16.gmra.mxu0 %v264
  %v380 = vpop.f32.mrf.mxu0
  %v381 = vadd.f32 0.0, %v380
  %v382 = vpop.f32.mrf.mxu0
  %v383 = vadd.f32 0.0, %v382
  %384 = vmatmul.bf16.gmra.mxu0 %v267
  %v385 = vpop.f32.mrf.mxu0
  %v386 = vadd.f32 0.0, %v385
  %v387 = vpop.f32.mrf.mxu0
  %v388 = vadd.f32 0.0, %v387
  %389 = vmatmul.bf16.gmra.mxu0 %v270
  %v390 = vpop.f32.mrf.mxu0
  %v391 = vadd.f32 0.0, %v390
  %v392 = vpop.f32.mrf.mxu0
  %v393 = vadd.f32 0.0, %v392
  %394 = vmatmul.bf16.gmra.mxu0 %v273
  %v395 = vpop.f32.mrf.mxu0
  %v396 = vadd.f32 0.0, %v395
  %v397 = vpop.f32.mrf.mxu0
  %v398 = vadd.f32 0.0, %v397
  %399 = vmatmul.bf16.gmra.mxu0 %v276
  %v400 = vpop.f32.mrf.mxu0
  %v401 = vadd.f32 0.0, %v400
  %v402 = vpop.f32.mrf.mxu0
  %v403 = vadd.f32 0.0, %v402
  %404 = vmatmul.bf16.gmra.mxu0 %v279
  %v405 = vpop.f32.mrf.mxu0
  %v406 = vadd.f32 0.0, %v405
  %v407 = vpop.f32.mrf.mxu0
  %v408 = vadd.f32 0.0, %v407
  %409 = vmatmul.bf16.gmra.mxu0 %v282
  %v410 = vpop.f32.mrf.mxu0
  %v411 = vadd.f32 0.0, %v410
  %v412 = vpop.f32.mrf.mxu0
  %v413 = vadd.f32 0.0, %v412
  %414 = vmatmul.bf16.gmra.mxu0 %v285
  %v415 = vpop.f32.mrf.mxu0
  %v416 = vadd.f32 0.0, %v415
  %v417 = vpop.f32.mrf.mxu0
  %v418 = vadd.f32 0.0, %v417
  %419 = vmatmul.bf16.gmra.mxu0 %v288
  %v420 = vpop.f32.mrf.mxu0
  %v421 = vadd.f32 0.0, %v420
  %v422 = vpop.f32.mrf.mxu0
  %v423 = vadd.f32 0.0, %v422
  %424 = vmatmul.bf16.gmra.mxu0 %v291
  %v425 = vpop.f32.mrf.mxu0
  %v426 = vadd.f32 0.0, %v425
  %v427 = vpop.f32.mrf.mxu0
  %v428 = vadd.f32 0.0, %v427
  %429 = vmatmul.bf16.gmra.mxu0 %v294
  %v430 = vpop.f32.mrf.mxu0
  %v431 = vadd.f32 0.0, %v430
  %v432 = vpop.f32.mrf.mxu0
  %v433 = vadd.f32 0.0, %v432
  %434 = vmatmul.bf16.gmra.mxu0 %v297
  %v435 = vpop.f32.mrf.mxu0
  %v436 = vadd.f32 0.0, %v435
  %v437 = vpop.f32.mrf.mxu0
  %v438 = vadd.f32 0.0, %v437
  %439 = vmatmul.bf16.gmra.mxu0 %v300
  %v440 = vpop.f32.mrf.mxu0
  %v441 = vadd.f32 0.0, %v440
  %v442 = vpop.f32.mrf.mxu0
  %v443 = vadd.f32 0.0, %v442
  %444 = vmatmul.bf16.gmra.mxu0 %v303
  %v445 = vpop.f32.mrf.mxu0
  %v446 = vadd.f32 0.0, %v445
  %v447 = vpop.f32.mrf.mxu0
  %v448 = vadd.f32 0.0, %v447
  %449 = vmatmul.bf16.gmra.mxu0 %v306
  %v450 = vpop.f32.mrf.mxu0
  %v451 = vadd.f32 0.0, %v450
  %v452 = vpop.f32.mrf.mxu0
  %v453 = vadd.f32 0.0, %v452
  %454 = vmatmul.bf16.gmra.mxu0 %v309
  %v455 = vpop.f32.mrf.mxu0
  %v456 = vadd.f32 0.0, %v455
  %v457 = vpop.f32.mrf.mxu0
  %v458 = vadd.f32 0.0, %v457
  %459 = vmatmul.bf16.gmra.mxu0 %v312
  %v460 = vpop.f32.mrf.mxu0
  %v461 = vadd.f32 0.0, %v460
  %v462 = vpop.f32.mrf.mxu0
  %v463 = vadd.f32 0.0, %v462
  %464 = vmatmul.bf16.gmra.mxu0 %v315
  %v465 = vpop.f32.mrf.mxu0
  %v466 = vadd.f32 0.0, %v465
  %v467 = vpop.f32.mrf.mxu0
  %v468 = vadd.f32 0.0, %v467
  %469 = vmatmul.bf16.gmra.mxu0 %v318
  %v470 = vpop.f32.mrf.mxu0
  %v471 = vadd.f32 0.0, %v470
  %v472 = vpop.f32.mrf.mxu0
  %v473 = vadd.f32 0.0, %v472
  %474 = vmatmul.bf16.gmra.mxu0 %v321
  %v475 = vpop.f32.mrf.mxu0
  %v476 = vadd.f32 0.0, %v475
  %v477 = vpop.f32.mrf.mxu0
  %v478 = vadd.f32 0.0, %v477
  %479 = vmatmul.bf16.gmra.mxu0 %v324
  %v480 = vpop.f32.mrf.mxu0
  %v481 = vadd.f32 0.0, %v480
  %v482 = vpop.f32.mrf.mxu0
  %v483 = vadd.f32 0.0, %v482
  %484 = vmatmul.bf16.gmra.mxu0 %v327
  %v485 = vpop.f32.mrf.mxu0
  %v486 = vadd.f32 0.0, %v485
  %v487 = vpop.f32.mrf.mxu0
  %v488 = vadd.f32 0.0, %v487
  %489 = vmatmul.bf16.gmra.mxu0 %v330
  %v490 = vpop.f32.mrf.mxu0
  %v491 = vadd.f32 0.0, %v490
  %v492 = vpop.f32.mrf.mxu0
  %v493 = vadd.f32 0.0, %v492
  %494 = vmatmul.bf16.gmra.mxu0 %v333
  %v495 = vpop.f32.mrf.mxu0
  %v496 = vadd.f32 0.0, %v495
  %v497 = vpop.f32.mrf.mxu0
  %v498 = vadd.f32 0.0, %v497
  %499 = vmatmul.bf16.gmra.mxu0 %v336
  %v500 = vpop.f32.mrf.mxu0
  %v501 = vadd.f32 0.0, %v500
  %v502 = vpop.f32.mrf.mxu0
  %v503 = vadd.f32 0.0, %v502
  %504 = vmatmul.bf16.gmra.mxu0 %v339
  %v505 = vpop.f32.mrf.mxu0
  %v506 = vadd.f32 0.0, %v505
  %v507 = vpop.f32.mrf.mxu0
  %v508 = vadd.f32 0.0, %v507
  %509 = vdwg.mxu0
  %510 = vst [vmem:[%s2] sm:$0xff] %v351
  %511 = vst [vmem:[%s2 + $0x8] sm:$0xff] %v353
  %512 = vst [vmem:[%s2 + $0x10] sm:$0xff] %v356
  %513 = vst [vmem:[%s2 + $0x18] sm:$0xff] %v358
  %514 = vst [vmem:[%s2 + $0x20] sm:$0xff] %v361
  %515 = vst [vmem:[%s2 + $0x28] sm:$0xff] %v363
  %516 = vst [vmem:[%s2 + $0x30] sm:$0xff] %v366
  %517 = vst [vmem:[%s2 + $0x38] sm:$0xff] %v368
  %518 = vst [vmem:[%s2 + $0x40] sm:$0xff] %v371
  %519 = vst [vmem:[%s2 + $0x48] sm:$0xff] %v373
  %520 = vst [vmem:[%s2 + $0x50] sm:$0xff] %v376
  %521 = vst [vmem:[%s2 + $0x58] sm:$0xff] %v378
  %522 = vst [vmem:[%s2 + $0x60] sm:$0xff] %v381
  %523 = vst [vmem:[%s2 + $0x68] sm:$0xff] %v383
  %524 = vst [vmem:[%s2 + $0x70] sm:$0xff] %v386
  %525 = vst [vmem:[%s2 + $0x78] sm:$0xff] %v388
  %526 = vst [vmem:[%s2 + $0x80] sm:$0xff] %v391
  %527 = vst [vmem:[%s2 + $0x88] sm:$0xff] %v393
  %528 = vst [vmem:[%s2 + $0x90] sm:$0xff] %v396
  %529 = vst [vmem:[%s2 + $0x98] sm:$0xff] %v398
  %530 = vst [vmem:[%s2 + $0xa0] sm:$0xff] %v401
  %531 = vst [vmem:[%s2 + $0xa8] sm:$0xff] %v403
  %532 = vst [vmem:[%s2 + $0xb0] sm:$0xff] %v406
  %533 = vst [vmem:[%s2 + $0xb8] sm:$0xff] %v408
  %534 = vst [vmem:[%s2 + $0xc0] sm:$0xff] %v411
  %535 = vst [vmem:[%s2 + $0xc8] sm:$0xff] %v413
  %536 = vst [vmem:[%s2 + $0xd0] sm:$0xff] %v416
  %537 = vst [vmem:[%s2 + $0xd8] sm:$0xff] %v418
  %538 = vst [vmem:[%s2 + $0xe0] sm:$0xff] %v421
  %539 = vst [vmem:[%s2 + $0xe8] sm:$0xff] %v423
  %540 = vst [vmem:[%s2 + $0xf0] sm:$0xff] %v426
  %541 = vst [vmem:[%s2 + $0xf8] sm:$0xff] %v428
  %542 = vst [vmem:[%s2 + $0x100] sm:$0xff] %v431
  %543 = vst [vmem:[%s2 + $0x108] sm:$0xff] %v433
  %544 = vst [vmem:[%s2 + $0x110] sm:$0xff] %v436
  %545 = vst [vmem:[%s2 + $0x118] sm:$0xff] %v438
  %546 = vst [vmem:[%s2 + $0x120] sm:$0xff] %v441
  %547 = vst [vmem:[%s2 + $0x128] sm:$0xff] %v443
  %548 = vst [vmem:[%s2 + $0x130] sm:$0xff] %v446
  %549 = vst [vmem:[%s2 + $0x138] sm:$0xff] %v448
  %550 = vst [vmem:[%s2 + $0x140] sm:$0xff] %v451
  %551 = vst [vmem:[%s2 + $0x148] sm:$0xff] %v453
  %552 = vst [vmem:[%s2 + $0x150] sm:$0xff] %v456
  %553 = vst [vmem:[%s2 + $0x158] sm:$0xff] %v458
  %554 = vst [vmem:[%s2 + $0x160] sm:$0xff] %v461
  %555 = vst [vmem:[%s2 + $0x168] sm:$0xff] %v463
  %556 = vst [vmem:[%s2 + $0x170] sm:$0xff] %v466
  %557 = vst [vmem:[%s2 + $0x178] sm:$0xff] %v468
  %558 = vst [vmem:[%s2 + $0x180] sm:$0xff] %v471
  %559 = vst [vmem:[%s2 + $0x188] sm:$0xff] %v473
  %560 = vst [vmem:[%s2 + $0x190] sm:$0xff] %v476
  %561 = vst [vmem:[%s2 + $0x198] sm:$0xff] %v478
  %562 = vst [vmem:[%s2 + $0x1a0] sm:$0xff] %v481
  %563 = vst [vmem:[%s2 + $0x1a8] sm:$0xff] %v483
  %564 = vst [vmem:[%s2 + $0x1b0] sm:$0xff] %v486
  %565 = vst [vmem:[%s2 + $0x1b8] sm:$0xff] %v488
  %566 = vst [vmem:[%s2 + $0x1c0] sm:$0xff] %v491
  %567 = vst [vmem:[%s2 + $0x1c8] sm:$0xff] %v493
  %568 = vst [vmem:[%s2 + $0x1d0] sm:$0xff] %v496
  %569 = vst [vmem:[%s2 + $0x1d8] sm:$0xff] %v498
  %570 = vst [vmem:[%s2 + $0x1e0] sm:$0xff] %v501
  %571 = vst [vmem:[%s2 + $0x1e8] sm:$0xff] %v503
  %572 = vst [vmem:[%s2 + $0x1f0] sm:$0xff] %v506
  %573 = vst [vmem:[%s2 + $0x1f8] sm:$0xff] %v508
  // Predicated region
  $region10: #{generator_forward.15} parent=0 // pred_check
    _
  $region11: #{generator_forward.15} parent=0 // pred_check_branch
    %575 = sbr.rel (0) target = $region13
  $region12: #{generator_forward.15} parent=0 // pred_region
    _
  $region13: #{generator_forward.15} parent=0 // pred_fallthru
    _
  // Predicated region
  $region14: #{generator_forward.15} parent=0 // pred_check
    _
  $region15: #{generator_forward.15} parent=0 // pred_check_branch
    %577 = sbr.rel (0) target = $region17
  $region16: #{generator_forward.15} parent=0 // pred_region
    _
  $region17: #{generator_forward.15} parent=0 // pred_fallthru
    _

// kernel: generator_forward.17
$region0: #{generator_forward.17}
  #allocation0 [shape = 'u32[]', space=smem, size = 0x4, offset = 0x4, fixed_abs, tag = 'smem constant byte address 0x4 - core index']
  #allocation1 [shape = 'u32[72,128]{1,0:T(1,128)}', space=vmem, size = 0x9000, scoped, tag = 'internal scratch']
  %s0 = inlined_call_operand.vmem [shape: bf16[2048,8], index: 0, kind: input, shape index: {}]
  %s1 = inlined_call_operand.vmem [shape: bf16[8,48], index: 1, kind: input, shape index: {}]
  %s2 = inlined_call_operand.vmem [shape: f32[2048,48], index: 2, kind: output, shape index: {}]
  %s3 = sld [smem:[#allocation0]]
  $region41: #{generator_forward.17} parent=0
    _
  %s5 = ssub.s32 1, %s3
  %s6 = scalar_select 0, %s5, %s3
  loop: start=0, step=1, limit=6
  $region2: #{generator_forward.17} parent=0 // loop_pre_header
    _
  $region3: #{generator_forward.17} parent=0 // loop_header
    %s8 = sphi 0, %s12
    %p9 = scmp.ge.s32.totalorder %s8, 6
    %s18 = sphi 0, %s20
    %s21 = sphi 0, %s18
    %s22 = sphi 0, %s21
    %s38 = sphi 0, %s22
    %s42 = sphi 0, %s42
    %s44 = sphi 0, %s42
    %s45 = sphi 0, %s44
    %s59 = sphi 0, %s45
    %s65 = sphi 0, %s67
    %s68 = sphi 0, %s65
    %s69 = sphi 0, %s68
    %s85 = sphi 0, %s69
  $region4: #{generator_forward.17} parent=0 // loop_header_branch
    %11 = sbr.rel (%p9) target = $region8
  $region5: #{generator_forward.17} parent=0 // loop_body
    %s13 = ssub.s32 %s8, 1
    %s14 = ssub.s32 %s8, 2
    %s15 = sadd.s32 %s8, 1
    %s16 = ssub.s32 %s8, %s15
    %p17 = scmp.eq.s32.totalorder %s16, 0
    %s19 = sadd.s32 %s18, 1
    %s20 = scalar_select %p17, %s18, %s19
    %p23 = pneg %p17
    %p24 = scmp.eq.s32.totalorder %s8, 3
    %p25 = por %p23, %p24
    %p26 = scmp.ne.s32.totalorder %s18, %s21
    %p27 = scmp.eq.s32.totalorder %s8, 0
    %p28 = por %p26, %p27
    %p29 = scmp.ne.s32.totalorder %s18, %s21
    %p30 = scmp.eq.s32.totalorder %s13, 3
    %p31 = por %p29, %p30
    %p32 = scmp.ne.s32.totalorder %s21, %s22
    %p33 = scmp.eq.s32.totalorder %s13, 0
    %p34 = por %p32, %p33
    %p35 = scmp.ne.s32.totalorder %s21, %s22
    %p36 = scmp.eq.s32.totalorder %s14, 3
    %p37 = por %p35, %p36
    %p39 = scmp.ne.s32.totalorder %s22, %s38
    %p40 = scmp.eq.s32.totalorder %s14, 0
    %p41 = por %p39, %p40
    %s43 = sadd.s32 %s42, 1
    %p46 = scmp.eq.s32.totalorder %s8, 3
    %p47 = scmp.ne.s32.totalorder %s42, %s44
    %p48 = scmp.eq.s32.totalorder %s8, 0
    %p49 = por %p47, %p48
    %p50 = scmp.ne.s32.totalorder %s42, %s44
    %p51 = scmp.eq.s32.totalorder %s13, 3
    %p52 = por %p50, %p51
    %p53 = scmp.ne.s32.totalorder %s44, %s45
    %p54 = scmp.eq.s32.totalorder %s13, 0
    %p55 = por %p53, %p54
    %p56 = scmp.ne.s32.totalorder %s44, %s45
    %p57 = scmp.eq.s32.totalorder %s14, 3
    %p58 = por %p56, %p57
    %p60 = scmp.ne.s32.totalorder %s45, %s59
    %p61 = scmp.eq.s32.totalorder %s14, 0
    %p62 = por %p60, %p61
    %s63 = ssub.s32 %s8, %s15
    %p64 = scmp.eq.s32.totalorder %s63, 0
    %s66 = sadd.s32 %s65, 1
    %s67 = scalar_select %p64, %s65, %s66
    %p70 = pneg %p64
    %p71 = scmp.eq.s32.totalorder %s8, 3
    %p72 = por %p70, %p71
    %p73 = scmp.ne.s32.totalorder %s65, %s68
    %p74 = scmp.eq.s32.totalorder %s8, 0
    %p75 = por %p73, %p74
    %p76 = scmp.ne.s32.totalorder %s65, %s68
    %p77 = scmp.eq.s32.totalorder %s13, 3
    %p78 = por %p76, %p77
    %p79 = scmp.ne.s32.totalorder %s68, %s69
    %p80 = scmp.eq.s32.totalorder %s13, 0
    %p81 = por %p79, %p80
    %p82 = scmp.ne.s32.totalorder %s68, %s69
    %p83 = scmp.eq.s32.totalorder %s14, 3
    %p84 = por %p82, %p83
    %p86 = scmp.ne.s32.totalorder %s69, %s85
    %p87 = scmp.eq.s32.totalorder %s14, 0
    %p88 = por %p86, %p87
    %p89 = scmp.le.s32.totalorder 1, %s8
    %p90 = scmp.lt.s32.totalorder %s8, 5
    %p91 = pnand %p89, %p90
    %p92 = pneg %p91
    // Predicated region
    $region9: #{generator_forward.17} parent=5 // pred_check
      _
    $region10: #{generator_forward.17} parent=5 // pred_check_branch
      %94 = sbr.rel (%p91) target = $region12
    $region11: #{generator_forward.17} parent=5 // pred_region
      %s95 = ssub.s32 %s8, 1
      // Predicated region
      $region13: #{generator_forward.17} parent=11 // pred_check
        %p96 = pneg %p55
      $region14: #{generator_forward.17} parent=11 // pred_check_branch
        %98 = sbr.rel (%p96) target = $region16
      $region15: #{generator_forward.17} parent=11 // pred_region
        _
      $region16: #{generator_forward.17} parent=11 // pred_fallthru
        _
    $region12: #{generator_forward.17} parent=5 // pred_fallthru
      _
    %p99 = scmp.lt.s32.totalorder %s8, 4
    // Predicated region
    $region17: #{generator_forward.17} parent=5 // pred_check
      %p100 = pneg %p99
    $region18: #{generator_forward.17} parent=5 // pred_check_branch
      %102 = sbr.rel (%p100) target = $region20
    $region19: #{generator_forward.17} parent=5 // pred_region
      // Predicated region
      $region21: #{generator_forward.17} parent=19 // pred_check
        %p103 = pneg %p28
      $region22: #{generator_forward.17} parent=19 // pred_check_branch
        %105 = sbr.rel (%p103) target = $region24
      $region23: #{generator_forward.17} parent=19 // pred_region
        %s106 = smul.u32 64, %s8
        %p107 = scmp.lt.s32.totalorder %s106, 255
        %s108 = scalar_select %p107, %s106, 255
        %s109 = smul.addr %s108, 4
        %s110 = scalar_lea.vmem %s0, %s109
        %s111 = smul.u32 64, %s8
      $region24: #{generator_forward.17} parent=19 // pred_fallthru
        _
    $region20: #{generator_forward.17} parent=5 // pred_fallthru
      _
    %p112 = scmp.le.s32.totalorder 1, %s8
    %p113 = scmp.lt.s32.totalorder %s8, 5
    %p114 = pnand %p112, %p113
    %p115 = pneg %p114
    // Predicated region
    $region25: #{generator_forward.17} parent=5 // pred_check
      _
    $region26: #{generator_forward.17} parent=5 // pred_check_branch
      %117 = sbr.rel (%p114) target = $region28
    $region27: #{generator_forward.17} parent=5 // pred_region
      %s118 = ssub.s32 %s8, 1
      %s119 = smul.u32 64, %s13
      %p120 = scmp.lt.s32.totalorder %s119, 255
      %s121 = scalar_select %p120, %s119, 255
      %s122 = smul.addr %s121, 4
      %s123 = scalar_lea.vmem %s0, %s122
      %p124 = pneg %p34
      %p125 = pneg %p31
      %p126 = pneg %p55
      %p127 = pneg %p52
      %p128 = pneg %p81
      %p129 = pneg %p78
      %s130 = smul.u32 64, %s13
      %p131 = scmp.lt.s32.totalorder %s130, 255
      %s132 = scalar_select %p131, %s130, 255
      %s133 = smul.addr %s132, 8
      %s134 = scalar_lea.vmem %s2, %s133
      %s135 = smul.u32 64, %s13
      %p136 = scmp.lt.s32.totalorder %s135, 255
      %s137 = scalar_select %p136, %s135, 255
      %s138 = smul.addr %s137, 4
      %s139 = scalar_lea.vmem %s0, %s138
      %s140 = smul.u32 64, %s13
      %s141 = smul.u32 64, %s13
      %p142 = scmp.lt.s32.totalorder %s141, 255
      %s143 = scalar_select %p142, %s141, 255
      %s144 = smul.addr %s143, 8
      %s145 = scalar_lea.vmem %s2, %s144
      %s146 = smul.u32 64, %s13
      %v148 = vld [vmem:[%s139] sm:$0xf]
      %v149 = vld [vmem:[%s139 + $0x4] sm:$0xf]
      %v150 = vld [vmem:[%s139 + $0x8] sm:$0xf]
      %v151 = vld [vmem:[%s139 + $0xc] sm:$0xf]
      %v152 = vld [vmem:[%s139 + $0x10] sm:$0xf]
      %v153 = vld [vmem:[%s139 + $0x14] sm:$0xf]
      %v154 = vld [vmem:[%s139 + $0x18] sm:$0xf]
      %v155 = vld [vmem:[%s139 + $0x1c] sm:$0xf]
      %v156 = vld [vmem:[%s139 + $0x20] sm:$0xf]
      %v157 = vld [vmem:[%s139 + $0x24] sm:$0xf]
      %v158 = vld [vmem:[%s139 + $0x28] sm:$0xf]
      %v159 = vld [vmem:[%s139 + $0x2c] sm:$0xf]
      %v160 = vld [vmem:[%s139 + $0x30] sm:$0xf]
      %v161 = vld [vmem:[%s139 + $0x34] sm:$0xf]
      %v162 = vld [vmem:[%s139 + $0x38] sm:$0xf]
      %v163 = vld [vmem:[%s139 + $0x3c] sm:$0xf]
      %v164 = vld [vmem:[%s139 + $0x40] sm:$0xf]
      %v165 = vld [vmem:[%s139 + $0x44] sm:$0xf]
      %v166 = vld [vmem:[%s139 + $0x48] sm:$0xf]
      %v167 = vld [vmem:[%s139 + $0x4c] sm:$0xf]
      %v168 = vld [vmem:[%s139 + $0x50] sm:$0xf]
      %v169 = vld [vmem:[%s139 + $0x54] sm:$0xf]
      %v170 = vld [vmem:[%s139 + $0x58] sm:$0xf]
      %v171 = vld [vmem:[%s139 + $0x5c] sm:$0xf]
      %v172 = vld [vmem:[%s139 + $0x60] sm:$0xf]
      %v173 = vld [vmem:[%s139 + $0x64] sm:$0xf]
      %v174 = vld [vmem:[%s139 + $0x68] sm:$0xf]
      %v175 = vld [vmem:[%s139 + $0x6c] sm:$0xf]
      %v176 = vld [vmem:[%s139 + $0x70] sm:$0xf]
      %v177 = vld [vmem:[%s139 + $0x74] sm:$0xf]
      %v178 = vld [vmem:[%s139 + $0x78] sm:$0xf]
      %v179 = vld [vmem:[%s139 + $0x7c] sm:$0xf]
      %v180 = vld [vmem:[%s139 + $0x80] sm:$0xf]
      %v181 = vld [vmem:[%s139 + $0x84] sm:$0xf]
      %v182 = vld [vmem:[%s139 + $0x88] sm:$0xf]
      %v183 = vld [vmem:[%s139 + $0x8c] sm:$0xf]
      %v184 = vld [vmem:[%s139 + $0x90] sm:$0xf]
      %v185 = vld [vmem:[%s139 + $0x94] sm:$0xf]
      %v186 = vld [vmem:[%s139 + $0x98] sm:$0xf]
      %v187 = vld [vmem:[%s139 + $0x9c] sm:$0xf]
      %v188 = vld [vmem:[%s139 + $0xa0] sm:$0xf]
      %v189 = vld [vmem:[%s139 + $0xa4] sm:$0xf]
      %v190 = vld [vmem:[%s139 + $0xa8] sm:$0xf]
      %v191 = vld [vmem:[%s139 + $0xac] sm:$0xf]
      %v192 = vld [vmem:[%s139 + $0xb0] sm:$0xf]
      %v193 = vld [vmem:[%s139 + $0xb4] sm:$0xf]
      %v194 = vld [vmem:[%s139 + $0xb8] sm:$0xf]
      %v195 = vld [vmem:[%s139 + $0xbc] sm:$0xf]
      %v196 = vld [vmem:[%s139 + $0xc0] sm:$0xf]
      %v197 = vld [vmem:[%s139 + $0xc4] sm:$0xf]
      %v198 = vld [vmem:[%s139 + $0xc8] sm:$0xf]
      %v199 = vld [vmem:[%s139 + $0xcc] sm:$0xf]
      %v200 = vld [vmem:[%s139 + $0xd0] sm:$0xf]
      %v201 = vld [vmem:[%s139 + $0xd4] sm:$0xf]
      %v202 = vld [vmem:[%s139 + $0xd8] sm:$0xf]
      %v203 = vld [vmem:[%s139 + $0xdc] sm:$0xf]
      %v204 = vld [vmem:[%s139 + $0xe0] sm:$0xf]
      %v205 = vld [vmem:[%s139 + $0xe4] sm:$0xf]
      %v206 = vld [vmem:[%s139 + $0xe8] sm:$0xf]
      %v207 = vld [vmem:[%s139 + $0xec] sm:$0xf]
      %v208 = vld [vmem:[%s139 + $0xf0] sm:$0xf]
      %v209 = vld [vmem:[%s139 + $0xf4] sm:$0xf]
      %v210 = vld [vmem:[%s139 + $0xf8] sm:$0xf]
      %v211 = vld [vmem:[%s139 + $0xfc] sm:$0xf]
      %v212 = vld [vmem:[%s1] sm:$0xf]
      %v277 = vunpack.c.l.b16 %v148
      %v278 = vunpack.c.l.b16 %v149
      %v279 = vunpack.c.l.b16 %v150
      %v280 = vunpack.c.l.b16 %v151
      %v281 = vunpack.c.l.b16 %v152
      %v282 = vunpack.c.l.b16 %v153
      %v283 = vunpack.c.l.b16 %v154
      %v284 = vunpack.c.l.b16 %v155
      %v285 = vunpack.c.l.b16 %v156
      %v286 = vunpack.c.l.b16 %v157
      %v287 = vunpack.c.l.b16 %v158
      %v288 = vunpack.c.l.b16 %v159
      %v289 = vunpack.c.l.b16 %v160
      %v290 = vunpack.c.l.b16 %v161
      %v291 = vunpack.c.l.b16 %v162
      %v292 = vunpack.c.l.b16 %v163
      %v293 = vunpack.c.l.b16 %v164
      %v294 = vunpack.c.l.b16 %v165
      %v295 = vunpack.c.l.b16 %v166
      %v296 = vunpack.c.l.b16 %v167
      %v297 = vunpack.c.l.b16 %v168
      %v298 = vunpack.c.l.b16 %v169
      %v299 = vunpack.c.l.b16 %v170
      %v300 = vunpack.c.l.b16 %v171
      %v301 = vunpack.c.l.b16 %v172
      %v302 = vunpack.c.l.b16 %v173
      %v303 = vunpack.c.l.b16 %v174
      %v304 = vunpack.c.l.b16 %v175
      %v305 = vunpack.c.l.b16 %v176
      %v306 = vunpack.c.l.b16 %v177
      %v307 = vunpack.c.l.b16 %v178
      %v308 = vunpack.c.l.b16 %v179
      %v309 = vunpack.c.l.b16 %v180
      %v310 = vunpack.c.l.b16 %v181
      %v311 = vunpack.c.l.b16 %v182
      %v312 = vunpack.c.l.b16 %v183
      %v313 = vunpack.c.l.b16 %v184
      %v314 = vunpack.c.l.b16 %v185
      %v315 = vunpack.c.l.b16 %v186
      %v316 = vunpack.c.l.b16 %v187
      %v317 = vunpack.c.l.b16 %v188
      %v318 = vunpack.c.l.b16 %v189
      %v319 = vunpack.c.l.b16 %v190
      %v320 = vunpack.c.l.b16 %v191
      %v321 = vunpack.c.l.b16 %v192
      %v322 = vunpack.c.l.b16 %v193
      %v323 = vunpack.c.l.b16 %v194
      %v324 = vunpack.c.l.b16 %v195
      %v325 = vunpack.c.l.b16 %v196
      %v326 = vunpack.c.l.b16 %v197
      %v327 = vunpack.c.l.b16 %v198
      %v328 = vunpack.c.l.b16 %v199
      %v329 = vunpack.c.l.b16 %v200
      %v330 = vunpack.c.l.b16 %v201
      %v331 = vunpack.c.l.b16 %v202
      %v332 = vunpack.c.l.b16 %v203
      %v333 = vunpack.c.l.b16 %v204
      %v334 = vunpack.c.l.b16 %v205
      %v335 = vunpack.c.l.b16 %v206
      %v336 = vunpack.c.l.b16 %v207
      %v337 = vunpack.c.l.b16 %v208
      %v338 = vunpack.c.l.b16 %v209
      %v339 = vunpack.c.l.b16 %v210
      %v340 = vunpack.c.l.b16 %v211
      %v341 = vpack.c.b16 %v278, %v277
      %v342 = vpack.c.b16 %v280, %v279
      %v343 = vpack.c.b16 %v282, %v281
      %v344 = vpack.c.b16 %v284, %v283
      %v345 = vpack.c.b16 %v286, %v285
      %v346 = vpack.c.b16 %v288, %v287
      %v347 = vpack.c.b16 %v290, %v289
      %v348 = vpack.c.b16 %v292, %v291
      %v349 = vpack.c.b16 %v294, %v293
      %v350 = vpack.c.b16 %v296, %v295
      %v351 = vpack.c.b16 %v298, %v297
      %v352 = vpack.c.b16 %v300, %v299
      %v353 = vpack.c.b16 %v302, %v301
      %v354 = vpack.c.b16 %v304, %v303
      %v355 = vpack.c.b16 %v306, %v305
      %v356 = vpack.c.b16 %v308, %v307
      %v357 = vpack.c.b16 %v310, %v309
      %v358 = vpack.c.b16 %v312, %v311
      %v359 = vpack.c.b16 %v314, %v313
      %v360 = vpack.c.b16 %v316, %v315
      %v361 = vpack.c.b16 %v318, %v317
      %v362 = vpack.c.b16 %v320, %v319
      %v363 = vpack.c.b16 %v322, %v321
      %v364 = vpack.c.b16 %v324, %v323
      %v365 = vpack.c.b16 %v326, %v325
      %v366 = vpack.c.b16 %v328, %v327
      %v367 = vpack.c.b16 %v330, %v329
      %v368 = vpack.c.b16 %v332, %v331
      %v369 = vpack.c.b16 %v334, %v333
      %v370 = vpack.c.b16 %v336, %v335
      %v371 = vpack.c.b16 %v338, %v337
      %v372 = vpack.c.b16 %v340, %v339
      %vm373 = vcmask 64512
      %v375 = vsel %vm373, %v341, 0
      %v378 = vsel %vm373, %v342, 0
      %v381 = vsel %vm373, %v343, 0
      %v384 = vsel %vm373, %v344, 0
      %v387 = vsel %vm373, %v345, 0
      %v390 = vsel %vm373, %v346, 0
      %v393 = vsel %vm373, %v347, 0
      %v396 = vsel %vm373, %v348, 0
      %v399 = vsel %vm373, %v349, 0
      %v402 = vsel %vm373, %v350, 0
      %v405 = vsel %vm373, %v351, 0
      %v408 = vsel %vm373, %v352, 0
      %v411 = vsel %vm373, %v353, 0
      %v414 = vsel %vm373, %v354, 0
      %v417 = vsel %vm373, %v355, 0
      %v420 = vsel %vm373, %v356, 0
      %v423 = vsel %vm373, %v357, 0
      %v426 = vsel %vm373, %v358, 0
      %v429 = vsel %vm373, %v359, 0
      %v432 = vsel %vm373, %v360, 0
      %v435 = vsel %vm373, %v361, 0
      %v438 = vsel %vm373, %v362, 0
      %v441 = vsel %vm373, %v363, 0
      %v444 = vsel %vm373, %v364, 0
      %v447 = vsel %vm373, %v365, 0
      %v450 = vsel %vm373, %v366, 0
      %v453 = vsel %vm373, %v367, 0
      %v456 = vsel %vm373, %v368, 0
      %v459 = vsel %vm373, %v369, 0
      %v462 = vsel %vm373, %v370, 0
      %v465 = vsel %vm373, %v371, 0
      %v468 = vsel %vm373, %v372, 0
      %vm470 = vcmask 1043456
      %v472 = vsel %vm470, %v212, 0
      %474 = vmatpush.bf16.msra.mxu0 0
      %475 = vmatpush.bf16.msra.mxu0 0
      %476 = vmatpush.bf16.msra.mxu0 0
      %477 = vmatpush.bf16.msra.mxu0 0
      %478 = vmatpush.bf16.msra.mxu0 0
      %479 = vmatpush.bf16.msra.mxu0 0
      %480 = vmatpush.bf16.msra.mxu0 0
      %481 = vmatpush.bf16.msra.mxu0 %v472
      %482 = vmatmul.bf16.gmra.mxu0 %v375
      %v483 = vpop.f32.mrf.mxu0
      %v484 = vadd.f32 0.0, %v483
      %v485 = vpop.f32.mrf.mxu0
      %v486 = vadd.f32 0.0, %v485
      %487 = vmatmul.bf16.gmra.mxu0 %v378
      %v488 = vpop.f32.mrf.mxu0
      %v489 = vadd.f32 0.0, %v488
      %v490 = vpop.f32.mrf.mxu0
      %v491 = vadd.f32 0.0, %v490
      %492 = vmatmul.bf16.gmra.mxu0 %v381
      %v493 = vpop.f32.mrf.mxu0
      %v494 = vadd.f32 0.0, %v493
      %v495 = vpop.f32.mrf.mxu0
      %v496 = vadd.f32 0.0, %v495
      %497 = vmatmul.bf16.gmra.mxu0 %v384
      %v498 = vpop.f32.mrf.mxu0
      %v499 = vadd.f32 0.0, %v498
      %v500 = vpop.f32.mrf.mxu0
      %v501 = vadd.f32 0.0, %v500
      %502 = vmatmul.bf16.gmra.mxu0 %v387
      %v503 = vpop.f32.mrf.mxu0
      %v504 = vadd.f32 0.0, %v503
      %v505 = vpop.f32.mrf.mxu0
      %v506 = vadd.f32 0.0, %v505
      %507 = vmatmul.bf16.gmra.mxu0 %v390
      %v508 = vpop.f32.mrf.mxu0
      %v509 = vadd.f32 0.0, %v508
      %v510 = vpop.f32.mrf.mxu0
      %v511 = vadd.f32 0.0, %v510
      %512 = vmatmul.bf16.gmra.mxu0 %v393
      %v513 = vpop.f32.mrf.mxu0
      %v514 = vadd.f32 0.0, %v513
      %v515 = vpop.f32.mrf.mxu0
      %v516 = vadd.f32 0.0, %v515
      %517 = vmatmul.bf16.gmra.mxu0 %v396
      %v518 = vpop.f32.mrf.mxu0
      %v519 = vadd.f32 0.0, %v518
      %v520 = vpop.f32.mrf.mxu0
      %v521 = vadd.f32 0.0, %v520
      %522 = vmatmul.bf16.gmra.mxu0 %v399
      %v523 = vpop.f32.mrf.mxu0
      %v524 = vadd.f32 0.0, %v523
      %v525 = vpop.f32.mrf.mxu0
      %v526 = vadd.f32 0.0, %v525
      %527 = vmatmul.bf16.gmra.mxu0 %v402
      %v528 = vpop.f32.mrf.mxu0
      %v529 = vadd.f32 0.0, %v528
      %v530 = vpop.f32.mrf.mxu0
      %v531 = vadd.f32 0.0, %v530
      %532 = vmatmul.bf16.gmra.mxu0 %v405
      %v533 = vpop.f32.mrf.mxu0
      %v534 = vadd.f32 0.0, %v533
      %v535 = vpop.f32.mrf.mxu0
      %v536 = vadd.f32 0.0, %v535
      %537 = vmatmul.bf16.gmra.mxu0 %v408
      %v538 = vpop.f32.mrf.mxu0
      %v539 = vadd.f32 0.0, %v538
      %v540 = vpop.f32.mrf.mxu0
      %v541 = vadd.f32 0.0, %v540
      %542 = vmatmul.bf16.gmra.mxu0 %v411
      %v543 = vpop.f32.mrf.mxu0
      %v544 = vadd.f32 0.0, %v543
      %v545 = vpop.f32.mrf.mxu0
      %v546 = vadd.f32 0.0, %v545
      %547 = vmatmul.bf16.gmra.mxu0 %v414
      %v548 = vpop.f32.mrf.mxu0
      %v549 = vadd.f32 0.0, %v548
      %v550 = vpop.f32.mrf.mxu0
      %v551 = vadd.f32 0.0, %v550
      %552 = vmatmul.bf16.gmra.mxu0 %v417
      %v553 = vpop.f32.mrf.mxu0
      %v554 = vadd.f32 0.0, %v553
      %v555 = vpop.f32.mrf.mxu0
      %v556 = vadd.f32 0.0, %v555
      %557 = vmatmul.bf16.gmra.mxu0 %v420
      %v558 = vpop.f32.mrf.mxu0
      %v559 = vadd.f32 0.0, %v558
      %v560 = vpop.f32.mrf.mxu0
      %v561 = vadd.f32 0.0, %v560
      %562 = vmatmul.bf16.gmra.mxu0 %v423
      %v563 = vpop.f32.mrf.mxu0
      %v564 = vadd.f32 0.0, %v563
      %v565 = vpop.f32.mrf.mxu0
      %v566 = vadd.f32 0.0, %v565
      %567 = vmatmul.bf16.gmra.mxu0 %v426
      %v568 = vpop.f32.mrf.mxu0
      %v569 = vadd.f32 0.0, %v568
      %v570 = vpop.f32.mrf.mxu0
      %v571 = vadd.f32 0.0, %v570
      %572 = vmatmul.bf16.gmra.mxu0 %v429
      %v573 = vpop.f32.mrf.mxu0
      %v574 = vadd.f32 0.0, %v573
      %v575 = vpop.f32.mrf.mxu0
      %v576 = vadd.f32 0.0, %v575
      %577 = vmatmul.bf16.gmra.mxu0 %v432
      %v578 = vpop.f32.mrf.mxu0
      %v579 = vadd.f32 0.0, %v578
      %v580 = vpop.f32.mrf.mxu0
      %v581 = vadd.f32 0.0, %v580
      %582 = vmatmul.bf16.gmra.mxu0 %v435
      %v583 = vpop.f32.mrf.mxu0
      %v584 = vadd.f32 0.0, %v583
      %v585 = vpop.f32.mrf.mxu0
      %v586 = vadd.f32 0.0, %v585
      %587 = vmatmul.bf16.gmra.mxu0 %v438
      %v588 = vpop.f32.mrf.mxu0
      %v589 = vadd.f32 0.0, %v588
      %v590 = vpop.f32.mrf.mxu0
      %v591 = vadd.f32 0.0, %v590
      %592 = vmatmul.bf16.gmra.mxu0 %v441
      %v593 = vpop.f32.mrf.mxu0
      %v594 = vadd.f32 0.0, %v593
      %v595 = vpop.f32.mrf.mxu0
      %v596 = vadd.f32 0.0, %v595
      %597 = vmatmul.bf16.gmra.mxu0 %v444
      %v598 = vpop.f32.mrf.mxu0
      %v599 = vadd.f32 0.0, %v598
      %v600 = vpop.f32.mrf.mxu0
      %v601 = vadd.f32 0.0, %v600
      %602 = vmatmul.bf16.gmra.mxu0 %v447
      %v603 = vpop.f32.mrf.mxu0
      %v604 = vadd.f32 0.0, %v603
      %v605 = vpop.f32.mrf.mxu0
      %v606 = vadd.f32 0.0, %v605
      %607 = vmatmul.bf16.gmra.mxu0 %v450
      %v608 = vpop.f32.mrf.mxu0
      %v609 = vadd.f32 0.0, %v608
      %v610 = vpop.f32.mrf.mxu0
      %v611 = vadd.f32 0.0, %v610
      %612 = vmatmul.bf16.gmra.mxu0 %v453
      %v613 = vpop.f32.mrf.mxu0
      %v614 = vadd.f32 0.0, %v613
      %v615 = vpop.f32.mrf.mxu0
      %v616 = vadd.f32 0.0, %v615
      %617 = vmatmul.bf16.gmra.mxu0 %v456
      %v618 = vpop.f32.mrf.mxu0
      %v619 = vadd.f32 0.0, %v618
      %v620 = vpop.f32.mrf.mxu0
      %v621 = vadd.f32 0.0, %v620
      %622 = vmatmul.bf16.gmra.mxu0 %v459
      %v623 = vpop.f32.mrf.mxu0
      %v624 = vadd.f32 0.0, %v623
      %v625 = vpop.f32.mrf.mxu0
      %v626 = vadd.f32 0.0, %v625
      %627 = vmatmul.bf16.gmra.mxu0 %v462
      %v628 = vpop.f32.mrf.mxu0
      %v629 = vadd.f32 0.0, %v628
      %v630 = vpop.f32.mrf.mxu0
      %v631 = vadd.f32 0.0, %v630
      %632 = vmatmul.bf16.gmra.mxu0 %v465
      %v633 = vpop.f32.mrf.mxu0
      %v634 = vadd.f32 0.0, %v633
      %v635 = vpop.f32.mrf.mxu0
      %v636 = vadd.f32 0.0, %v635
      %637 = vmatmul.bf16.gmra.mxu0 %v468
      %v638 = vpop.f32.mrf.mxu0
      %v639 = vadd.f32 0.0, %v638
      %v640 = vpop.f32.mrf.mxu0
      %v641 = vadd.f32 0.0, %v640
      %642 = vdwg.mxu0
      %vm643 = vcmask 392192
      %644 = vst.msk [vmem:[%s145] sm:$0xff] %vm643, %v484
      %645 = vst.msk [vmem:[%s145 + $0x8] sm:$0xff] %vm643, %v486
      %646 = vst.msk [vmem:[%s145 + $0x10] sm:$0xff] %vm643, %v489
      %647 = vst.msk [vmem:[%s145 + $0x18] sm:$0xff] %vm643, %v491
      %648 = vst.msk [vmem:[%s145 + $0x20] sm:$0xff] %vm643, %v494
      %649 = vst.msk [vmem:[%s145 + $0x28] sm:$0xff] %vm643, %v496
      %650 = vst.msk [vmem:[%s145 + $0x30] sm:$0xff] %vm643, %v499
      %651 = vst.msk [vmem:[%s145 + $0x38] sm:$0xff] %vm643, %v501
      %652 = vst.msk [vmem:[%s145 + $0x40] sm:$0xff] %vm643, %v504
      %653 = vst.msk [vmem:[%s145 + $0x48] sm:$0xff] %vm643, %v506
      %654 = vst.msk [vmem:[%s145 + $0x50] sm:$0xff] %vm643, %v509
      %655 = vst.msk [vmem:[%s145 + $0x58] sm:$0xff] %vm643, %v511
      %656 = vst.msk [vmem:[%s145 + $0x60] sm:$0xff] %vm643, %v514
      %657 = vst.msk [vmem:[%s145 + $0x68] sm:$0xff] %vm643, %v516
      %658 = vst.msk [vmem:[%s145 + $0x70] sm:$0xff] %vm643, %v519
      %659 = vst.msk [vmem:[%s145 + $0x78] sm:$0xff] %vm643, %v521
      %660 = vst.msk [vmem:[%s145 + $0x80] sm:$0xff] %vm643, %v524
      %661 = vst.msk [vmem:[%s145 + $0x88] sm:$0xff] %vm643, %v526
      %662 = vst.msk [vmem:[%s145 + $0x90] sm:$0xff] %vm643, %v529
      %663 = vst.msk [vmem:[%s145 + $0x98] sm:$0xff] %vm643, %v531
      %664 = vst.msk [vmem:[%s145 + $0xa0] sm:$0xff] %vm643, %v534
      %665 = vst.msk [vmem:[%s145 + $0xa8] sm:$0xff] %vm643, %v536
      %666 = vst.msk [vmem:[%s145 + $0xb0] sm:$0xff] %vm643, %v539
      %667 = vst.msk [vmem:[%s145 + $0xb8] sm:$0xff] %vm643, %v541
      %668 = vst.msk [vmem:[%s145 + $0xc0] sm:$0xff] %vm643, %v544
      %669 = vst.msk [vmem:[%s145 + $0xc8] sm:$0xff] %vm643, %v546
      %670 = vst.msk [vmem:[%s145 + $0xd0] sm:$0xff] %vm643, %v549
      %671 = vst.msk [vmem:[%s145 + $0xd8] sm:$0xff] %vm643, %v551
      %672 = vst.msk [vmem:[%s145 + $0xe0] sm:$0xff] %vm643, %v554
      %673 = vst.msk [vmem:[%s145 + $0xe8] sm:$0xff] %vm643, %v556
      %674 = vst.msk [vmem:[%s145 + $0xf0] sm:$0xff] %vm643, %v559
      %675 = vst.msk [vmem:[%s145 + $0xf8] sm:$0xff] %vm643, %v561
      %676 = vst.msk [vmem:[%s145 + $0x100] sm:$0xff] %vm643, %v564
      %677 = vst.msk [vmem:[%s145 + $0x108] sm:$0xff] %vm643, %v566
      %678 = vst.msk [vmem:[%s145 + $0x110] sm:$0xff] %vm643, %v569
      %679 = vst.msk [vmem:[%s145 + $0x118] sm:$0xff] %vm643, %v571
      %680 = vst.msk [vmem:[%s145 + $0x120] sm:$0xff] %vm643, %v574
      %681 = vst.msk [vmem:[%s145 + $0x128] sm:$0xff] %vm643, %v576
      %682 = vst.msk [vmem:[%s145 + $0x130] sm:$0xff] %vm643, %v579
      %683 = vst.msk [vmem:[%s145 + $0x138] sm:$0xff] %vm643, %v581
      %684 = vst.msk [vmem:[%s145 + $0x140] sm:$0xff] %vm643, %v584
      %685 = vst.msk [vmem:[%s145 + $0x148] sm:$0xff] %vm643, %v586
      %686 = vst.msk [vmem:[%s145 + $0x150] sm:$0xff] %vm643, %v589
      %687 = vst.msk [vmem:[%s145 + $0x158] sm:$0xff] %vm643, %v591
      %688 = vst.msk [vmem:[%s145 + $0x160] sm:$0xff] %vm643, %v594
      %689 = vst.msk [vmem:[%s145 + $0x168] sm:$0xff] %vm643, %v596
      %690 = vst.msk [vmem:[%s145 + $0x170] sm:$0xff] %vm643, %v599
      %691 = vst.msk [vmem:[%s145 + $0x178] sm:$0xff] %vm643, %v601
      %692 = vst.msk [vmem:[%s145 + $0x180] sm:$0xff] %vm643, %v604
      %693 = vst.msk [vmem:[%s145 + $0x188] sm:$0xff] %vm643, %v606
      %694 = vst.msk [vmem:[%s145 + $0x190] sm:$0xff] %vm643, %v609
      %695 = vst.msk [vmem:[%s145 + $0x198] sm:$0xff] %vm643, %v611
      %696 = vst.msk [vmem:[%s145 + $0x1a0] sm:$0xff] %vm643, %v614
      %697 = vst.msk [vmem:[%s145 + $0x1a8] sm:$0xff] %vm643, %v616
      %698 = vst.msk [vmem:[%s145 + $0x1b0] sm:$0xff] %vm643, %v619
      %699 = vst.msk [vmem:[%s145 + $0x1b8] sm:$0xff] %vm643, %v621
      %700 = vst.msk [vmem:[%s145 + $0x1c0] sm:$0xff] %vm643, %v624
      %701 = vst.msk [vmem:[%s145 + $0x1c8] sm:$0xff] %vm643, %v626
      %702 = vst.msk [vmem:[%s145 + $0x1d0] sm:$0xff] %vm643, %v629
      %703 = vst.msk [vmem:[%s145 + $0x1d8] sm:$0xff] %vm643, %v631
      %704 = vst.msk [vmem:[%s145 + $0x1e0] sm:$0xff] %vm643, %v634
      %705 = vst.msk [vmem:[%s145 + $0x1e8] sm:$0xff] %vm643, %v636
      %706 = vst.msk [vmem:[%s145 + $0x1f0] sm:$0xff] %vm643, %v639
      %707 = vst.msk [vmem:[%s145 + $0x1f8] sm:$0xff] %vm643, %v641
      %s708 = smul.u32 64, %s13
      %p709 = scmp.lt.s32.totalorder %s708, 255
      %s710 = scalar_select %p709, %s708, 255
      %s711 = smul.addr %s710, 8
      %s712 = scalar_lea.vmem %s2, %s711
      // Predicated region
      $region29: #{generator_forward.17} parent=27 // pred_check
        %p713 = pneg %p78
      $region30: #{generator_forward.17} parent=27 // pred_check_branch
        %715 = sbr.rel (%p713) target = $region32
      $region31: #{generator_forward.17} parent=27 // pred_region
        %s716 = smul.u32 64, %s13
      $region32: #{generator_forward.17} parent=27 // pred_fallthru
        _
    $region28: #{generator_forward.17} parent=5 // pred_fallthru
      _
    %p717 = scmp.le.s32.totalorder 2, %s8
    // Predicated region
    $region33: #{generator_forward.17} parent=5 // pred_check
      %p718 = pneg %p717
    $region34: #{generator_forward.17} parent=5 // pred_check_branch
      %720 = sbr.rel (%p718) target = $region36
    $region35: #{generator_forward.17} parent=5 // pred_region
      %s721 = ssub.s32 %s8, 2
      // Predicated region
      $region37: #{generator_forward.17} parent=35 // pred_check
        %p722 = pneg %p84
      $region38: #{generator_forward.17} parent=35 // pred_check_branch
        %724 = sbr.rel (%p722) target = $region40
      $region39: #{generator_forward.17} parent=35 // pred_region
        %s725 = smul.u32 64, %s14
        %p726 = scmp.lt.s32.totalorder %s725, 255
        %s727 = scalar_select %p726, %s725, 255
        %s728 = smul.addr %s727, 8
        %s729 = scalar_lea.vmem %s2, %s728
      $region40: #{generator_forward.17} parent=35 // pred_fallthru
        _
    $region36: #{generator_forward.17} parent=5 // pred_fallthru
      _
  $region6: #{generator_forward.17} parent=0 // loop_footer
    %s12 = sadd.s32 1, %s8
  $region7: #{generator_forward.17} parent=0 // loop_footer_branch
    %7 = sbr.rel target = $region3
  $region8: #{generator_forward.17} parent=0 // loop_exit
    _

// kernel: generator_forward.16
$region0: #{generator_forward.16}
  #allocation0 [shape = 'u32[]', space=smem, size = 0x4, offset = 0x4, fixed_abs, tag = 'smem constant byte address 0x4 - core index']
  #allocation1 [shape = 'u32[72,128]{1,0:T(1,128)}', space=vmem, size = 0x9000, scoped, tag = 'internal scratch']
  %s0 = inlined_call_operand.vmem [shape: f32[2,1024,8], index: 0, kind: input, shape index: {}]
  %s1 = inlined_call_operand.vmem [shape: f32[1,8], index: 1, kind: input, shape index: {}]
  %s2 = inlined_call_operand.vmem [shape: f32[1,8], index: 2, kind: input, shape index: {}]
  %s3 = inlined_call_operand.vmem [shape: f32[8,8], index: 3, kind: input, shape index: {}]
  %s4 = inlined_call_operand.vmem [shape: bf16[2,1024,8], index: 4, kind: output, shape index: {}]
  %s5 = sld [smem:[#allocation0]]
  $region49: #{generator_forward.16} parent=0
    _
  %s7 = ssub.s32 1, %s5
  %s8 = scalar_select 0, %s7, %s5
  loop: start=0, step=1, limit=4
  $region2: #{generator_forward.16} parent=0 // loop_pre_header
    _
  $region3: #{generator_forward.16} parent=0 // loop_header
    %s10 = sphi 0, %s14
    %p11 = scmp.ge.s32.totalorder %s10, 4
    %s20 = sphi 0, %s22
    %s23 = sphi 0, %s20
    %s24 = sphi 0, %s23
    %s40 = sphi 0, %s24
    %s44 = sphi 0, %s44
    %s46 = sphi 0, %s44
    %s47 = sphi 0, %s46
    %s61 = sphi 0, %s47
    %s65 = sphi 0, %s65
    %s67 = sphi 0, %s65
    %s68 = sphi 0, %s67
    %s82 = sphi 0, %s68
    %s86 = sphi 0, %s86
    %s88 = sphi 0, %s86
    %s89 = sphi 0, %s88
    %s103 = sphi 0, %s89
    %s109 = sphi 0, %s111
    %s112 = sphi 0, %s109
    %s113 = sphi 0, %s112
    %s129 = sphi 0, %s113
  $region4: #{generator_forward.16} parent=0 // loop_header_branch
    %13 = sbr.rel (%p11) target = $region8
  $region5: #{generator_forward.16} parent=0 // loop_body
    %s15 = ssub.s32 %s10, 1
    %s16 = ssub.s32 %s10, 2
    %s17 = sadd.s32 %s10, 1
    %s18 = ssub.s32 %s10, %s17
    %p19 = scmp.eq.s32.totalorder %s18, 0
    %s21 = sadd.s32 %s20, 1
    %s22 = scalar_select %p19, %s20, %s21
    %p25 = pneg %p19
    %p26 = scmp.eq.s32.totalorder %s10, 1
    %p27 = por %p25, %p26
    %p28 = scmp.ne.s32.totalorder %s20, %s23
    %p29 = scmp.eq.s32.totalorder %s10, 0
    %p30 = por %p28, %p29
    %p31 = scmp.ne.s32.totalorder %s20, %s23
    %p32 = scmp.eq.s32.totalorder %s15, 1
    %p33 = por %p31, %p32
    %p34 = scmp.ne.s32.totalorder %s23, %s24
    %p35 = scmp.eq.s32.totalorder %s15, 0
    %p36 = por %p34, %p35
    %p37 = scmp.ne.s32.totalorder %s23, %s24
    %p38 = scmp.eq.s32.totalorder %s16, 1
    %p39 = por %p37, %p38
    %p41 = scmp.ne.s32.totalorder %s24, %s40
    %p42 = scmp.eq.s32.totalorder %s16, 0
    %p43 = por %p41, %p42
    %s45 = sadd.s32 %s44, 1
    %p48 = scmp.eq.s32.totalorder %s10, 1
    %p49 = scmp.ne.s32.totalorder %s44, %s46
    %p50 = scmp.eq.s32.totalorder %s10, 0
    %p51 = por %p49, %p50
    %p52 = scmp.ne.s32.totalorder %s44, %s46
    %p53 = scmp.eq.s32.totalorder %s15, 1
    %p54 = por %p52, %p53
    %p55 = scmp.ne.s32.totalorder %s46, %s47
    %p56 = scmp.eq.s32.totalorder %s15, 0
    %p57 = por %p55, %p56
    %p58 = scmp.ne.s32.totalorder %s46, %s47
    %p59 = scmp.eq.s32.totalorder %s16, 1
    %p60 = por %p58, %p59
    %p62 = scmp.ne.s32.totalorder %s47, %s61
    %p63 = scmp.eq.s32.totalorder %s16, 0
    %p64 = por %p62, %p63
    %s66 = sadd.s32 %s65, 1
    %p69 = scmp.eq.s32.totalorder %s10, 1
    %p70 = scmp.ne.s32.totalorder %s65, %s67
    %p71 = scmp.eq.s32.totalorder %s10, 0
    %p72 = por %p70, %p71
    %p73 = scmp.ne.s32.totalorder %s65, %s67
    %p74 = scmp.eq.s32.totalorder %s15, 1
    %p75 = por %p73, %p74
    %p76 = scmp.ne.s32.totalorder %s67, %s68
    %p77 = scmp.eq.s32.totalorder %s15, 0
    %p78 = por %p76, %p77
    %p79 = scmp.ne.s32.totalorder %s67, %s68
    %p80 = scmp.eq.s32.totalorder %s16, 1
    %p81 = por %p79, %p80
    %p83 = scmp.ne.s32.totalorder %s68, %s82
    %p84 = scmp.eq.s32.totalorder %s16, 0
    %p85 = por %p83, %p84
    %s87 = sadd.s32 %s86, 1
    %p90 = scmp.eq.s32.totalorder %s10, 1
    %p91 = scmp.ne.s32.totalorder %s86, %s88
    %p92 = scmp.eq.s32.totalorder %s10, 0
    %p93 = por %p91, %p92
    %p94 = scmp.ne.s32.totalorder %s86, %s88
    %p95 = scmp.eq.s32.totalorder %s15, 1
    %p96 = por %p94, %p95
    %p97 = scmp.ne.s32.totalorder %s88, %s89
    %p98 = scmp.eq.s32.totalorder %s15, 0
    %p99 = por %p97, %p98
    %p100 = scmp.ne.s32.totalorder %s88, %s89
    %p101 = scmp.eq.s32.totalorder %s16, 1
    %p102 = por %p100, %p101
    %p104 = scmp.ne.s32.totalorder %s89, %s103
    %p105 = scmp.eq.s32.totalorder %s16, 0
    %p106 = por %p104, %p105
    %s107 = ssub.s32 %s10, %s17
    %p108 = scmp.eq.s32.totalorder %s107, 0
    %s110 = sadd.s32 %s109, 1
    %s111 = scalar_select %p108, %s109, %s110
    %p114 = pneg %p108
    %p115 = scmp.eq.s32.totalorder %s10, 1
    %p116 = por %p114, %p115
    %p117 = scmp.ne.s32.totalorder %s109, %s112
    %p118 = scmp.eq.s32.totalorder %s10, 0
    %p119 = por %p117, %p118
    %p120 = scmp.ne.s32.totalorder %s109, %s112
    %p121 = scmp.eq.s32.totalorder %s15, 1
    %p122 = por %p120, %p121
    %p123 = scmp.ne.s32.totalorder %s112, %s113
    %p124 = scmp.eq.s32.totalorder %s15, 0
    %p125 = por %p123, %p124
    %p126 = scmp.ne.s32.totalorder %s112, %s113
    %p127 = scmp.eq.s32.totalorder %s16, 1
    %p128 = por %p126, %p127
    %p130 = scmp.ne.s32.totalorder %s113, %s129
    %p131 = scmp.eq.s32.totalorder %s16, 0
    %p132 = por %p130, %p131
    %p133 = scmp.le.s32.totalorder 1, %s10
    %p134 = scmp.lt.s32.totalorder %s10, 3
    %p135 = pnand %p133, %p134
    %p136 = pneg %p135
    // Predicated region
    $region9: #{generator_forward.16} parent=5 // pred_check
      _
    $region10: #{generator_forward.16} parent=5 // pred_check_branch
      %138 = sbr.rel (%p135) target = $region12
    $region11: #{generator_forward.16} parent=5 // pred_region
      %s139 = ssub.s32 %s10, 1
      // Predicated region
      $region13: #{generator_forward.16} parent=11 // pred_check
        %p140 = pneg %p57
      $region14: #{generator_forward.16} parent=11 // pred_check_branch
        %142 = sbr.rel (%p140) target = $region16
      $region15: #{generator_forward.16} parent=11 // pred_region
        _
      $region16: #{generator_forward.16} parent=11 // pred_fallthru
        _
      // Predicated region
      $region17: #{generator_forward.16} parent=11 // pred_check
        %p143 = pneg %p78
      $region18: #{generator_forward.16} parent=11 // pred_check_branch
        %145 = sbr.rel (%p143) target = $region20
      $region19: #{generator_forward.16} parent=11 // pred_region
        _
      $region20: #{generator_forward.16} parent=11 // pred_fallthru
        _
      // Predicated region
      $region21: #{generator_forward.16} parent=11 // pred_check
        %p146 = pneg %p99
      $region22: #{generator_forward.16} parent=11 // pred_check_branch
        %148 = sbr.rel (%p146) target = $region24
      $region23: #{generator_forward.16} parent=11 // pred_region
        _
      $region24: #{generator_forward.16} parent=11 // pred_fallthru
        _
    $region12: #{generator_forward.16} parent=5 // pred_fallthru
      _
    %p149 = scmp.lt.s32.totalorder %s10, 2
    // Predicated region
    $region25: #{generator_forward.16} parent=5 // pred_check
      %p150 = pneg %p149
    $region26: #{generator_forward.16} parent=5 // pred_check_branch
      %152 = sbr.rel (%p150) target = $region28
    $region27: #{generator_forward.16} parent=5 // pred_region
      // Predicated region
      $region29: #{generator_forward.16} parent=27 // pred_check
        %p153 = pneg %p30
      $region30: #{generator_forward.16} parent=27 // pred_check_branch
        %155 = sbr.rel (%p153) target = $region32
      $region31: #{generator_forward.16} parent=27 // pred_region
        %p156 = scmp.lt.s32.totalorder %s10, 1
        %s157 = scalar_select %p156, %s10, 1
        %s158 = smul.addr %s157, 128
        %s159 = smul.addr %s158, 8
        %s160 = scalar_lea.vmem %s0, %s159
      $region32: #{generator_forward.16} parent=27 // pred_fallthru
        _
    $region28: #{generator_forward.16} parent=5 // pred_fallthru
      _
    %p161 = scmp.le.s32.totalorder 1, %s10
    %p162 = scmp.lt.s32.totalorder %s10, 3
    %p163 = pnand %p161, %p162
    %p164 = pneg %p163
    // Predicated region
    $region33: #{generator_forward.16} parent=5 // pred_check
      _
    $region34: #{generator_forward.16} parent=5 // pred_check_branch
      %166 = sbr.rel (%p163) target = $region36
    $region35: #{generator_forward.16} parent=5 // pred_region
      %s167 = ssub.s32 %s10, 1
      %p168 = scmp.lt.s32.totalorder %s15, 1
      %s169 = scalar_select %p168, %s15, 1
      %s170 = smul.addr %s169, 128
      %s171 = smul.addr %s170, 8
      %s172 = scalar_lea.vmem %s0, %s171
      %p173 = pneg %p36
      %p174 = pneg %p33
      %p175 = pneg %p57
      %p176 = pneg %p54
      %p177 = pneg %p78
      %p178 = pneg %p75
      %p179 = pneg %p99
      %p180 = pneg %p96
      %p181 = pneg %p125
      %p182 = pneg %p122
      %p183 = scmp.lt.s32.totalorder %s15, 1
      %s184 = scalar_select %p183, %s15, 1
      %s185 = smul.addr %s184, 128
      %s186 = smul.addr %s185, 4
      %s187 = scalar_lea.vmem %s4, %s186
      %p188 = scmp.lt.s32.totalorder %s15, 1
      %s189 = scalar_select %p188, %s15, 1
      %s190 = smul.addr %s189, 128
      %s191 = smul.addr %s190, 8
      %s192 = scalar_lea.vmem %s0, %s191
      %p193 = scmp.lt.s32.totalorder %s15, 1
      %s194 = scalar_select %p193, %s15, 1
      %s195 = smul.addr %s194, 128
      %s196 = smul.addr %s195, 4
      %s197 = scalar_lea.vmem %s4, %s196
      %v198 = vld [vmem:[%s192] sm:$0xff]
      %v199 = vld [vmem:[%s192 + $0x8] sm:$0xff]
      %v200 = vld [vmem:[%s192 + $0x10] sm:$0xff]
      %v201 = vld [vmem:[%s192 + $0x18] sm:$0xff]
      %v202 = vld [vmem:[%s192 + $0x20] sm:$0xff]
      %v203 = vld [vmem:[%s192 + $0x28] sm:$0xff]
      %v204 = vld [vmem:[%s192 + $0x30] sm:$0xff]
      %v205 = vld [vmem:[%s192 + $0x38] sm:$0xff]
      %v206 = vld [vmem:[%s192 + $0x40] sm:$0xff]
      %v207 = vld [vmem:[%s192 + $0x48] sm:$0xff]
      %v208 = vld [vmem:[%s192 + $0x50] sm:$0xff]
      %v209 = vld [vmem:[%s192 + $0x58] sm:$0xff]
      %v210 = vld [vmem:[%s192 + $0x60] sm:$0xff]
      %v211 = vld [vmem:[%s192 + $0x68] sm:$0xff]
      %v212 = vld [vmem:[%s192 + $0x70] sm:$0xff]
      %v213 = vld [vmem:[%s192 + $0x78] sm:$0xff]
      %v214 = vld [vmem:[%s192 + $0x80] sm:$0xff]
      %v215 = vld [vmem:[%s192 + $0x88] sm:$0xff]
      %v216 = vld [vmem:[%s192 + $0x90] sm:$0xff]
      %v217 = vld [vmem:[%s192 + $0x98] sm:$0xff]
      %v218 = vld [vmem:[%s192 + $0xa0] sm:$0xff]
      %v219 = vld [vmem:[%s192 + $0xa8] sm:$0xff]
      %v220 = vld [vmem:[%s192 + $0xb0] sm:$0xff]
      %v221 = vld [vmem:[%s192 + $0xb8] sm:$0xff]
      %v222 = vld [vmem:[%s192 + $0xc0] sm:$0xff]
      %v223 = vld [vmem:[%s192 + $0xc8] sm:$0xff]
      %v224 = vld [vmem:[%s192 + $0xd0] sm:$0xff]
      %v225 = vld [vmem:[%s192 + $0xd8] sm:$0xff]
      %v226 = vld [vmem:[%s192 + $0xe0] sm:$0xff]
      %v227 = vld [vmem:[%s192 + $0xe8] sm:$0xff]
      %v228 = vld [vmem:[%s192 + $0xf0] sm:$0xff]
      %v229 = vld [vmem:[%s192 + $0xf8] sm:$0xff]
      %v230 = vld [vmem:[%s192 + $0x100] sm:$0xff]
      %v231 = vld [vmem:[%s192 + $0x108] sm:$0xff]
      %v232 = vld [vmem:[%s192 + $0x110] sm:$0xff]
      %v233 = vld [vmem:[%s192 + $0x118] sm:$0xff]
      %v234 = vld [vmem:[%s192 + $0x120] sm:$0xff]
      %v235 = vld [vmem:[%s192 + $0x128] sm:$0xff]
      %v236 = vld [vmem:[%s192 + $0x130] sm:$0xff]
      %v237 = vld [vmem:[%s192 + $0x138] sm:$0xff]
      %v238 = vld [vmem:[%s192 + $0x140] sm:$0xff]
      %v239 = vld [vmem:[%s192 + $0x148] sm:$0xff]
      %v240 = vld [vmem:[%s192 + $0x150] sm:$0xff]
      %v241 = vld [vmem:[%s192 + $0x158] sm:$0xff]
      %v242 = vld [vmem:[%s192 + $0x160] sm:$0xff]
      %v243 = vld [vmem:[%s192 + $0x168] sm:$0xff]
      %v244 = vld [vmem:[%s192 + $0x170] sm:$0xff]
      %v245 = vld [vmem:[%s192 + $0x178] sm:$0xff]
      %v246 = vld [vmem:[%s192 + $0x180] sm:$0xff]
      %v247 = vld [vmem:[%s192 + $0x188] sm:$0xff]
      %v248 = vld [vmem:[%s192 + $0x190] sm:$0xff]
      %v249 = vld [vmem:[%s192 + $0x198] sm:$0xff]
      %v250 = vld [vmem:[%s192 + $0x1a0] sm:$0xff]
      %v251 = vld [vmem:[%s192 + $0x1a8] sm:$0xff]
      %v252 = vld [vmem:[%s192 + $0x1b0] sm:$0xff]
      %v253 = vld [vmem:[%s192 + $0x1b8] sm:$0xff]
      %v254 = vld [vmem:[%s192 + $0x1c0] sm:$0xff]
      %v255 = vld [vmem:[%s192 + $0x1c8] sm:$0xff]
      %v256 = vld [vmem:[%s192 + $0x1d0] sm:$0xff]
      %v257 = vld [vmem:[%s192 + $0x1d8] sm:$0xff]
      %v258 = vld [vmem:[%s192 + $0x1e0] sm:$0xff]
      %v259 = vld [vmem:[%s192 + $0x1e8] sm:$0xff]
      %v260 = vld [vmem:[%s192 + $0x1f0] sm:$0xff]
      %v261 = vld [vmem:[%s192 + $0x1f8] sm:$0xff]
      %v262 = vld [vmem:[%s192 + $0x200] sm:$0xff]
      %v263 = vld [vmem:[%s192 + $0x208] sm:$0xff]
      %v264 = vld [vmem:[%s192 + $0x210] sm:$0xff]
      %v265 = vld [vmem:[%s192 + $0x218] sm:$0xff]
      %v266 = vld [vmem:[%s192 + $0x220] sm:$0xff]
      %v267 = vld [vmem:[%s192 + $0x228] sm:$0xff]
      %v268 = vld [vmem:[%s192 + $0x230] sm:$0xff]
      %v269 = vld [vmem:[%s192 + $0x238] sm:$0xff]
      %v270 = vld [vmem:[%s192 + $0x240] sm:$0xff]
      %v271 = vld [vmem:[%s192 + $0x248] sm:$0xff]
      %v272 = vld [vmem:[%s192 + $0x250] sm:$0xff]
      %v273 = vld [vmem:[%s192 + $0x258] sm:$0xff]
      %v274 = vld [vmem:[%s192 + $0x260] sm:$0xff]
      %v275 = vld [vmem:[%s192 + $0x268] sm:$0xff]
      %v276 = vld [vmem:[%s192 + $0x270] sm:$0xff]
      %v277 = vld [vmem:[%s192 + $0x278] sm:$0xff]
      %v278 = vld [vmem:[%s192 + $0x280] sm:$0xff]
      %v279 = vld [vmem:[%s192 + $0x288] sm:$0xff]
      %v280 = vld [vmem:[%s192 + $0x290] sm:$0xff]
      %v281 = vld [vmem:[%s192 + $0x298] sm:$0xff]
      %v282 = vld [vmem:[%s192 + $0x2a0] sm:$0xff]
      %v283 = vld [vmem:[%s192 + $0x2a8] sm:$0xff]
      %v284 = vld [vmem:[%s192 + $0x2b0] sm:$0xff]
      %v285 = vld [vmem:[%s192 + $0x2b8] sm:$0xff]
      %v286 = vld [vmem:[%s192 + $0x2c0] sm:$0xff]
      %v287 = vld [vmem:[%s192 + $0x2c8] sm:$0xff]
      %v288 = vld [vmem:[%s192 + $0x2d0] sm:$0xff]
      %v289 = vld [vmem:[%s192 + $0x2d8] sm:$0xff]
      %v290 = vld [vmem:[%s192 + $0x2e0] sm:$0xff]
      %v291 = vld [vmem:[%s192 + $0x2e8] sm:$0xff]
      %v292 = vld [vmem:[%s192 + $0x2f0] sm:$0xff]
      %v293 = vld [vmem:[%s192 + $0x2f8] sm:$0xff]
      %v294 = vld [vmem:[%s192 + $0x300] sm:$0xff]
      %v295 = vld [vmem:[%s192 + $0x308] sm:$0xff]
      %v296 = vld [vmem:[%s192 + $0x310] sm:$0xff]
      %v297 = vld [vmem:[%s192 + $0x318] sm:$0xff]
      %v298 = vld [vmem:[%s192 + $0x320] sm:$0xff]
      %v299 = vld [vmem:[%s192 + $0x328] sm:$0xff]
      %v300 = vld [vmem:[%s192 + $0x330] sm:$0xff]
      %v301 = vld [vmem:[%s192 + $0x338] sm:$0xff]
      %v302 = vld [vmem:[%s192 + $0x340] sm:$0xff]
      %v303 = vld [vmem:[%s192 + $0x348] sm:$0xff]
      %v304 = vld [vmem:[%s192 + $0x350] sm:$0xff]
      %v305 = vld [vmem:[%s192 + $0x358] sm:$0xff]
      %v306 = vld [vmem:[%s192 + $0x360] sm:$0xff]
      %v307 = vld [vmem:[%s192 + $0x368] sm:$0xff]
      %v308 = vld [vmem:[%s192 + $0x370] sm:$0xff]
      %v309 = vld [vmem:[%s192 + $0x378] sm:$0xff]
      %v310 = vld [vmem:[%s192 + $0x380] sm:$0xff]
      %v311 = vld [vmem:[%s192 + $0x388] sm:$0xff]
      %v312 = vld [vmem:[%s192 + $0x390] sm:$0xff]
      %v313 = vld [vmem:[%s192 + $0x398] sm:$0xff]
      %v314 = vld [vmem:[%s192 + $0x3a0] sm:$0xff]
      %v315 = vld [vmem:[%s192 + $0x3a8] sm:$0xff]
      %v316 = vld [vmem:[%s192 + $0x3b0] sm:$0xff]
      %v317 = vld [vmem:[%s192 + $0x3b8] sm:$0xff]
      %v318 = vld [vmem:[%s192 + $0x3c0] sm:$0xff]
      %v319 = vld [vmem:[%s192 + $0x3c8] sm:$0xff]
      %v320 = vld [vmem:[%s192 + $0x3d0] sm:$0xff]
      %v321 = vld [vmem:[%s192 + $0x3d8] sm:$0xff]
      %v322 = vld [vmem:[%s192 + $0x3e0] sm:$0xff]
      %v323 = vld [vmem:[%s192 + $0x3e8] sm:$0xff]
      %v324 = vld [vmem:[%s192 + $0x3f0] sm:$0xff]
      %v325 = vld [vmem:[%s192 + $0x3f8] sm:$0xff]
      %v326 = vld [vmem:[%s3] sm:$0xff]
      %vm327 = vcmask 64512
      %v328 = vsel %vm327, %v198, 0.0
      %v329 = vsel %vm327, %v199, 0.0
      %v330 = vadd.f32 %v328, %v329
      %v331 = vsel %vm327, %v200, 0.0
      %v332 = vadd.f32 %v330, %v331
      %v333 = vsel %vm327, %v201, 0.0
      %v334 = vadd.f32 %v332, %v333
      %v335 = vsel %vm327, %v202, 0.0
      %v336 = vadd.f32 %v334, %v335
      %v337 = vsel %vm327, %v203, 0.0
      %v338 = vadd.f32 %v336, %v337
      %v339 = vsel %vm327, %v204, 0.0
      %v340 = vadd.f32 %v338, %v339
      %v341 = vsel %vm327, %v205, 0.0
      %v342 = vadd.f32 %v340, %v341
      %v343 = vsel %vm327, %v206, 0.0
      %v344 = vadd.f32 %v342, %v343
      %v345 = vsel %vm327, %v207, 0.0
      %v346 = vadd.f32 %v344, %v345
      %v347 = vsel %vm327, %v208, 0.0
      %v348 = vadd.f32 %v346, %v347
      %v349 = vsel %vm327, %v209, 0.0
      %v350 = vadd.f32 %v348, %v349
      %v351 = vsel %vm327, %v210, 0.0
      %v352 = vadd.f32 %v350, %v351
      %v353 = vsel %vm327, %v211, 0.0
      %v354 = vadd.f32 %v352, %v353
      %v355 = vsel %vm327, %v212, 0.0
      %v356 = vadd.f32 %v354, %v355
      %v357 = vsel %vm327, %v213, 0.0
      %v358 = vadd.f32 %v356, %v357
      %v359 = vsel %vm327, %v214, 0.0
      %v360 = vadd.f32 %v358, %v359
      %v361 = vsel %vm327, %v215, 0.0
      %v362 = vadd.f32 %v360, %v361
      %v363 = vsel %vm327, %v216, 0.0
      %v364 = vadd.f32 %v362, %v363
      %v365 = vsel %vm327, %v217, 0.0
      %v366 = vadd.f32 %v364, %v365
      %v367 = vsel %vm327, %v218, 0.0
      %v368 = vadd.f32 %v366, %v367
      %v369 = vsel %vm327, %v219, 0.0
      %v370 = vadd.f32 %v368, %v369
      %v371 = vsel %vm327, %v220, 0.0
      %v372 = vadd.f32 %v370, %v371
      %v373 = vsel %vm327, %v221, 0.0
      %v374 = vadd.f32 %v372, %v373
      %v375 = vsel %vm327, %v222, 0.0
      %v376 = vadd.f32 %v374, %v375
      %v377 = vsel %vm327, %v223, 0.0
      %v378 = vadd.f32 %v376, %v377
      %v379 = vsel %vm327, %v224, 0.0
      %v380 = vadd.f32 %v378, %v379
      %v381 = vsel %vm327, %v225, 0.0
      %v382 = vadd.f32 %v380, %v381
      %v383 = vsel %vm327, %v226, 0.0
      %v384 = vadd.f32 %v382, %v383
      %v385 = vsel %vm327, %v227, 0.0
      %v386 = vadd.f32 %v384, %v385
      %v387 = vsel %vm327, %v228, 0.0
      %v388 = vadd.f32 %v386, %v387
      %v389 = vsel %vm327, %v229, 0.0
      %v390 = vadd.f32 %v388, %v389
      %v391 = vsel %vm327, %v230, 0.0
      %v392 = vadd.f32 %v390, %v391
      %v393 = vsel %vm327, %v231, 0.0
      %v394 = vadd.f32 %v392, %v393
      %v395 = vsel %vm327, %v232, 0.0
      %v396 = vadd.f32 %v394, %v395
      %v397 = vsel %vm327, %v233, 0.0
      %v398 = vadd.f32 %v396, %v397
      %v399 = vsel %vm327, %v234, 0.0
      %v400 = vadd.f32 %v398, %v399
      %v401 = vsel %vm327, %v235, 0.0
      %v402 = vadd.f32 %v400, %v401
      %v403 = vsel %vm327, %v236, 0.0
      %v404 = vadd.f32 %v402, %v403
      %v405 = vsel %vm327, %v237, 0.0
      %v406 = vadd.f32 %v404, %v405
      %v407 = vsel %vm327, %v238, 0.0
      %v408 = vadd.f32 %v406, %v407
      %v409 = vsel %vm327, %v239, 0.0
      %v410 = vadd.f32 %v408, %v409
      %v411 = vsel %vm327, %v240, 0.0
      %v412 = vadd.f32 %v410, %v411
      %v413 = vsel %vm327, %v241, 0.0
      %v414 = vadd.f32 %v412, %v413
      %v415 = vsel %vm327, %v242, 0.0
      %v416 = vadd.f32 %v414, %v415
      %v417 = vsel %vm327, %v243, 0.0
      %v418 = vadd.f32 %v416, %v417
      %v419 = vsel %vm327, %v244, 0.0
      %v420 = vadd.f32 %v418, %v419
      %v421 = vsel %vm327, %v245, 0.0
      %v422 = vadd.f32 %v420, %v421
      %v423 = vsel %vm327, %v246, 0.0
      %v424 = vadd.f32 %v422, %v423
      %v425 = vsel %vm327, %v247, 0.0
      %v426 = vadd.f32 %v424, %v425
      %v427 = vsel %vm327, %v248, 0.0
      %v428 = vadd.f32 %v426, %v427
      %v429 = vsel %vm327, %v249, 0.0
      %v430 = vadd.f32 %v428, %v429
      %v431 = vsel %vm327, %v250, 0.0
      %v432 = vadd.f32 %v430, %v431
      %v433 = vsel %vm327, %v251, 0.0
      %v434 = vadd.f32 %v432, %v433
      %v435 = vsel %vm327, %v252, 0.0
      %v436 = vadd.f32 %v434, %v435
      %v437 = vsel %vm327, %v253, 0.0
      %v438 = vadd.f32 %v436, %v437
      %v439 = vsel %vm327, %v254, 0.0
      %v440 = vadd.f32 %v438, %v439
      %v441 = vsel %vm327, %v255, 0.0
      %v442 = vadd.f32 %v440, %v441
      %v443 = vsel %vm327, %v256, 0.0
      %v444 = vadd.f32 %v442, %v443
      %v445 = vsel %vm327, %v257, 0.0
      %v446 = vadd.f32 %v444, %v445
      %v447 = vsel %vm327, %v258, 0.0
      %v448 = vadd.f32 %v446, %v447
      %v449 = vsel %vm327, %v259, 0.0
      %v450 = vadd.f32 %v448, %v449
      %v451 = vsel %vm327, %v260, 0.0
      %v452 = vadd.f32 %v450, %v451
      %v453 = vsel %vm327, %v261, 0.0
      %v454 = vadd.f32 %v452, %v453
      %v455 = vsel %vm327, %v262, 0.0
      %v456 = vadd.f32 %v454, %v455
      %v457 = vsel %vm327, %v263, 0.0
      %v458 = vadd.f32 %v456, %v457
      %v459 = vsel %vm327, %v264, 0.0
      %v460 = vadd.f32 %v458, %v459
      %v461 = vsel %vm327, %v265, 0.0
      %v462 = vadd.f32 %v460, %v461
      %v463 = vsel %vm327, %v266, 0.0
      %v464 = vadd.f32 %v462, %v463
      %v465 = vsel %vm327, %v267, 0.0
      %v466 = vadd.f32 %v464, %v465
      %v467 = vsel %vm327, %v268, 0.0
      %v468 = vadd.f32 %v466, %v467
      %v469 = vsel %vm327, %v269, 0.0
      %v470 = vadd.f32 %v468, %v469
      %v471 = vsel %vm327, %v270, 0.0
      %v472 = vadd.f32 %v470, %v471
      %v473 = vsel %vm327, %v271, 0.0
      %v474 = vadd.f32 %v472, %v473
      %v475 = vsel %vm327, %v272, 0.0
      %v476 = vadd.f32 %v474, %v475
      %v477 = vsel %vm327, %v273, 0.0
      %v478 = vadd.f32 %v476, %v477
      %v479 = vsel %vm327, %v274, 0.0
      %v480 = vadd.f32 %v478, %v479
      %v481 = vsel %vm327, %v275, 0.0
      %v482 = vadd.f32 %v480, %v481
      %v483 = vsel %vm327, %v276, 0.0
      %v484 = vadd.f32 %v482, %v483
      %v485 = vsel %vm327, %v277, 0.0
      %v486 = vadd.f32 %v484, %v485
      %v487 = vsel %vm327, %v278, 0.0
      %v488 = vadd.f32 %v486, %v487
      %v489 = vsel %vm327, %v279, 0.0
      %v490 = vadd.f32 %v488, %v489
      %v491 = vsel %vm327, %v280, 0.0
      %v492 = vadd.f32 %v490, %v491
      %v493 = vsel %vm327, %v281, 0.0
      %v494 = vadd.f32 %v492, %v493
      %v495 = vsel %vm327, %v282, 0.0
      %v496 = vadd.f32 %v494, %v495
      %v497 = vsel %vm327, %v283, 0.0
      %v498 = vadd.f32 %v496, %v497
      %v499 = vsel %vm327, %v284, 0.0
      %v500 = vadd.f32 %v498, %v499
      %v501 = vsel %vm327, %v285, 0.0
      %v502 = vadd.f32 %v500, %v501
      %v503 = vsel %vm327, %v286, 0.0
      %v504 = vadd.f32 %v502, %v503
      %v505 = vsel %vm327, %v287, 0.0
      %v506 = vadd.f32 %v504, %v505
      %v507 = vsel %vm327, %v288, 0.0
      %v508 = vadd.f32 %v506, %v507
      %v509 = vsel %vm327, %v289, 0.0
      %v510 = vadd.f32 %v508, %v509
      %v511 = vsel %vm327, %v290, 0.0
      %v512 = vadd.f32 %v510, %v511
      %v513 = vsel %vm327, %v291, 0.0
      %v514 = vadd.f32 %v512, %v513
      %v515 = vsel %vm327, %v292, 0.0
      %v516 = vadd.f32 %v514, %v515
      %v517 = vsel %vm327, %v293, 0.0
      %v518 = vadd.f32 %v516, %v517
      %v519 = vsel %vm327, %v294, 0.0
      %v520 = vadd.f32 %v518, %v519
      %v521 = vsel %vm327, %v295, 0.0
      %v522 = vadd.f32 %v520, %v521
      %v523 = vsel %vm327, %v296, 0.0
      %v524 = vadd.f32 %v522, %v523
      %v525 = vsel %vm327, %v297, 0.0
      %v526 = vadd.f32 %v524, %v525
      %v527 = vsel %vm327, %v298, 0.0
      %v528 = vadd.f32 %v526, %v527
      %v529 = vsel %vm327, %v299, 0.0
      %v530 = vadd.f32 %v528, %v529
      %v531 = vsel %vm327, %v300, 0.0
      %v532 = vadd.f32 %v530, %v531
      %v533 = vsel %vm327, %v301, 0.0
      %v534 = vadd.f32 %v532, %v533
      %v535 = vsel %vm327, %v302, 0.0
      %v536 = vadd.f32 %v534, %v535
      %v537 = vsel %vm327, %v303, 0.0
      %v538 = vadd.f32 %v536, %v537
      %v539 = vsel %vm327, %v304, 0.0
      %v540 = vadd.f32 %v538, %v539
      %v541 = vsel %vm327, %v305, 0.0
      %v542 = vadd.f32 %v540, %v541
      %v543 = vsel %vm327, %v306, 0.0
      %v544 = vadd.f32 %v542, %v543
      %v545 = vsel %vm327, %v307, 0.0
      %v546 = vadd.f32 %v544, %v545
      %v547 = vsel %vm327, %v308, 0.0
      %v548 = vadd.f32 %v546, %v547
      %v549 = vsel %vm327, %v309, 0.0
      %v550 = vadd.f32 %v548, %v549
      %v551 = vsel %vm327, %v310, 0.0
      %v552 = vadd.f32 %v550, %v551
      %v553 = vsel %vm327, %v311, 0.0
      %v554 = vadd.f32 %v552, %v553
      %v555 = vsel %vm327, %v312, 0.0
      %v556 = vadd.f32 %v554, %v555
      %v557 = vsel %vm327, %v313, 0.0
      %v558 = vadd.f32 %v556, %v557
      %v559 = vsel %vm327, %v314, 0.0
      %v560 = vadd.f32 %v558, %v559
      %v561 = vsel %vm327, %v315, 0.0
      %v562 = vadd.f32 %v560, %v561
      %v563 = vsel %vm327, %v316, 0.0
      %v564 = vadd.f32 %v562, %v563
      %v565 = vsel %vm327, %v317, 0.0
      %v566 = vadd.f32 %v564, %v565
      %v567 = vsel %vm327, %v318, 0.0
      %v568 = vadd.f32 %v566, %v567
      %v569 = vsel %vm327, %v319, 0.0
      %v570 = vadd.f32 %v568, %v569
      %v571 = vsel %vm327, %v320, 0.0
      %v572 = vadd.f32 %v570, %v571
      %v573 = vsel %vm327, %v321, 0.0
      %v574 = vadd.f32 %v572, %v573
      %v575 = vsel %vm327, %v322, 0.0
      %v576 = vadd.f32 %v574, %v575
      %v577 = vsel %vm327, %v323, 0.0
      %v578 = vadd.f32 %v576, %v577
      %v579 = vsel %vm327, %v324, 0.0
      %v580 = vadd.f32 %v578, %v579
      %v581 = vsel %vm327, %v325, 0.0
      %v582 = vadd.f32 %v580, %v581
      %v583 = vrot.slane %v582, 4
      %v584 = vadd.f32 %v582, %v583
      %v585 = vrot.slane %v584, 2
      %v586 = vadd.f32 %v584, %v585
      %v587 = vrot.slane %v586, 1
      %v588 = vadd.f32 %v586, %v587
      %v590 = vsel %vm327, %v588, 0
      %592 = vmatpush.msra.mxu0 0.0
      %593 = vmatpush.msra.mxu0 0.0
      %594 = vmatpush.msra.mxu0 0.0
      %595 = vmatpush.msra.mxu0 0.0
      %596 = vmatpush.msra.mxu0 0.0
      %597 = vmatpush.msra.mxu0 0.0
      %598 = vmatpush.msra.mxu0 0.0
      %599 = vmatpush.msra.mxu0 0.0
      %600 = vmatpush.msra.mxu0 0.0
      %601 = vmatpush.msra.mxu0 0.0
      %602 = vmatpush.msra.mxu0 0.0
      %603 = vmatpush.msra.mxu0 0.0
      %604 = vmatpush.msra.mxu0 0.0
      %605 = vmatpush.msra.mxu0 0.0
      %606 = vmatpush.msra.mxu0 0.0
      %607 = vmatpush.msra.mxu0 %v326
      %608 = vmatmul.f32.gmra.mxu0 %v590
      %v609 = vpop.f32.mrf.mxu0
      %v610 = vadd.f32 0.0, %v609
      %611 = vdwg.mxu0
      %v612 = vmul.f32 %v610, 0.0009765625
      %v613 = vperm.slane %v612, 0
      %v614 = vsub.f32 %v198, %v613
      %v615 = vsub.f32 %v199, %v613
      %v616 = vsub.f32 %v200, %v613
      %v617 = vsub.f32 %v201, %v613
      %v618 = vsub.f32 %v202, %v613
      %v619 = vsub.f32 %v203, %v613
      %v620 = vsub.f32 %v204, %v613
      %v621 = vsub.f32 %v205, %v613
      %v622 = vsub.f32 %v206, %v613
      %v623 = vsub.f32 %v207, %v613
      %v624 = vsub.f32 %v208, %v613
      %v625 = vsub.f32 %v209, %v613
      %v626 = vsub.f32 %v210, %v613
      %v627 = vsub.f32 %v211, %v613
      %v628 = vsub.f32 %v212, %v613
      %v629 = vsub.f32 %v213, %v613
      %v630 = vsub.f32 %v214, %v613
      %v631 = vsub.f32 %v215, %v613
      %v632 = vsub.f32 %v216, %v613
      %v633 = vsub.f32 %v217, %v613
      %v634 = vsub.f32 %v218, %v613
      %v635 = vsub.f32 %v219, %v613
      %v636 = vsub.f32 %v220, %v613
      %v637 = vsub.f32 %v221, %v613
      %v638 = vsub.f32 %v222, %v613
      %v639 = vsub.f32 %v223, %v613
      %v640 = vsub.f32 %v224, %v613
      %v641 = vsub.f32 %v225, %v613
      %v642 = vsub.f32 %v226, %v613
      %v643 = vsub.f32 %v227, %v613
      %v644 = vsub.f32 %v228, %v613
      %v645 = vsub.f32 %v229, %v613
      %v646 = vsub.f32 %v230, %v613
      %v647 = vsub.f32 %v231, %v613
      %v648 = vsub.f32 %v232, %v613
      %v649 = vsub.f32 %v233, %v613
      %v650 = vsub.f32 %v234, %v613
      %v651 = vsub.f32 %v235, %v613
      %v652 = vsub.f32 %v236, %v613
      %v653 = vsub.f32 %v237, %v613
      %v654 = vsub.f32 %v238, %v613
      %v655 = vsub.f32 %v239, %v613
      %v656 = vsub.f32 %v240, %v613
      %v657 = vsub.f32 %v241, %v613
      %v658 = vsub.f32 %v242, %v613
      %v659 = vsub.f32 %v243, %v613
      %v660 = vsub.f32 %v244, %v613
      %v661 = vsub.f32 %v245, %v613
      %v662 = vsub.f32 %v246, %v613
      %v663 = vsub.f32 %v247, %v613
      %v664 = vsub.f32 %v248, %v613
      %v665 = vsub.f32 %v249, %v613
      %v666 = vsub.f32 %v250, %v613
      %v667 = vsub.f32 %v251, %v613
      %v668 = vsub.f32 %v252, %v613
      %v669 = vsub.f32 %v253, %v613
      %v670 = vsub.f32 %v254, %v613
      %v671 = vsub.f32 %v255, %v613
      %v672 = vsub.f32 %v256, %v613
      %v673 = vsub.f32 %v257, %v613
      %v674 = vsub.f32 %v258, %v613
      %v675 = vsub.f32 %v259, %v613
      %v676 = vsub.f32 %v260, %v613
      %v677 = vsub.f32 %v261, %v613
      %v678 = vsub.f32 %v262, %v613
      %v679 = vsub.f32 %v263, %v613
      %v680 = vsub.f32 %v264, %v613
      %v681 = vsub.f32 %v265, %v613
      %v682 = vsub.f32 %v266, %v613
      %v683 = vsub.f32 %v267, %v613
      %v684 = vsub.f32 %v268, %v613
      %v685 = vsub.f32 %v269, %v613
      %v686 = vsub.f32 %v270, %v613
      %v687 = vsub.f32 %v271, %v613
      %v688 = vsub.f32 %v272, %v613
      %v689 = vsub.f32 %v273, %v613
      %v690 = vsub.f32 %v274, %v613
      %v691 = vsub.f32 %v275, %v613
      %v692 = vsub.f32 %v276, %v613
      %v693 = vsub.f32 %v277, %v613
      %v694 = vsub.f32 %v278, %v613
      %v695 = vsub.f32 %v279, %v613
      %v696 = vsub.f32 %v280, %v613
      %v697 = vsub.f32 %v281, %v613
      %v698 = vsub.f32 %v282, %v613
      %v699 = vsub.f32 %v283, %v613
      %v700 = vsub.f32 %v284, %v613
      %v701 = vsub.f32 %v285, %v613
      %v702 = vsub.f32 %v286, %v613
      %v703 = vsub.f32 %v287, %v613
      %v704 = vsub.f32 %v288, %v613
      %v705 = vsub.f32 %v289, %v613
      %v706 = vsub.f32 %v290, %v613
      %v707 = vsub.f32 %v291, %v613
      %v708 = vsub.f32 %v292, %v613
      %v709 = vsub.f32 %v293, %v613
      %v710 = vsub.f32 %v294, %v613
      %v711 = vsub.f32 %v295, %v613
      %v712 = vsub.f32 %v296, %v613
      %v713 = vsub.f32 %v297, %v613
      %v714 = vsub.f32 %v298, %v613
      %v715 = vsub.f32 %v299, %v613
      %v716 = vsub.f32 %v300, %v613
      %v717 = vsub.f32 %v301, %v613
      %v718 = vsub.f32 %v302, %v613
      %v719 = vsub.f32 %v303, %v613
      %v720 = vsub.f32 %v304, %v613
      %v721 = vsub.f32 %v305, %v613
      %v722 = vsub.f32 %v306, %v613
      %v723 = vsub.f32 %v307, %v613
      %v724 = vsub.f32 %v308, %v613
      %v725 = vsub.f32 %v309, %v613
      %v726 = vsub.f32 %v310, %v613
      %v727 = vsub.f32 %v311, %v613
      %v728 = vsub.f32 %v312, %v613
      %v729 = vsub.f32 %v313, %v613
      %v730 = vsub.f32 %v314, %v613
      %v731 = vsub.f32 %v315, %v613
      %v732 = vsub.f32 %v316, %v613
      %v733 = vsub.f32 %v317, %v613
      %v734 = vsub.f32 %v318, %v613
      %v735 = vsub.f32 %v319, %v613
      %v736 = vsub.f32 %v320, %v613
      %v737 = vsub.f32 %v321, %v613
      %v738 = vsub.f32 %v322, %v613
      %v739 = vsub.f32 %v323, %v613
      %v740 = vsub.f32 %v324, %v613
      %v741 = vsub.f32 %v325, %v613
      %v742 = vmul.f32 %v614, %v614
      %v743 = vmul.f32 %v615, %v615
      %v744 = vmul.f32 %v616, %v616
      %v745 = vmul.f32 %v617, %v617
      %v746 = vmul.f32 %v618, %v618
      %v747 = vmul.f32 %v619, %v619
      %v748 = vmul.f32 %v620, %v620
      %v749 = vmul.f32 %v621, %v621
      %v750 = vmul.f32 %v622, %v622
      %v751 = vmul.f32 %v623, %v623
      %v752 = vmul.f32 %v624, %v624
      %v753 = vmul.f32 %v625, %v625
      %v754 = vmul.f32 %v626, %v626
      %v755 = vmul.f32 %v627, %v627
      %v756 = vmul.f32 %v628, %v628
      %v757 = vmul.f32 %v629, %v629
      %v758 = vmul.f32 %v630, %v630
      %v759 = vmul.f32 %v631, %v631
      %v760 = vmul.f32 %v632, %v632
      %v761 = vmul.f32 %v633, %v633
      %v762 = vmul.f32 %v634, %v634
      %v763 = vmul.f32 %v635, %v635
      %v764 = vmul.f32 %v636, %v636
      %v765 = vmul.f32 %v637, %v637
      %v766 = vmul.f32 %v638, %v638
      %v767 = vmul.f32 %v639, %v639
      %v768 = vmul.f32 %v640, %v640
      %v769 = vmul.f32 %v641, %v641
      %v770 = vmul.f32 %v642, %v642
      %v771 = vmul.f32 %v643, %v643
      %v772 = vmul.f32 %v644, %v644
      %v773 = vmul.f32 %v645, %v645
      %v774 = vmul.f32 %v646, %v646
      %v775 = vmul.f32 %v647, %v647
      %v776 = vmul.f32 %v648, %v648
      %v777 = vmul.f32 %v649, %v649
      %v778 = vmul.f32 %v650, %v650
      %v779 = vmul.f32 %v651, %v651
      %v780 = vmul.f32 %v652, %v652
      %v781 = vmul.f32 %v653, %v653
      %v782 = vmul.f32 %v654, %v654
      %v783 = vmul.f32 %v655, %v655
      %v784 = vmul.f32 %v656, %v656
      %v785 = vmul.f32 %v657, %v657
      %v786 = vmul.f32 %v658, %v658
      %v787 = vmul.f32 %v659, %v659
      %v788 = vmul.f32 %v660, %v660
      %v789 = vmul.f32 %v661, %v661
      %v790 = vmul.f32 %v662, %v662
      %v791 = vmul.f32 %v663, %v663
      %v792 = vmul.f32 %v664, %v664
      %v793 = vmul.f32 %v665, %v665
      %v794 = vmul.f32 %v666, %v666
      %v795 = vmul.f32 %v667, %v667
      %v796 = vmul.f32 %v668, %v668
      %v797 = vmul.f32 %v669, %v669
      %v798 = vmul.f32 %v670, %v670
      %v799 = vmul.f32 %v671, %v671
      %v800 = vmul.f32 %v672, %v672
      %v801 = vmul.f32 %v673, %v673
      %v802 = vmul.f32 %v674, %v674
      %v803 = vmul.f32 %v675, %v675
      %v804 = vmul.f32 %v676, %v676
      %v805 = vmul.f32 %v677, %v677
      %v806 = vmul.f32 %v678, %v678
      %v807 = vmul.f32 %v679, %v679
      %v808 = vmul.f32 %v680, %v680
      %v809 = vmul.f32 %v681, %v681
      %v810 = vmul.f32 %v682, %v682
      %v811 = vmul.f32 %v683, %v683
      %v812 = vmul.f32 %v684, %v684
      %v813 = vmul.f32 %v685, %v685
      %v814 = vmul.f32 %v686, %v686
      %v815 = vmul.f32 %v687, %v687
      %v816 = vmul.f32 %v688, %v688
      %v817 = vmul.f32 %v689, %v689
      %v818 = vmul.f32 %v690, %v690
      %v819 = vmul.f32 %v691, %v691
      %v820 = vmul.f32 %v692, %v692
      %v821 = vmul.f32 %v693, %v693
      %v822 = vmul.f32 %v694, %v694
      %v823 = vmul.f32 %v695, %v695
      %v824 = vmul.f32 %v696, %v696
      %v825 = vmul.f32 %v697, %v697
      %v826 = vmul.f32 %v698, %v698
      %v827 = vmul.f32 %v699, %v699
      %v828 = vmul.f32 %v700, %v700
      %v829 = vmul.f32 %v701, %v701
      %v830 = vmul.f32 %v702, %v702
      %v831 = vmul.f32 %v703, %v703
      %v832 = vmul.f32 %v704, %v704
      %v833 = vmul.f32 %v705, %v705
      %v834 = vmul.f32 %v706, %v706
      %v835 = vmul.f32 %v707, %v707
      %v836 = vmul.f32 %v708, %v708
      %v837 = vmul.f32 %v709, %v709
      %v838 = vmul.f32 %v710, %v710
      %v839 = vmul.f32 %v711, %v711
      %v840 = vmul.f32 %v712, %v712
      %v841 = vmul.f32 %v713, %v713
      %v842 = vmul.f32 %v714, %v714
      %v843 = vmul.f32 %v715, %v715
      %v844 = vmul.f32 %v716, %v716
      %v845 = vmul.f32 %v717, %v717
      %v846 = vmul.f32 %v718, %v718
      %v847 = vmul.f32 %v719, %v719
      %v848 = vmul.f32 %v720, %v720
      %v849 = vmul.f32 %v721, %v721
      %v850 = vmul.f32 %v722, %v722
      %v851 = vmul.f32 %v723, %v723
      %v852 = vmul.f32 %v724, %v724
      %v853 = vmul.f32 %v725, %v725
      %v854 = vmul.f32 %v726, %v726
      %v855 = vmul.f32 %v727, %v727
      %v856 = vmul.f32 %v728, %v728
      %v857 = vmul.f32 %v729, %v729
      %v858 = vmul.f32 %v730, %v730
      %v859 = vmul.f32 %v731, %v731
      %v860 = vmul.f32 %v732, %v732
      %v861 = vmul.f32 %v733, %v733
      %v862 = vmul.f32 %v734, %v734
      %v863 = vmul.f32 %v735, %v735
      %v864 = vmul.f32 %v736, %v736
      %v865 = vmul.f32 %v737, %v737
      %v866 = vmul.f32 %v738, %v738
      %v867 = vmul.f32 %v739, %v739
      %v868 = vmul.f32 %v740, %v740
      %v869 = vmul.f32 %v741, %v741
      %v870 = vsel %vm327, %v742, 0.0
      %v871 = vsel %vm327, %v743, 0.0
      %v872 = vadd.f32 %v870, %v871
      %v873 = vsel %vm327, %v744, 0.0
      %v874 = vadd.f32 %v872, %v873
      %v875 = vsel %vm327, %v745, 0.0
      %v876 = vadd.f32 %v874, %v875
      %v877 = vsel %vm327, %v746, 0.0
      %v878 = vadd.f32 %v876, %v877
      %v879 = vsel %vm327, %v747, 0.0
      %v880 = vadd.f32 %v878, %v879
      %v881 = vsel %vm327, %v748, 0.0
      %v882 = vadd.f32 %v880, %v881
      %v883 = vsel %vm327, %v749, 0.0
      %v884 = vadd.f32 %v882, %v883
      %v885 = vsel %vm327, %v750, 0.0
      %v886 = vadd.f32 %v884, %v885
      %v887 = vsel %vm327, %v751, 0.0
      %v888 = vadd.f32 %v886, %v887
      %v889 = vsel %vm327, %v752, 0.0
      %v890 = vadd.f32 %v888, %v889
      %v891 = vsel %vm327, %v753, 0.0
      %v892 = vadd.f32 %v890, %v891
      %v893 = vsel %vm327, %v754, 0.0
      %v894 = vadd.f32 %v892, %v893
      %v895 = vsel %vm327, %v755, 0.0
      %v896 = vadd.f32 %v894, %v895
      %v897 = vsel %vm327, %v756, 0.0
      %v898 = vadd.f32 %v896, %v897
      %v899 = vsel %vm327, %v757, 0.0
      %v900 = vadd.f32 %v898, %v899
      %v901 = vsel %vm327, %v758, 0.0
      %v902 = vadd.f32 %v900, %v901
      %v903 = vsel %vm327, %v759, 0.0
      %v904 = vadd.f32 %v902, %v903
      %v905 = vsel %vm327, %v760, 0.0
      %v906 = vadd.f32 %v904, %v905
      %v907 = vsel %vm327, %v761, 0.0
      %v908 = vadd.f32 %v906, %v907
      %v909 = vsel %vm327, %v762, 0.0
      %v910 = vadd.f32 %v908, %v909
      %v911 = vsel %vm327, %v763, 0.0
      %v912 = vadd.f32 %v910, %v911
      %v913 = vsel %vm327, %v764, 0.0
      %v914 = vadd.f32 %v912, %v913
      %v915 = vsel %vm327, %v765, 0.0
      %v916 = vadd.f32 %v914, %v915
      %v917 = vsel %vm327, %v766, 0.0
      %v918 = vadd.f32 %v916, %v917
      %v919 = vsel %vm327, %v767, 0.0
      %v920 = vadd.f32 %v918, %v919
      %v921 = vsel %vm327, %v768, 0.0
      %v922 = vadd.f32 %v920, %v921
      %v923 = vsel %vm327, %v769, 0.0
      %v924 = vadd.f32 %v922, %v923
      %v925 = vsel %vm327, %v770, 0.0
      %v926 = vadd.f32 %v924, %v925
      %v927 = vsel %vm327, %v771, 0.0
      %v928 = vadd.f32 %v926, %v927
      %v929 = vsel %vm327, %v772, 0.0
      %v930 = vadd.f32 %v928, %v929
      %v931 = vsel %vm327, %v773, 0.0
      %v932 = vadd.f32 %v930, %v931
      %v933 = vsel %vm327, %v774, 0.0
      %v934 = vadd.f32 %v932, %v933
      %v935 = vsel %vm327, %v775, 0.0
      %v936 = vadd.f32 %v934, %v935
      %v937 = vsel %vm327, %v776, 0.0
      %v938 = vadd.f32 %v936, %v937
      %v939 = vsel %vm327, %v777, 0.0
      %v940 = vadd.f32 %v938, %v939
      %v941 = vsel %vm327, %v778, 0.0
      %v942 = vadd.f32 %v940, %v941
      %v943 = vsel %vm327, %v779, 0.0
      %v944 = vadd.f32 %v942, %v943
      %v945 = vsel %vm327, %v780, 0.0
      %v946 = vadd.f32 %v944, %v945
      %v947 = vsel %vm327, %v781, 0.0
      %v948 = vadd.f32 %v946, %v947
      %v949 = vsel %vm327, %v782, 0.0
      %v950 = vadd.f32 %v948, %v949
      %v951 = vsel %vm327, %v783, 0.0
      %v952 = vadd.f32 %v950, %v951
      %v953 = vsel %vm327, %v784, 0.0
      %v954 = vadd.f32 %v952, %v953
      %v955 = vsel %vm327, %v785, 0.0
      %v956 = vadd.f32 %v954, %v955
      %v957 = vsel %vm327, %v786, 0.0
      %v958 = vadd.f32 %v956, %v957
      %v959 = vsel %vm327, %v787, 0.0
      %v960 = vadd.f32 %v958, %v959
      %v961 = vsel %vm327, %v788, 0.0
      %v962 = vadd.f32 %v960, %v961
      %v963 = vsel %vm327, %v789, 0.0
      %v964 = vadd.f32 %v962, %v963
      %v965 = vsel %vm327, %v790, 0.0
      %v966 = vadd.f32 %v964, %v965
      %v967 = vsel %vm327, %v791, 0.0
      %v968 = vadd.f32 %v966, %v967
      %v969 = vsel %vm327, %v792, 0.0
      %v970 = vadd.f32 %v968, %v969
      %v971 = vsel %vm327, %v793, 0.0
      %v972 = vadd.f32 %v970, %v971
      %v973 = vsel %vm327, %v794, 0.0
      %v974 = vadd.f32 %v972, %v973
      %v975 = vsel %vm327, %v795, 0.0
      %v976 = vadd.f32 %v974, %v975
      %v977 = vsel %vm327, %v796, 0.0
      %v978 = vadd.f32 %v976, %v977
      %v979 = vsel %vm327, %v797, 0.0
      %v980 = vadd.f32 %v978, %v979
      %v981 = vsel %vm327, %v798, 0.0
      %v982 = vadd.f32 %v980, %v981
      %v983 = vsel %vm327, %v799, 0.0
      %v984 = vadd.f32 %v982, %v983
      %v985 = vsel %vm327, %v800, 0.0
      %v986 = vadd.f32 %v984, %v985
      %v987 = vsel %vm327, %v801, 0.0
      %v988 = vadd.f32 %v986, %v987
      %v989 = vsel %vm327, %v802, 0.0
      %v990 = vadd.f32 %v988, %v989
      %v991 = vsel %vm327, %v803, 0.0
      %v992 = vadd.f32 %v990, %v991
      %v993 = vsel %vm327, %v804, 0.0
      %v994 = vadd.f32 %v992, %v993
      %v995 = vsel %vm327, %v805, 0.0
      %v996 = vadd.f32 %v994, %v995
      %v997 = vsel %vm327, %v806, 0.0
      %v998 = vadd.f32 %v996, %v997
      %v999 = vsel %vm327, %v807, 0.0
      %v1000 = vadd.f32 %v998, %v999
      %v1001 = vsel %vm327, %v808, 0.0
      %v1002 = vadd.f32 %v1000, %v1001
      %v1003 = vsel %vm327, %v809, 0.0
      %v1004 = vadd.f32 %v1002, %v1003
      %v1005 = vsel %vm327, %v810, 0.0
      %v1006 = vadd.f32 %v1004, %v1005
      %v1007 = vsel %vm327, %v811, 0.0
      %v1008 = vadd.f32 %v1006, %v1007
      %v1009 = vsel %vm327, %v812, 0.0
      %v1010 = vadd.f32 %v1008, %v1009
      %v1011 = vsel %vm327, %v813, 0.0
      %v1012 = vadd.f32 %v1010, %v1011
      %v1013 = vsel %vm327, %v814, 0.0
      %v1014 = vadd.f32 %v1012, %v1013
      %v1015 = vsel %vm327, %v815, 0.0
      %v1016 = vadd.f32 %v1014, %v1015
      %v1017 = vsel %vm327, %v816, 0.0
      %v1018 = vadd.f32 %v1016, %v1017
      %v1019 = vsel %vm327, %v817, 0.0
      %v1020 = vadd.f32 %v1018, %v1019
      %v1021 = vsel %vm327, %v818, 0.0
      %v1022 = vadd.f32 %v1020, %v1021
      %v1023 = vsel %vm327, %v819, 0.0
      %v1024 = vadd.f32 %v1022, %v1023
      %v1025 = vsel %vm327, %v820, 0.0
      %v1026 = vadd.f32 %v1024, %v1025
      %v1027 = vsel %vm327, %v821, 0.0
      %v1028 = vadd.f32 %v1026, %v1027
      %v1029 = vsel %vm327, %v822, 0.0
      %v1030 = vadd.f32 %v1028, %v1029
      %v1031 = vsel %vm327, %v823, 0.0
      %v1032 = vadd.f32 %v1030, %v1031
      %v1033 = vsel %vm327, %v824, 0.0
      %v1034 = vadd.f32 %v1032, %v1033
      %v1035 = vsel %vm327, %v825, 0.0
      %v1036 = vadd.f32 %v1034, %v1035
      %v1037 = vsel %vm327, %v826, 0.0
      %v1038 = vadd.f32 %v1036, %v1037
      %v1039 = vsel %vm327, %v827, 0.0
      %v1040 = vadd.f32 %v1038, %v1039
      %v1041 = vsel %vm327, %v828, 0.0
      %v1042 = vadd.f32 %v1040, %v1041
      %v1043 = vsel %vm327, %v829, 0.0
      %v1044 = vadd.f32 %v1042, %v1043
      %v1045 = vsel %vm327, %v830, 0.0
      %v1046 = vadd.f32 %v1044, %v1045
      %v1047 = vsel %vm327, %v831, 0.0
      %v1048 = vadd.f32 %v1046, %v1047
      %v1049 = vsel %vm327, %v832, 0.0
      %v1050 = vadd.f32 %v1048, %v1049
      %v1051 = vsel %vm327, %v833, 0.0
      %v1052 = vadd.f32 %v1050, %v1051
      %v1053 = vsel %vm327, %v834, 0.0
      %v1054 = vadd.f32 %v1052, %v1053
      %v1055 = vsel %vm327, %v835, 0.0
      %v1056 = vadd.f32 %v1054, %v1055
      %v1057 = vsel %vm327, %v836, 0.0
      %v1058 = vadd.f32 %v1056, %v1057
      %v1059 = vsel %vm327, %v837, 0.0
      %v1060 = vadd.f32 %v1058, %v1059
      %v1061 = vsel %vm327, %v838, 0.0
      %v1062 = vadd.f32 %v1060, %v1061
      %v1063 = vsel %vm327, %v839, 0.0
      %v1064 = vadd.f32 %v1062, %v1063
      %v1065 = vsel %vm327, %v840, 0.0
      %v1066 = vadd.f32 %v1064, %v1065
      %v1067 = vsel %vm327, %v841, 0.0
      %v1068 = vadd.f32 %v1066, %v1067
      %v1069 = vsel %vm327, %v842, 0.0
      %v1070 = vadd.f32 %v1068, %v1069
      %v1071 = vsel %vm327, %v843, 0.0
      %v1072 = vadd.f32 %v1070, %v1071
      %v1073 = vsel %vm327, %v844, 0.0
      %v1074 = vadd.f32 %v1072, %v1073
      %v1075 = vsel %vm327, %v845, 0.0
      %v1076 = vadd.f32 %v1074, %v1075
      %v1077 = vsel %vm327, %v846, 0.0
      %v1078 = vadd.f32 %v1076, %v1077
      %v1079 = vsel %vm327, %v847, 0.0
      %v1080 = vadd.f32 %v1078, %v1079
      %v1081 = vsel %vm327, %v848, 0.0
      %v1082 = vadd.f32 %v1080, %v1081
      %v1083 = vsel %vm327, %v849, 0.0
      %v1084 = vadd.f32 %v1082, %v1083
      %v1085 = vsel %vm327, %v850, 0.0
      %v1086 = vadd.f32 %v1084, %v1085
      %v1087 = vsel %vm327, %v851, 0.0
      %v1088 = vadd.f32 %v1086, %v1087
      %v1089 = vsel %vm327, %v852, 0.0
      %v1090 = vadd.f32 %v1088, %v1089
      %v1091 = vsel %vm327, %v853, 0.0
      %v1092 = vadd.f32 %v1090, %v1091
      %v1093 = vsel %vm327, %v854, 0.0
      %v1094 = vadd.f32 %v1092, %v1093
      %v1095 = vsel %vm327, %v855, 0.0
      %v1096 = vadd.f32 %v1094, %v1095
      %v1097 = vsel %vm327, %v856, 0.0
      %v1098 = vadd.f32 %v1096, %v1097
      %v1099 = vsel %vm327, %v857, 0.0
      %v1100 = vadd.f32 %v1098, %v1099
      %v1101 = vsel %vm327, %v858, 0.0
      %v1102 = vadd.f32 %v1100, %v1101
      %v1103 = vsel %vm327, %v859, 0.0
      %v1104 = vadd.f32 %v1102, %v1103
      %v1105 = vsel %vm327, %v860, 0.0
      %v1106 = vadd.f32 %v1104, %v1105
      %v1107 = vsel %vm327, %v861, 0.0
      %v1108 = vadd.f32 %v1106, %v1107
      %v1109 = vsel %vm327, %v862, 0.0
      %v1110 = vadd.f32 %v1108, %v1109
      %v1111 = vsel %vm327, %v863, 0.0
      %v1112 = vadd.f32 %v1110, %v1111
      %v1113 = vsel %vm327, %v864, 0.0
      %v1114 = vadd.f32 %v1112, %v1113
      %v1115 = vsel %vm327, %v865, 0.0
      %v1116 = vadd.f32 %v1114, %v1115
      %v1117 = vsel %vm327, %v866, 0.0
      %v1118 = vadd.f32 %v1116, %v1117
      %v1119 = vsel %vm327, %v867, 0.0
      %v1120 = vadd.f32 %v1118, %v1119
      %v1121 = vsel %vm327, %v868, 0.0
      %v1122 = vadd.f32 %v1120, %v1121
      %v1123 = vsel %vm327, %v869, 0.0
      %v1124 = vadd.f32 %v1122, %v1123
      %v1125 = vrot.slane %v1124, 4
      %v1126 = vadd.f32 %v1124, %v1125
      %v1127 = vrot.slane %v1126, 2
      %v1128 = vadd.f32 %v1126, %v1127
      %v1129 = vrot.slane %v1128, 1
      %v1130 = vadd.f32 %v1128, %v1129
      %v1132 = vsel %vm327, %v1130, 0
      %1134 = vmatpush.msra.mxu0 0.0
      %1135 = vmatpush.msra.mxu0 0.0
      %1136 = vmatpush.msra.mxu0 0.0
      %1137 = vmatpush.msra.mxu0 0.0
      %1138 = vmatpush.msra.mxu0 0.0
      %1139 = vmatpush.msra.mxu0 0.0
      %1140 = vmatpush.msra.mxu0 0.0
      %1141 = vmatpush.msra.mxu0 0.0
      %1142 = vmatpush.msra.mxu0 0.0
      %1143 = vmatpush.msra.mxu0 0.0
      %1144 = vmatpush.msra.mxu0 0.0
      %1145 = vmatpush.msra.mxu0 0.0
      %1146 = vmatpush.msra.mxu0 0.0
      %1147 = vmatpush.msra.mxu0 0.0
      %1148 = vmatpush.msra.mxu0 0.0
      %1149 = vmatpush.msra.mxu0 %v326
      %1150 = vmatmul.f32.gmra.mxu0 %v1132
      %v1151 = vpop.f32.mrf.mxu0
      %v1152 = vadd.f32 0.0, %v1151
      %1153 = vdwg.mxu0
      %v1154 = vmul.f32 %v1152, 0.0009765625
      %v1155 = vadd.f32 %v1154, 1e-05
      %v1156 = vrsqrt.pop %v1155
      %v1157 = vmul.f32 %v1156, %v1155
      %v1158 = vmul.f32 %v1157, %v1156
      %v1159 = vmul.f32 0.5, %v1158
      %v1160 = vsub.f32 1.5, %v1159
      %v1161 = vmul.f32 %v1156, %v1160
      %vm1162 = vweird.f32 %v1155
      %vm1163 = vweird.f32 %v1156
      %vm1164 = vmor %vm1162, %vm1163
      %v1165 = vsel %vm1164, %v1156, %v1161
      %v1166 = vperm.slane %v1165, 0
      %v1167 = vmul.f32 %v614, %v1166
      %v1168 = vmul.f32 %v615, %v1166
      %v1169 = vmul.f32 %v616, %v1166
      %v1170 = vmul.f32 %v617, %v1166
      %v1171 = vmul.f32 %v618, %v1166
      %v1172 = vmul.f32 %v619, %v1166
      %v1173 = vmul.f32 %v620, %v1166
      %v1174 = vmul.f32 %v621, %v1166
      %v1175 = vmul.f32 %v622, %v1166
      %v1176 = vmul.f32 %v623, %v1166
      %v1177 = vmul.f32 %v624, %v1166
      %v1178 = vmul.f32 %v625, %v1166
      %v1179 = vmul.f32 %v626, %v1166
      %v1180 = vmul.f32 %v627, %v1166
      %v1181 = vmul.f32 %v628, %v1166
      %v1182 = vmul.f32 %v629, %v1166
      %v1183 = vmul.f32 %v630, %v1166
      %v1184 = vmul.f32 %v631, %v1166
      %v1185 = vmul.f32 %v632, %v1166
      %v1186 = vmul.f32 %v633, %v1166
      %v1187 = vmul.f32 %v634, %v1166
      %v1188 = vmul.f32 %v635, %v1166
      %v1189 = vmul.f32 %v636, %v1166
      %v1190 = vmul.f32 %v637, %v1166
      %v1191 = vmul.f32 %v638, %v1166
      %v1192 = vmul.f32 %v639, %v1166
      %v1193 = vmul.f32 %v640, %v1166
      %v1194 = vmul.f32 %v641, %v1166
      %v1195 = vmul.f32 %v642, %v1166
      %v1196 = vmul.f32 %v643, %v1166
      %v1197 = vmul.f32 %v644, %v1166
      %v1198 = vmul.f32 %v645, %v1166
      %v1199 = vmul.f32 %v646, %v1166
      %v1200 = vmul.f32 %v647, %v1166
      %v1201 = vmul.f32 %v648, %v1166
      %v1202 = vmul.f32 %v649, %v1166
      %v1203 = vmul.f32 %v650, %v1166
      %v1204 = vmul.f32 %v651, %v1166
      %v1205 = vmul.f32 %v652, %v1166
      %v1206 = vmul.f32 %v653, %v1166
      %v1207 = vmul.f32 %v654, %v1166
      %v1208 = vmul.f32 %v655, %v1166
      %v1209 = vmul.f32 %v656, %v1166
      %v1210 = vmul.f32 %v657, %v1166
      %v1211 = vmul.f32 %v658, %v1166
      %v1212 = vmul.f32 %v659, %v1166
      %v1213 = vmul.f32 %v660, %v1166
      %v1214 = vmul.f32 %v661, %v1166
      %v1215 = vmul.f32 %v662, %v1166
      %v1216 = vmul.f32 %v663, %v1166
      %v1217 = vmul.f32 %v664, %v1166
      %v1218 = vmul.f32 %v665, %v1166
      %v1219 = vmul.f32 %v666, %v1166
      %v1220 = vmul.f32 %v667, %v1166
      %v1221 = vmul.f32 %v668, %v1166
      %v1222 = vmul.f32 %v669, %v1166
      %v1223 = vmul.f32 %v670, %v1166
      %v1224 = vmul.f32 %v671, %v1166
      %v1225 = vmul.f32 %v672, %v1166
      %v1226 = vmul.f32 %v673, %v1166
      %v1227 = vmul.f32 %v674, %v1166
      %v1228 = vmul.f32 %v675, %v1166
      %v1229 = vmul.f32 %v676, %v1166
      %v1230 = vmul.f32 %v677, %v1166
      %v1231 = vmul.f32 %v678, %v1166
      %v1232 = vmul.f32 %v679, %v1166
      %v1233 = vmul.f32 %v680, %v1166
      %v1234 = vmul.f32 %v681, %v1166
      %v1235 = vmul.f32 %v682, %v1166
      %v1236 = vmul.f32 %v683, %v1166
      %v1237 = vmul.f32 %v684, %v1166
      %v1238 = vmul.f32 %v685, %v1166
      %v1239 = vmul.f32 %v686, %v1166
      %v1240 = vmul.f32 %v687, %v1166
      %v1241 = vmul.f32 %v688, %v1166
      %v1242 = vmul.f32 %v689, %v1166
      %v1243 = vmul.f32 %v690, %v1166
      %v1244 = vmul.f32 %v691, %v1166
      %v1245 = vmul.f32 %v692, %v1166
      %v1246 = vmul.f32 %v693, %v1166
      %v1247 = vmul.f32 %v694, %v1166
      %v1248 = vmul.f32 %v695, %v1166
      %v1249 = vmul.f32 %v696, %v1166
      %v1250 = vmul.f32 %v697, %v1166
      %v1251 = vmul.f32 %v698, %v1166
      %v1252 = vmul.f32 %v699, %v1166
      %v1253 = vmul.f32 %v700, %v1166
      %v1254 = vmul.f32 %v701, %v1166
      %v1255 = vmul.f32 %v702, %v1166
      %v1256 = vmul.f32 %v703, %v1166
      %v1257 = vmul.f32 %v704, %v1166
      %v1258 = vmul.f32 %v705, %v1166
      %v1259 = vmul.f32 %v706, %v1166
      %v1260 = vmul.f32 %v707, %v1166
      %v1261 = vmul.f32 %v708, %v1166
      %v1262 = vmul.f32 %v709, %v1166
      %v1263 = vmul.f32 %v710, %v1166
      %v1264 = vmul.f32 %v711, %v1166
      %v1265 = vmul.f32 %v712, %v1166
      %v1266 = vmul.f32 %v713, %v1166
      %v1267 = vmul.f32 %v714, %v1166
      %v1268 = vmul.f32 %v715, %v1166
      %v1269 = vmul.f32 %v716, %v1166
      %v1270 = vmul.f32 %v717, %v1166
      %v1271 = vmul.f32 %v718, %v1166
      %v1272 = vmul.f32 %v719, %v1166
      %v1273 = vmul.f32 %v720, %v1166
      %v1274 = vmul.f32 %v721, %v1166
      %v1275 = vmul.f32 %v722, %v1166
      %v1276 = vmul.f32 %v723, %v1166
      %v1277 = vmul.f32 %v724, %v1166
      %v1278 = vmul.f32 %v725, %v1166
      %v1279 = vmul.f32 %v726, %v1166
      %v1280 = vmul.f32 %v727, %v1166
      %v1281 = vmul.f32 %v728, %v1166
      %v1282 = vmul.f32 %v729, %v1166
      %v1283 = vmul.f32 %v730, %v1166
      %v1284 = vmul.f32 %v731, %v1166
      %v1285 = vmul.f32 %v732, %v1166
      %v1286 = vmul.f32 %v733, %v1166
      %v1287 = vmul.f32 %v734, %v1166
      %v1288 = vmul.f32 %v735, %v1166
      %v1289 = vmul.f32 %v736, %v1166
      %v1290 = vmul.f32 %v737, %v1166
      %v1291 = vmul.f32 %v738, %v1166
      %v1292 = vmul.f32 %v739, %v1166
      %v1293 = vmul.f32 %v740, %v1166
      %v1294 = vmul.f32 %v741, %v1166
      %v1295 = vld [vmem:[%s1] sm:$0x1]
      %v1297 = vperm.slane %v1295, 0
      %v1299 = vmul.f32 %v1167, %v1297
      %v1300 = vmul.f32 %v1168, %v1297
      %v1301 = vmul.f32 %v1169, %v1297
      %v1302 = vmul.f32 %v1170, %v1297
      %v1303 = vmul.f32 %v1171, %v1297
      %v1304 = vmul.f32 %v1172, %v1297
      %v1305 = vmul.f32 %v1173, %v1297
      %v1306 = vmul.f32 %v1174, %v1297
      %v1307 = vmul.f32 %v1175, %v1297
      %v1308 = vmul.f32 %v1176, %v1297
      %v1309 = vmul.f32 %v1177, %v1297
      %v1310 = vmul.f32 %v1178, %v1297
      %v1311 = vmul.f32 %v1179, %v1297
      %v1312 = vmul.f32 %v1180, %v1297
      %v1313 = vmul.f32 %v1181, %v1297
      %v1314 = vmul.f32 %v1182, %v1297
      %v1315 = vmul.f32 %v1183, %v1297
      %v1316 = vmul.f32 %v1184, %v1297
      %v1317 = vmul.f32 %v1185, %v1297
      %v1318 = vmul.f32 %v1186, %v1297
      %v1319 = vmul.f32 %v1187, %v1297
      %v1320 = vmul.f32 %v1188, %v1297
      %v1321 = vmul.f32 %v1189, %v1297
      %v1322 = vmul.f32 %v1190, %v1297
      %v1323 = vmul.f32 %v1191, %v1297
      %v1324 = vmul.f32 %v1192, %v1297
      %v1325 = vmul.f32 %v1193, %v1297
      %v1326 = vmul.f32 %v1194, %v1297
      %v1327 = vmul.f32 %v1195, %v1297
      %v1328 = vmul.f32 %v1196, %v1297
      %v1329 = vmul.f32 %v1197, %v1297
      %v1330 = vmul.f32 %v1198, %v1297
      %v1331 = vmul.f32 %v1199, %v1297
      %v1332 = vmul.f32 %v1200, %v1297
      %v1333 = vmul.f32 %v1201, %v1297
      %v1334 = vmul.f32 %v1202, %v1297
      %v1335 = vmul.f32 %v1203, %v1297
      %v1336 = vmul.f32 %v1204, %v1297
      %v1337 = vmul.f32 %v1205, %v1297
      %v1338 = vmul.f32 %v1206, %v1297
      %v1339 = vmul.f32 %v1207, %v1297
      %v1340 = vmul.f32 %v1208, %v1297
      %v1341 = vmul.f32 %v1209, %v1297
      %v1342 = vmul.f32 %v1210, %v1297
      %v1343 = vmul.f32 %v1211, %v1297
      %v1344 = vmul.f32 %v1212, %v1297
      %v1345 = vmul.f32 %v1213, %v1297
      %v1346 = vmul.f32 %v1214, %v1297
      %v1347 = vmul.f32 %v1215, %v1297
      %v1348 = vmul.f32 %v1216, %v1297
      %v1349 = vmul.f32 %v1217, %v1297
      %v1350 = vmul.f32 %v1218, %v1297
      %v1351 = vmul.f32 %v1219, %v1297
      %v1352 = vmul.f32 %v1220, %v1297
      %v1353 = vmul.f32 %v1221, %v1297
      %v1354 = vmul.f32 %v1222, %v1297
      %v1355 = vmul.f32 %v1223, %v1297
      %v1356 = vmul.f32 %v1224, %v1297
      %v1357 = vmul.f32 %v1225, %v1297
      %v1358 = vmul.f32 %v1226, %v1297
      %v1359 = vmul.f32 %v1227, %v1297
      %v1360 = vmul.f32 %v1228, %v1297
      %v1361 = vmul.f32 %v1229, %v1297
      %v1362 = vmul.f32 %v1230, %v1297
      %v1363 = vmul.f32 %v1231, %v1297
      %v1364 = vmul.f32 %v1232, %v1297
      %v1365 = vmul.f32 %v1233, %v1297
      %v1366 = vmul.f32 %v1234, %v1297
      %v1367 = vmul.f32 %v1235, %v1297
      %v1368 = vmul.f32 %v1236, %v1297
      %v1369 = vmul.f32 %v1237, %v1297
      %v1370 = vmul.f32 %v1238, %v1297
      %v1371 = vmul.f32 %v1239, %v1297
      %v1372 = vmul.f32 %v1240, %v1297
      %v1373 = vmul.f32 %v1241, %v1297
      %v1374 = vmul.f32 %v1242, %v1297
      %v1375 = vmul.f32 %v1243, %v1297
      %v1376 = vmul.f32 %v1244, %v1297
      %v1377 = vmul.f32 %v1245, %v1297
      %v1378 = vmul.f32 %v1246, %v1297
      %v1379 = vmul.f32 %v1247, %v1297
      %v1380 = vmul.f32 %v1248, %v1297
      %v1381 = vmul.f32 %v1249, %v1297
      %v1382 = vmul.f32 %v1250, %v1297
      %v1383 = vmul.f32 %v1251, %v1297
      %v1384 = vmul.f32 %v1252, %v1297
      %v1385 = vmul.f32 %v1253, %v1297
      %v1386 = vmul.f32 %v1254, %v1297
      %v1387 = vmul.f32 %v1255, %v1297
      %v1388 = vmul.f32 %v1256, %v1297
      %v1389 = vmul.f32 %v1257, %v1297
      %v1390 = vmul.f32 %v1258, %v1297
      %v1391 = vmul.f32 %v1259, %v1297
      %v1392 = vmul.f32 %v1260, %v1297
      %v1393 = vmul.f32 %v1261, %v1297
      %v1394 = vmul.f32 %v1262, %v1297
      %v1395 = vmul.f32 %v1263, %v1297
      %v1396 = vmul.f32 %v1264, %v1297
      %v1397 = vmul.f32 %v1265, %v1297
      %v1398 = vmul.f32 %v1266, %v1297
      %v1399 = vmul.f32 %v1267, %v1297
      %v1400 = vmul.f32 %v1268, %v1297
      %v1401 = vmul.f32 %v1269, %v1297
      %v1402 = vmul.f32 %v1270, %v1297
      %v1403 = vmul.f32 %v1271, %v1297
      %v1404 = vmul.f32 %v1272, %v1297
      %v1405 = vmul.f32 %v1273, %v1297
      %v1406 = vmul.f32 %v1274, %v1297
      %v1407 = vmul.f32 %v1275, %v1297
      %v1408 = vmul.f32 %v1276, %v1297
      %v1409 = vmul.f32 %v1277, %v1297
      %v1410 = vmul.f32 %v1278, %v1297
      %v1411 = vmul.f32 %v1279, %v1297
      %v1412 = vmul.f32 %v1280, %v1297
      %v1413 = vmul.f32 %v1281, %v1297
      %v1414 = vmul.f32 %v1282, %v1297
      %v1415 = vmul.f32 %v1283, %v1297
      %v1416 = vmul.f32 %v1284, %v1297
      %v1417 = vmul.f32 %v1285, %v1297
      %v1418 = vmul.f32 %v1286, %v1297
      %v1419 = vmul.f32 %v1287, %v1297
      %v1420 = vmul.f32 %v1288, %v1297
      %v1421 = vmul.f32 %v1289, %v1297
      %v1422 = vmul.f32 %v1290, %v1297
      %v1423 = vmul.f32 %v1291, %v1297
      %v1424 = vmul.f32 %v1292, %v1297
      %v1425 = vmul.f32 %v1293, %v1297
      %v1426 = vmul.f32 %v1294, %v1297
      %v1427 = vld [vmem:[%s2] sm:$0x1]
      %v1429 = vperm.slane %v1427, 0
      %v1431 = vadd.f32 %v1299, %v1429
      %v1432 = vadd.f32 %v1300, %v1429
      %v1433 = vadd.f32 %v1301, %v1429
      %v1434 = vadd.f32 %v1302, %v1429
      %v1435 = vadd.f32 %v1303, %v1429
      %v1436 = vadd.f32 %v1304, %v1429
      %v1437 = vadd.f32 %v1305, %v1429
      %v1438 = vadd.f32 %v1306, %v1429
      %v1439 = vadd.f32 %v1307, %v1429
      %v1440 = vadd.f32 %v1308, %v1429
      %v1441 = vadd.f32 %v1309, %v1429
      %v1442 = vadd.f32 %v1310, %v1429
      %v1443 = vadd.f32 %v1311, %v1429
      %v1444 = vadd.f32 %v1312, %v1429
      %v1445 = vadd.f32 %v1313, %v1429
      %v1446 = vadd.f32 %v1314, %v1429
      %v1447 = vadd.f32 %v1315, %v1429
      %v1448 = vadd.f32 %v1316, %v1429
      %v1449 = vadd.f32 %v1317, %v1429
      %v1450 = vadd.f32 %v1318, %v1429
      %v1451 = vadd.f32 %v1319, %v1429
      %v1452 = vadd.f32 %v1320, %v1429
      %v1453 = vadd.f32 %v1321, %v1429
      %v1454 = vadd.f32 %v1322, %v1429
      %v1455 = vadd.f32 %v1323, %v1429
      %v1456 = vadd.f32 %v1324, %v1429
      %v1457 = vadd.f32 %v1325, %v1429
      %v1458 = vadd.f32 %v1326, %v1429
      %v1459 = vadd.f32 %v1327, %v1429
      %v1460 = vadd.f32 %v1328, %v1429
      %v1461 = vadd.f32 %v1329, %v1429
      %v1462 = vadd.f32 %v1330, %v1429
      %v1463 = vadd.f32 %v1331, %v1429
      %v1464 = vadd.f32 %v1332, %v1429
      %v1465 = vadd.f32 %v1333, %v1429
      %v1466 = vadd.f32 %v1334, %v1429
      %v1467 = vadd.f32 %v1335, %v1429
      %v1468 = vadd.f32 %v1336, %v1429
      %v1469 = vadd.f32 %v1337, %v1429
      %v1470 = vadd.f32 %v1338, %v1429
      %v1471 = vadd.f32 %v1339, %v1429
      %v1472 = vadd.f32 %v1340, %v1429
      %v1473 = vadd.f32 %v1341, %v1429
      %v1474 = vadd.f32 %v1342, %v1429
      %v1475 = vadd.f32 %v1343, %v1429
      %v1476 = vadd.f32 %v1344, %v1429
      %v1477 = vadd.f32 %v1345, %v1429
      %v1478 = vadd.f32 %v1346, %v1429
      %v1479 = vadd.f32 %v1347, %v1429
      %v1480 = vadd.f32 %v1348, %v1429
      %v1481 = vadd.f32 %v1349, %v1429
      %v1482 = vadd.f32 %v1350, %v1429
      %v1483 = vadd.f32 %v1351, %v1429
      %v1484 = vadd.f32 %v1352, %v1429
      %v1485 = vadd.f32 %v1353, %v1429
      %v1486 = vadd.f32 %v1354, %v1429
      %v1487 = vadd.f32 %v1355, %v1429
      %v1488 = vadd.f32 %v1356, %v1429
      %v1489 = vadd.f32 %v1357, %v1429
      %v1490 = vadd.f32 %v1358, %v1429
      %v1491 = vadd.f32 %v1359, %v1429
      %v1492 = vadd.f32 %v1360, %v1429
      %v1493 = vadd.f32 %v1361, %v1429
      %v1494 = vadd.f32 %v1362, %v1429
      %v1495 = vadd.f32 %v1363, %v1429
      %v1496 = vadd.f32 %v1364, %v1429
      %v1497 = vadd.f32 %v1365, %v1429
      %v1498 = vadd.f32 %v1366, %v1429
      %v1499 = vadd.f32 %v1367, %v1429
      %v1500 = vadd.f32 %v1368, %v1429
      %v1501 = vadd.f32 %v1369, %v1429
      %v1502 = vadd.f32 %v1370, %v1429
      %v1503 = vadd.f32 %v1371, %v1429
      %v1504 = vadd.f32 %v1372, %v1429
      %v1505 = vadd.f32 %v1373, %v1429
      %v1506 = vadd.f32 %v1374, %v1429
      %v1507 = vadd.f32 %v1375, %v1429
      %v1508 = vadd.f32 %v1376, %v1429
      %v1509 = vadd.f32 %v1377, %v1429
      %v1510 = vadd.f32 %v1378, %v1429
      %v1511 = vadd.f32 %v1379, %v1429
      %v1512 = vadd.f32 %v1380, %v1429
      %v1513 = vadd.f32 %v1381, %v1429
      %v1514 = vadd.f32 %v1382, %v1429
      %v1515 = vadd.f32 %v1383, %v1429
      %v1516 = vadd.f32 %v1384, %v1429
      %v1517 = vadd.f32 %v1385, %v1429
      %v1518 = vadd.f32 %v1386, %v1429
      %v1519 = vadd.f32 %v1387, %v1429
      %v1520 = vadd.f32 %v1388, %v1429
      %v1521 = vadd.f32 %v1389, %v1429
      %v1522 = vadd.f32 %v1390, %v1429
      %v1523 = vadd.f32 %v1391, %v1429
      %v1524 = vadd.f32 %v1392, %v1429
      %v1525 = vadd.f32 %v1393, %v1429
      %v1526 = vadd.f32 %v1394, %v1429
      %v1527 = vadd.f32 %v1395, %v1429
      %v1528 = vadd.f32 %v1396, %v1429
      %v1529 = vadd.f32 %v1397, %v1429
      %v1530 = vadd.f32 %v1398, %v1429
      %v1531 = vadd.f32 %v1399, %v1429
      %v1532 = vadd.f32 %v1400, %v1429
      %v1533 = vadd.f32 %v1401, %v1429
      %v1534 = vadd.f32 %v1402, %v1429
      %v1535 = vadd.f32 %v1403, %v1429
      %v1536 = vadd.f32 %v1404, %v1429
      %v1537 = vadd.f32 %v1405, %v1429
      %v1538 = vadd.f32 %v1406, %v1429
      %v1539 = vadd.f32 %v1407, %v1429
      %v1540 = vadd.f32 %v1408, %v1429
      %v1541 = vadd.f32 %v1409, %v1429
      %v1542 = vadd.f32 %v1410, %v1429
      %v1543 = vadd.f32 %v1411, %v1429
      %v1544 = vadd.f32 %v1412, %v1429
      %v1545 = vadd.f32 %v1413, %v1429
      %v1546 = vadd.f32 %v1414, %v1429
      %v1547 = vadd.f32 %v1415, %v1429
      %v1548 = vadd.f32 %v1416, %v1429
      %v1549 = vadd.f32 %v1417, %v1429
      %v1550 = vadd.f32 %v1418, %v1429
      %v1551 = vadd.f32 %v1419, %v1429
      %v1552 = vadd.f32 %v1420, %v1429
      %v1553 = vadd.f32 %v1421, %v1429
      %v1554 = vadd.f32 %v1422, %v1429
      %v1555 = vadd.f32 %v1423, %v1429
      %v1556 = vadd.f32 %v1424, %v1429
      %v1557 = vadd.f32 %v1425, %v1429
      %v1558 = vadd.f32 %v1426, %v1429
      %v1559 = vmax.f32 %v1431, 0.0
      %v1560 = vmax.f32 %v1432, 0.0
      %v1561 = vmax.f32 %v1433, 0.0
      %v1562 = vmax.f32 %v1434, 0.0
      %v1563 = vmax.f32 %v1435, 0.0
      %v1564 = vmax.f32 %v1436, 0.0
      %v1565 = vmax.f32 %v1437, 0.0
      %v1566 = vmax.f32 %v1438, 0.0
      %v1567 = vmax.f32 %v1439, 0.0
      %v1568 = vmax.f32 %v1440, 0.0
      %v1569 = vmax.f32 %v1441, 0.0
      %v1570 = vmax.f32 %v1442, 0.0
      %v1571 = vmax.f32 %v1443, 0.0
      %v1572 = vmax.f32 %v1444, 0.0
      %v1573 = vmax.f32 %v1445, 0.0
      %v1574 = vmax.f32 %v1446, 0.0
      %v1575 = vmax.f32 %v1447, 0.0
      %v1576 = vmax.f32 %v1448, 0.0
      %v1577 = vmax.f32 %v1449, 0.0
      %v1578 = vmax.f32 %v1450, 0.0
      %v1579 = vmax.f32 %v1451, 0.0
      %v1580 = vmax.f32 %v1452, 0.0
      %v1581 = vmax.f32 %v1453, 0.0
      %v1582 = vmax.f32 %v1454, 0.0
      %v1583 = vmax.f32 %v1455, 0.0
      %v1584 = vmax.f32 %v1456, 0.0
      %v1585 = vmax.f32 %v1457, 0.0
      %v1586 = vmax.f32 %v1458, 0.0
      %v1587 = vmax.f32 %v1459, 0.0
      %v1588 = vmax.f32 %v1460, 0.0
      %v1589 = vmax.f32 %v1461, 0.0
      %v1590 = vmax.f32 %v1462, 0.0
      %v1591 = vmax.f32 %v1463, 0.0
      %v1592 = vmax.f32 %v1464, 0.0
      %v1593 = vmax.f32 %v1465, 0.0
      %v1594 = vmax.f32 %v1466, 0.0
      %v1595 = vmax.f32 %v1467, 0.0
      %v1596 = vmax.f32 %v1468, 0.0
      %v1597 = vmax.f32 %v1469, 0.0
      %v1598 = vmax.f32 %v1470, 0.0
      %v1599 = vmax.f32 %v1471, 0.0
      %v1600 = vmax.f32 %v1472, 0.0
      %v1601 = vmax.f32 %v1473, 0.0
      %v1602 = vmax.f32 %v1474, 0.0
      %v1603 = vmax.f32 %v1475, 0.0
      %v1604 = vmax.f32 %v1476, 0.0
      %v1605 = vmax.f32 %v1477, 0.0
      %v1606 = vmax.f32 %v1478, 0.0
      %v1607 = vmax.f32 %v1479, 0.0
      %v1608 = vmax.f32 %v1480, 0.0
      %v1609 = vmax.f32 %v1481, 0.0
      %v1610 = vmax.f32 %v1482, 0.0
      %v1611 = vmax.f32 %v1483, 0.0
      %v1612 = vmax.f32 %v1484, 0.0
      %v1613 = vmax.f32 %v1485, 0.0
      %v1614 = vmax.f32 %v1486, 0.0
      %v1615 = vmax.f32 %v1487, 0.0
      %v1616 = vmax.f32 %v1488, 0.0
      %v1617 = vmax.f32 %v1489, 0.0
      %v1618 = vmax.f32 %v1490, 0.0
      %v1619 = vmax.f32 %v1491, 0.0
      %v1620 = vmax.f32 %v1492, 0.0
      %v1621 = vmax.f32 %v1493, 0.0
      %v1622 = vmax.f32 %v1494, 0.0
      %v1623 = vmax.f32 %v1495, 0.0
      %v1624 = vmax.f32 %v1496, 0.0
      %v1625 = vmax.f32 %v1497, 0.0
      %v1626 = vmax.f32 %v1498, 0.0
      %v1627 = vmax.f32 %v1499, 0.0
      %v1628 = vmax.f32 %v1500, 0.0
      %v1629 = vmax.f32 %v1501, 0.0
      %v1630 = vmax.f32 %v1502, 0.0
      %v1631 = vmax.f32 %v1503, 0.0
      %v1632 = vmax.f32 %v1504, 0.0
      %v1633 = vmax.f32 %v1505, 0.0
      %v1634 = vmax.f32 %v1506, 0.0
      %v1635 = vmax.f32 %v1507, 0.0
      %v1636 = vmax.f32 %v1508, 0.0
      %v1637 = vmax.f32 %v1509, 0.0
      %v1638 = vmax.f32 %v1510, 0.0
      %v1639 = vmax.f32 %v1511, 0.0
      %v1640 = vmax.f32 %v1512, 0.0
      %v1641 = vmax.f32 %v1513, 0.0
      %v1642 = vmax.f32 %v1514, 0.0
      %v1643 = vmax.f32 %v1515, 0.0
      %v1644 = vmax.f32 %v1516, 0.0
      %v1645 = vmax.f32 %v1517, 0.0
      %v1646 = vmax.f32 %v1518, 0.0
      %v1647 = vmax.f32 %v1519, 0.0
      %v1648 = vmax.f32 %v1520, 0.0
      %v1649 = vmax.f32 %v1521, 0.0
      %v1650 = vmax.f32 %v1522, 0.0
      %v1651 = vmax.f32 %v1523, 0.0
      %v1652 = vmax.f32 %v1524, 0.0
      %v1653 = vmax.f32 %v1525, 0.0
      %v1654 = vmax.f32 %v1526, 0.0
      %v1655 = vmax.f32 %v1527, 0.0
      %v1656 = vmax.f32 %v1528, 0.0
      %v1657 = vmax.f32 %v1529, 0.0
      %v1658 = vmax.f32 %v1530, 0.0
      %v1659 = vmax.f32 %v1531, 0.0
      %v1660 = vmax.f32 %v1532, 0.0
      %v1661 = vmax.f32 %v1533, 0.0
      %v1662 = vmax.f32 %v1534, 0.0
      %v1663 = vmax.f32 %v1535, 0.0
      %v1664 = vmax.f32 %v1536, 0.0
      %v1665 = vmax.f32 %v1537, 0.0
      %v1666 = vmax.f32 %v1538, 0.0
      %v1667 = vmax.f32 %v1539, 0.0
      %v1668 = vmax.f32 %v1540, 0.0
      %v1669 = vmax.f32 %v1541, 0.0
      %v1670 = vmax.f32 %v1542, 0.0
      %v1671 = vmax.f32 %v1543, 0.0
      %v1672 = vmax.f32 %v1544, 0.0
      %v1673 = vmax.f32 %v1545, 0.0
      %v1674 = vmax.f32 %v1546, 0.0
      %v1675 = vmax.f32 %v1547, 0.0
      %v1676 = vmax.f32 %v1548, 0.0
      %v1677 = vmax.f32 %v1549, 0.0
      %v1678 = vmax.f32 %v1550, 0.0
      %v1679 = vmax.f32 %v1551, 0.0
      %v1680 = vmax.f32 %v1552, 0.0
      %v1681 = vmax.f32 %v1553, 0.0
      %v1682 = vmax.f32 %v1554, 0.0
      %v1683 = vmax.f32 %v1555, 0.0
      %v1684 = vmax.f32 %v1556, 0.0
      %v1685 = vmax.f32 %v1557, 0.0
      %v1686 = vmax.f32 %v1558, 0.0
      %v1687 = vpack.c.bf16 %v1559, %v1559
      %v1688 = vpack.c.bf16 %v1560, %v1560
      %v1689 = vpack.c.bf16 %v1561, %v1561
      %v1690 = vpack.c.bf16 %v1562, %v1562
      %v1691 = vpack.c.bf16 %v1563, %v1563
      %v1692 = vpack.c.bf16 %v1564, %v1564
      %v1693 = vpack.c.bf16 %v1565, %v1565
      %v1694 = vpack.c.bf16 %v1566, %v1566
      %v1695 = vpack.c.bf16 %v1567, %v1567
      %v1696 = vpack.c.bf16 %v1568, %v1568
      %v1697 = vpack.c.bf16 %v1569, %v1569
      %v1698 = vpack.c.bf16 %v1570, %v1570
      %v1699 = vpack.c.bf16 %v1571, %v1571
      %v1700 = vpack.c.bf16 %v1572, %v1572
      %v1701 = vpack.c.bf16 %v1573, %v1573
      %v1702 = vpack.c.bf16 %v1574, %v1574
      %v1703 = vpack.c.bf16 %v1575, %v1575
      %v1704 = vpack.c.bf16 %v1576, %v1576
      %v1705 = vpack.c.bf16 %v1577, %v1577
      %v1706 = vpack.c.bf16 %v1578, %v1578
      %v1707 = vpack.c.bf16 %v1579, %v1579
      %v1708 = vpack.c.bf16 %v1580, %v1580
      %v1709 = vpack.c.bf16 %v1581, %v1581
      %v1710 = vpack.c.bf16 %v1582, %v1582
      %v1711 = vpack.c.bf16 %v1583, %v1583
      %v1712 = vpack.c.bf16 %v1584, %v1584
      %v1713 = vpack.c.bf16 %v1585, %v1585
      %v1714 = vpack.c.bf16 %v1586, %v1586
      %v1715 = vpack.c.bf16 %v1587, %v1587
      %v1716 = vpack.c.bf16 %v1588, %v1588
      %v1717 = vpack.c.bf16 %v1589, %v1589
      %v1718 = vpack.c.bf16 %v1590, %v1590
      %v1719 = vpack.c.bf16 %v1591, %v1591
      %v1720 = vpack.c.bf16 %v1592, %v1592
      %v1721 = vpack.c.bf16 %v1593, %v1593
      %v1722 = vpack.c.bf16 %v1594, %v1594
      %v1723 = vpack.c.bf16 %v1595, %v1595
      %v1724 = vpack.c.bf16 %v1596, %v1596
      %v1725 = vpack.c.bf16 %v1597, %v1597
      %v1726 = vpack.c.bf16 %v1598, %v1598
      %v1727 = vpack.c.bf16 %v1599, %v1599
      %v1728 = vpack.c.bf16 %v1600, %v1600
      %v1729 = vpack.c.bf16 %v1601, %v1601
      %v1730 = vpack.c.bf16 %v1602, %v1602
      %v1731 = vpack.c.bf16 %v1603, %v1603
      %v1732 = vpack.c.bf16 %v1604, %v1604
      %v1733 = vpack.c.bf16 %v1605, %v1605
      %v1734 = vpack.c.bf16 %v1606, %v1606
      %v1735 = vpack.c.bf16 %v1607, %v1607
      %v1736 = vpack.c.bf16 %v1608, %v1608
      %v1737 = vpack.c.bf16 %v1609, %v1609
      %v1738 = vpack.c.bf16 %v1610, %v1610
      %v1739 = vpack.c.bf16 %v1611, %v1611
      %v1740 = vpack.c.bf16 %v1612, %v1612
      %v1741 = vpack.c.bf16 %v1613, %v1613
      %v1742 = vpack.c.bf16 %v1614, %v1614
      %v1743 = vpack.c.bf16 %v1615, %v1615
      %v1744 = vpack.c.bf16 %v1616, %v1616
      %v1745 = vpack.c.bf16 %v1617, %v1617
      %v1746 = vpack.c.bf16 %v1618, %v1618
      %v1747 = vpack.c.bf16 %v1619, %v1619
      %v1748 = vpack.c.bf16 %v1620, %v1620
      %v1749 = vpack.c.bf16 %v1621, %v1621
      %v1750 = vpack.c.bf16 %v1622, %v1622
      %v1751 = vpack.c.bf16 %v1623, %v1623
      %v1752 = vpack.c.bf16 %v1624, %v1624
      %v1753 = vpack.c.bf16 %v1625, %v1625
      %v1754 = vpack.c.bf16 %v1626, %v1626
      %v1755 = vpack.c.bf16 %v1627, %v1627
      %v1756 = vpack.c.bf16 %v1628, %v1628
      %v1757 = vpack.c.bf16 %v1629, %v1629
      %v1758 = vpack.c.bf16 %v1630, %v1630
      %v1759 = vpack.c.bf16 %v1631, %v1631
      %v1760 = vpack.c.bf16 %v1632, %v1632
      %v1761 = vpack.c.bf16 %v1633, %v1633
      %v1762 = vpack.c.bf16 %v1634, %v1634
      %v1763 = vpack.c.bf16 %v1635, %v1635
      %v1764 = vpack.c.bf16 %v1636, %v1636
      %v1765 = vpack.c.bf16 %v1637, %v1637
      %v1766 = vpack.c.bf16 %v1638, %v1638
      %v1767 = vpack.c.bf16 %v1639, %v1639
      %v1768 = vpack.c.bf16 %v1640, %v1640
      %v1769 = vpack.c.bf16 %v1641, %v1641
      %v1770 = vpack.c.bf16 %v1642, %v1642
      %v1771 = vpack.c.bf16 %v1643, %v1643
      %v1772 = vpack.c.bf16 %v1644, %v1644
      %v1773 = vpack.c.bf16 %v1645, %v1645
      %v1774 = vpack.c.bf16 %v1646, %v1646
      %v1775 = vpack.c.bf16 %v1647, %v1647
      %v1776 = vpack.c.bf16 %v1648, %v1648
      %v1777 = vpack.c.bf16 %v1649, %v1649
      %v1778 = vpack.c.bf16 %v1650, %v1650
      %v1779 = vpack.c.bf16 %v1651, %v1651
      %v1780 = vpack.c.bf16 %v1652, %v1652
      %v1781 = vpack.c.bf16 %v1653, %v1653
      %v1782 = vpack.c.bf16 %v1654, %v1654
      %v1783 = vpack.c.bf16 %v1655, %v1655
      %v1784 = vpack.c.bf16 %v1656, %v1656
      %v1785 = vpack.c.bf16 %v1657, %v1657
      %v1786 = vpack.c.bf16 %v1658, %v1658
      %v1787 = vpack.c.bf16 %v1659, %v1659
      %v1788 = vpack.c.bf16 %v1660, %v1660
      %v1789 = vpack.c.bf16 %v1661, %v1661
      %v1790 = vpack.c.bf16 %v1662, %v1662
      %v1791 = vpack.c.bf16 %v1663, %v1663
      %v1792 = vpack.c.bf16 %v1664, %v1664
      %v1793 = vpack.c.bf16 %v1665, %v1665
      %v1794 = vpack.c.bf16 %v1666, %v1666
      %v1795 = vpack.c.bf16 %v1667, %v1667
      %v1796 = vpack.c.bf16 %v1668, %v1668
      %v1797 = vpack.c.bf16 %v1669, %v1669
      %v1798 = vpack.c.bf16 %v1670, %v1670
      %v1799 = vpack.c.bf16 %v1671, %v1671
      %v1800 = vpack.c.bf16 %v1672, %v1672
      %v1801 = vpack.c.bf16 %v1673, %v1673
      %v1802 = vpack.c.bf16 %v1674, %v1674
      %v1803 = vpack.c.bf16 %v1675, %v1675
      %v1804 = vpack.c.bf16 %v1676, %v1676
      %v1805 = vpack.c.bf16 %v1677, %v1677
      %v1806 = vpack.c.bf16 %v1678, %v1678
      %v1807 = vpack.c.bf16 %v1679, %v1679
      %v1808 = vpack.c.bf16 %v1680, %v1680
      %v1809 = vpack.c.bf16 %v1681, %v1681
      %v1810 = vpack.c.bf16 %v1682, %v1682
      %v1811 = vpack.c.bf16 %v1683, %v1683
      %v1812 = vpack.c.bf16 %v1684, %v1684
      %v1813 = vpack.c.bf16 %v1685, %v1685
      %v1814 = vpack.c.bf16 %v1686, %v1686
      %vm1815 = vcmask 60416
      %1816 = vst.msk [vmem:[%s197] sm:$0xf] %vm1815, %v1687
      %1817 = vst.msk [vmem:[%s197 + $0x4] sm:$0xf] %vm1815, %v1688
      %1818 = vst.msk [vmem:[%s197 + $0x8] sm:$0xf] %vm1815, %v1689
      %1819 = vst.msk [vmem:[%s197 + $0xc] sm:$0xf] %vm1815, %v1690
      %1820 = vst.msk [vmem:[%s197 + $0x10] sm:$0xf] %vm1815, %v1691
      %1821 = vst.msk [vmem:[%s197 + $0x14] sm:$0xf] %vm1815, %v1692
      %1822 = vst.msk [vmem:[%s197 + $0x18] sm:$0xf] %vm1815, %v1693
      %1823 = vst.msk [vmem:[%s197 + $0x1c] sm:$0xf] %vm1815, %v1694
      %1824 = vst.msk [vmem:[%s197 + $0x20] sm:$0xf] %vm1815, %v1695
      %1825 = vst.msk [vmem:[%s197 + $0x24] sm:$0xf] %vm1815, %v1696
      %1826 = vst.msk [vmem:[%s197 + $0x28] sm:$0xf] %vm1815, %v1697
      %1827 = vst.msk [vmem:[%s197 + $0x2c] sm:$0xf] %vm1815, %v1698
      %1828 = vst.msk [vmem:[%s197 + $0x30] sm:$0xf] %vm1815, %v1699
      %1829 = vst.msk [vmem:[%s197 + $0x34] sm:$0xf] %vm1815, %v1700
      %1830 = vst.msk [vmem:[%s197 + $0x38] sm:$0xf] %vm1815, %v1701
      %1831 = vst.msk [vmem:[%s197 + $0x3c] sm:$0xf] %vm1815, %v1702
      %1832 = vst.msk [vmem:[%s197 + $0x40] sm:$0xf] %vm1815, %v1703
      %1833 = vst.msk [vmem:[%s197 + $0x44] sm:$0xf] %vm1815, %v1704
      %1834 = vst.msk [vmem:[%s197 + $0x48] sm:$0xf] %vm1815, %v1705
      %1835 = vst.msk [vmem:[%s197 + $0x4c] sm:$0xf] %vm1815, %v1706
      %1836 = vst.msk [vmem:[%s197 + $0x50] sm:$0xf] %vm1815, %v1707
      %1837 = vst.msk [vmem:[%s197 + $0x54] sm:$0xf] %vm1815, %v1708
      %1838 = vst.msk [vmem:[%s197 + $0x58] sm:$0xf] %vm1815, %v1709
      %1839 = vst.msk [vmem:[%s197 + $0x5c] sm:$0xf] %vm1815, %v1710
      %1840 = vst.msk [vmem:[%s197 + $0x60] sm:$0xf] %vm1815, %v1711
      %1841 = vst.msk [vmem:[%s197 + $0x64] sm:$0xf] %vm1815, %v1712
      %1842 = vst.msk [vmem:[%s197 + $0x68] sm:$0xf] %vm1815, %v1713
      %1843 = vst.msk [vmem:[%s197 + $0x6c] sm:$0xf] %vm1815, %v1714
      %1844 = vst.msk [vmem:[%s197 + $0x70] sm:$0xf] %vm1815, %v1715
      %1845 = vst.msk [vmem:[%s197 + $0x74] sm:$0xf] %vm1815, %v1716
      %1846 = vst.msk [vmem:[%s197 + $0x78] sm:$0xf] %vm1815, %v1717
      %1847 = vst.msk [vmem:[%s197 + $0x7c] sm:$0xf] %vm1815, %v1718
      %1848 = vst.msk [vmem:[%s197 + $0x80] sm:$0xf] %vm1815, %v1719
      %1849 = vst.msk [vmem:[%s197 + $0x84] sm:$0xf] %vm1815, %v1720
      %1850 = vst.msk [vmem:[%s197 + $0x88] sm:$0xf] %vm1815, %v1721
      %1851 = vst.msk [vmem:[%s197 + $0x8c] sm:$0xf] %vm1815, %v1722
      %1852 = vst.msk [vmem:[%s197 + $0x90] sm:$0xf] %vm1815, %v1723
      %1853 = vst.msk [vmem:[%s197 + $0x94] sm:$0xf] %vm1815, %v1724
      %1854 = vst.msk [vmem:[%s197 + $0x98] sm:$0xf] %vm1815, %v1725
      %1855 = vst.msk [vmem:[%s197 + $0x9c] sm:$0xf] %vm1815, %v1726
      %1856 = vst.msk [vmem:[%s197 + $0xa0] sm:$0xf] %vm1815, %v1727
      %1857 = vst.msk [vmem:[%s197 + $0xa4] sm:$0xf] %vm1815, %v1728
      %1858 = vst.msk [vmem:[%s197 + $0xa8] sm:$0xf] %vm1815, %v1729
      %1859 = vst.msk [vmem:[%s197 + $0xac] sm:$0xf] %vm1815, %v1730
      %1860 = vst.msk [vmem:[%s197 + $0xb0] sm:$0xf] %vm1815, %v1731
      %1861 = vst.msk [vmem:[%s197 + $0xb4] sm:$0xf] %vm1815, %v1732
      %1862 = vst.msk [vmem:[%s197 + $0xb8] sm:$0xf] %vm1815, %v1733
      %1863 = vst.msk [vmem:[%s197 + $0xbc] sm:$0xf] %vm1815, %v1734
      %1864 = vst.msk [vmem:[%s197 + $0xc0] sm:$0xf] %vm1815, %v1735
      %1865 = vst.msk [vmem:[%s197 + $0xc4] sm:$0xf] %vm1815, %v1736
      %1866 = vst.msk [vmem:[%s197 + $0xc8] sm:$0xf] %vm1815, %v1737
      %1867 = vst.msk [vmem:[%s197 + $0xcc] sm:$0xf] %vm1815, %v1738
      %1868 = vst.msk [vmem:[%s197 + $0xd0] sm:$0xf] %vm1815, %v1739
      %1869 = vst.msk [vmem:[%s197 + $0xd4] sm:$0xf] %vm1815, %v1740
      %1870 = vst.msk [vmem:[%s197 + $0xd8] sm:$0xf] %vm1815, %v1741
      %1871 = vst.msk [vmem:[%s197 + $0xdc] sm:$0xf] %vm1815, %v1742
      %1872 = vst.msk [vmem:[%s197 + $0xe0] sm:$0xf] %vm1815, %v1743
      %1873 = vst.msk [vmem:[%s197 + $0xe4] sm:$0xf] %vm1815, %v1744
      %1874 = vst.msk [vmem:[%s197 + $0xe8] sm:$0xf] %vm1815, %v1745
      %1875 = vst.msk [vmem:[%s197 + $0xec] sm:$0xf] %vm1815, %v1746
      %1876 = vst.msk [vmem:[%s197 + $0xf0] sm:$0xf] %vm1815, %v1747
      %1877 = vst.msk [vmem:[%s197 + $0xf4] sm:$0xf] %vm1815, %v1748
      %1878 = vst.msk [vmem:[%s197 + $0xf8] sm:$0xf] %vm1815, %v1749
      %1879 = vst.msk [vmem:[%s197 + $0xfc] sm:$0xf] %vm1815, %v1750
      %1880 = vst.msk [vmem:[%s197 + $0x100] sm:$0xf] %vm1815, %v1751
      %1881 = vst.msk [vmem:[%s197 + $0x104] sm:$0xf] %vm1815, %v1752
      %1882 = vst.msk [vmem:[%s197 + $0x108] sm:$0xf] %vm1815, %v1753
      %1883 = vst.msk [vmem:[%s197 + $0x10c] sm:$0xf] %vm1815, %v1754
      %1884 = vst.msk [vmem:[%s197 + $0x110] sm:$0xf] %vm1815, %v1755
      %1885 = vst.msk [vmem:[%s197 + $0x114] sm:$0xf] %vm1815, %v1756
      %1886 = vst.msk [vmem:[%s197 + $0x118] sm:$0xf] %vm1815, %v1757
      %1887 = vst.msk [vmem:[%s197 + $0x11c] sm:$0xf] %vm1815, %v1758
      %1888 = vst.msk [vmem:[%s197 + $0x120] sm:$0xf] %vm1815, %v1759
      %1889 = vst.msk [vmem:[%s197 + $0x124] sm:$0xf] %vm1815, %v1760
      %1890 = vst.msk [vmem:[%s197 + $0x128] sm:$0xf] %vm1815, %v1761
      %1891 = vst.msk [vmem:[%s197 + $0x12c] sm:$0xf] %vm1815, %v1762
      %1892 = vst.msk [vmem:[%s197 + $0x130] sm:$0xf] %vm1815, %v1763
      %1893 = vst.msk [vmem:[%s197 + $0x134] sm:$0xf] %vm1815, %v1764
      %1894 = vst.msk [vmem:[%s197 + $0x138] sm:$0xf] %vm1815, %v1765
      %1895 = vst.msk [vmem:[%s197 + $0x13c] sm:$0xf] %vm1815, %v1766
      %1896 = vst.msk [vmem:[%s197 + $0x140] sm:$0xf] %vm1815, %v1767
      %1897 = vst.msk [vmem:[%s197 + $0x144] sm:$0xf] %vm1815, %v1768
      %1898 = vst.msk [vmem:[%s197 + $0x148] sm:$0xf] %vm1815, %v1769
      %1899 = vst.msk [vmem:[%s197 + $0x14c] sm:$0xf] %vm1815, %v1770
      %1900 = vst.msk [vmem:[%s197 + $0x150] sm:$0xf] %vm1815, %v1771
      %1901 = vst.msk [vmem:[%s197 + $0x154] sm:$0xf] %vm1815, %v1772
      %1902 = vst.msk [vmem:[%s197 + $0x158] sm:$0xf] %vm1815, %v1773
      %1903 = vst.msk [vmem:[%s197 + $0x15c] sm:$0xf] %vm1815, %v1774
      %1904 = vst.msk [vmem:[%s197 + $0x160] sm:$0xf] %vm1815, %v1775
      %1905 = vst.msk [vmem:[%s197 + $0x164] sm:$0xf] %vm1815, %v1776
      %1906 = vst.msk [vmem:[%s197 + $0x168] sm:$0xf] %vm1815, %v1777
      %1907 = vst.msk [vmem:[%s197 + $0x16c] sm:$0xf] %vm1815, %v1778
      %1908 = vst.msk [vmem:[%s197 + $0x170] sm:$0xf] %vm1815, %v1779
      %1909 = vst.msk [vmem:[%s197 + $0x174] sm:$0xf] %vm1815, %v1780
      %1910 = vst.msk [vmem:[%s197 + $0x178] sm:$0xf] %vm1815, %v1781
      %1911 = vst.msk [vmem:[%s197 + $0x17c] sm:$0xf] %vm1815, %v1782
      %1912 = vst.msk [vmem:[%s197 + $0x180] sm:$0xf] %vm1815, %v1783
      %1913 = vst.msk [vmem:[%s197 + $0x184] sm:$0xf] %vm1815, %v1784
      %1914 = vst.msk [vmem:[%s197 + $0x188] sm:$0xf] %vm1815, %v1785
      %1915 = vst.msk [vmem:[%s197 + $0x18c] sm:$0xf] %vm1815, %v1786
      %1916 = vst.msk [vmem:[%s197 + $0x190] sm:$0xf] %vm1815, %v1787
      %1917 = vst.msk [vmem:[%s197 + $0x194] sm:$0xf] %vm1815, %v1788
      %1918 = vst.msk [vmem:[%s197 + $0x198] sm:$0xf] %vm1815, %v1789
      %1919 = vst.msk [vmem:[%s197 + $0x19c] sm:$0xf] %vm1815, %v1790
      %1920 = vst.msk [vmem:[%s197 + $0x1a0] sm:$0xf] %vm1815, %v1791
      %1921 = vst.msk [vmem:[%s197 + $0x1a4] sm:$0xf] %vm1815, %v1792
      %1922 = vst.msk [vmem:[%s197 + $0x1a8] sm:$0xf] %vm1815, %v1793
      %1923 = vst.msk [vmem:[%s197 + $0x1ac] sm:$0xf] %vm1815, %v1794
      %1924 = vst.msk [vmem:[%s197 + $0x1b0] sm:$0xf] %vm1815, %v1795
      %1925 = vst.msk [vmem:[%s197 + $0x1b4] sm:$0xf] %vm1815, %v1796
      %1926 = vst.msk [vmem:[%s197 + $0x1b8] sm:$0xf] %vm1815, %v1797
      %1927 = vst.msk [vmem:[%s197 + $0x1bc] sm:$0xf] %vm1815, %v1798
      %1928 = vst.msk [vmem:[%s197 + $0x1c0] sm:$0xf] %vm1815, %v1799
      %1929 = vst.msk [vmem:[%s197 + $0x1c4] sm:$0xf] %vm1815, %v1800
      %1930 = vst.msk [vmem:[%s197 + $0x1c8] sm:$0xf] %vm1815, %v1801
      %1931 = vst.msk [vmem:[%s197 + $0x1cc] sm:$0xf] %vm1815, %v1802
      %1932 = vst.msk [vmem:[%s197 + $0x1d0] sm:$0xf] %vm1815, %v1803
      %1933 = vst.msk [vmem:[%s197 + $0x1d4] sm:$0xf] %vm1815, %v1804
      %1934 = vst.msk [vmem:[%s197 + $0x1d8] sm:$0xf] %vm1815, %v1805
      %1935 = vst.msk [vmem:[%s197 + $0x1dc] sm:$0xf] %vm1815, %v1806
      %1936 = vst.msk [vmem:[%s197 + $0x1e0] sm:$0xf] %vm1815, %v1807
      %1937 = vst.msk [vmem:[%s197 + $0x1e4] sm:$0xf] %vm1815, %v1808
      %1938 = vst.msk [vmem:[%s197 + $0x1e8] sm:$0xf] %vm1815, %v1809
      %1939 = vst.msk [vmem:[%s197 + $0x1ec] sm:$0xf] %vm1815, %v1810
      %1940 = vst.msk [vmem:[%s197 + $0x1f0] sm:$0xf] %vm1815, %v1811
      %1941 = vst.msk [vmem:[%s197 + $0x1f4] sm:$0xf] %vm1815, %v1812
      %1942 = vst.msk [vmem:[%s197 + $0x1f8] sm:$0xf] %vm1815, %v1813
      %1943 = vst.msk [vmem:[%s197 + $0x1fc] sm:$0xf] %vm1815, %v1814
      %p1944 = scmp.lt.s32.totalorder %s15, 1
      %s1945 = scalar_select %p1944, %s15, 1
      %s1946 = smul.addr %s1945, 128
      %s1947 = smul.addr %s1946, 4
      %s1948 = scalar_lea.vmem %s4, %s1947
      // Predicated region
      $region37: #{generator_forward.16} parent=35 // pred_check
        %p1949 = pneg %p122
      $region38: #{generator_forward.16} parent=35 // pred_check_branch
        %1951 = sbr.rel (%p1949) target = $region40
      $region39: #{generator_forward.16} parent=35 // pred_region
        _
      $region40: #{generator_forward.16} parent=35 // pred_fallthru
        _
    $region36: #{generator_forward.16} parent=5 // pred_fallthru
      _
    %p1952 = scmp.le.s32.totalorder 2, %s10
    // Predicated region
    $region41: #{generator_forward.16} parent=5 // pred_check
      %p1953 = pneg %p1952
    $region42: #{generator_forward.16} parent=5 // pred_check_branch
      %1955 = sbr.rel (%p1953) target = $region44
    $region43: #{generator_forward.16} parent=5 // pred_region
      %s1956 = ssub.s32 %s10, 2
      // Predicated region
      $region45: #{generator_forward.16} parent=43 // pred_check
        %p1957 = pneg %p128
      $region46: #{generator_forward.16} parent=43 // pred_check_branch
        %1959 = sbr.rel (%p1957) target = $region48
      $region47: #{generator_forward.16} parent=43 // pred_region
        %p1960 = scmp.lt.s32.totalorder %s16, 1
        %s1961 = scalar_select %p1960, %s16, 1
        %s1962 = smul.addr %s1961, 128
        %s1963 = smul.addr %s1962, 4
        %s1964 = scalar_lea.vmem %s4, %s1963
      $region48: #{generator_forward.16} parent=43 // pred_fallthru
        _
    $region44: #{generator_forward.16} parent=5 // pred_fallthru
      _
  $region6: #{generator_forward.16} parent=0 // loop_footer
    %s14 = sadd.s32 1, %s10
  $region7: #{generator_forward.16} parent=0 // loop_footer_branch
    %9 = sbr.rel target = $region3
  $region8: #{generator_forward.16} parent=0 // loop_exit
    _

</llo_original>
